<compile_context>
chip_gen: v7x
topology: tpu7x:2x2x1
jax: 0.10.0
libtpu: 0.0.40
codegen_flags: <defaults>
</compile_context>

<pallas_src>
import functools
import math

import jax
import jax.numpy as jnp
from jax.experimental import pallas as pl
from jax.experimental.pallas import tpu as pltpu


def _round_up(x, m):
    return (x + m - 1) // m * m


def _padded_bytes(shape, itemsize):
    """Bytes of a VMEM-resident array with (8, 128) tile padding on the last
    two dims (rough upper bound for the vmem_limit estimate)."""
    shape = tuple(shape)
    if len(shape) == 1:
        shape = (1,) + shape
    lead = math.prod(shape[:-2]) if len(shape) > 2 else 1
    return lead * _round_up(shape[-2], 8) * _round_up(shape[-1], 128) * itemsize


def _choose_q_tile(nq, max_tile=512):
    """Whole-Nq block for small sequences; otherwise the largest divisor of Nq
    that is a multiple of 8 and <= max_tile (keeps block shapes legal)."""
    if nq <= max_tile:
        return nq
    for t in range(max_tile, 7, -1):
        if t % 8 == 0 and nq % t == 0:
            return t
    return nq


# ----------------------------------------------------------------------------
# Fused SRA kernel: [SR conv-as-matmul + LN] + QKV proj + attention + out proj
# Grid = (B, num_q_tiles).  All heads handled inside one grid step; projection
# weights arrive head-major so the kernel never slices at lane offsets.
# ----------------------------------------------------------------------------
def _sra_kernel(*refs, num_heads, nk, nk_pad, apply_sr, return_attn):
    ctx_ref = refs[-1]                      # (tq, C) f32 VMEM scratch
    refs = refs[:-1]
    if return_attn:
        o_ref, a_ref = refs[-2:]
        refs = refs[:-2]
    else:
        (o_ref,) = refs[-1:]
        a_ref = None
        refs = refs[:-1]
    if apply_sr:
        (q_ref, k_ref, v_ref, w_sr_ref, b_sr_ref, g_ref, beta_ref,
         wq_ref, bq_ref, wk_ref, bk_ref, wv_ref, bv_ref,
         wo_ref, bo_ref) = refs
    else:
        (q_ref, k_ref, v_ref,
         wq_ref, bq_ref, wk_ref, bk_ref, wv_ref, bv_ref,
         wo_ref, bo_ref) = refs

    q_in = q_ref[0]                         # (tq, C) bf16

    # --- spatial reduction (conv-as-matmul on patches) + LayerNorm, f32 math --
    if apply_sr:
        def spatial_reduce(x):
            y = jnp.dot(x, w_sr_ref[...], preferred_element_type=jnp.float32)
            y = y + b_sr_ref[...]
            mu = jnp.mean(y, axis=-1, keepdims=True)
            var = jnp.mean(jnp.square(y - mu), axis=-1, keepdims=True)
            yn = (y - mu) * jax.lax.rsqrt(var + 1e-5)
            return (yn * g_ref[...] + beta_ref[...]).astype(jnp.bfloat16)
        k_red = spatial_reduce(k_ref[0])    # (Nk, C) bf16
        v_red = spatial_reduce(v_ref[0])    # (Nk, C) bf16
    else:
        k_red = k_ref[0]
        v_red = v_ref[0]

    # Pad the key axis up to nk_pad (multiple of 128) so scores / probs are
    # lane-dense.  Pad contents are irrelevant: padded columns are masked to
    # -inf before the softmax, so their probability is exactly 0.
    if nk_pad > nk:
        zpad = jnp.zeros((nk_pad - nk, k_red.shape[-1]), k_red.dtype)
        k_red = jnp.concatenate([k_red, zpad], axis=0)
        v_red = jnp.concatenate([v_red, zpad], axis=0)

    c = q_in.shape[-1]
    dh = c // num_heads

    # --- per-head attention; weights are head-major -> only major-dim indexing
    for h in range(num_heads):              # static Python loop
        # projections (scale pre-folded into wq / bq)
        qh = jnp.dot(q_in, wq_ref[h], preferred_element_type=jnp.float32) + bq_ref[h]
        kh = jnp.dot(k_red, wk_ref[h], preferred_element_type=jnp.float32) + bk_ref[h]
        vh = jnp.dot(v_red, wv_ref[h], preferred_element_type=jnp.float32) + bv_ref[h]

        # s = qh @ kh^T without materializing the transpose
        s = jax.lax.dot_general(qh.astype(jnp.bfloat16), kh.astype(jnp.bfloat16),
                                (((1,), (1,)), ((), ())),
                                preferred_element_type=jnp.float32)   # (tq, nk_pad)
        if nk_pad > nk:
            col = jax.lax.broadcasted_iota(jnp.int32, s.shape, 1)
            s = jnp.where(col < nk, s, jnp.float32(-1e30))

        m = jnp.max(s, axis=-1, keepdims=True)
        e = jnp.exp(s - m)                                            # f32, EUP
        p = e / jnp.sum(e, axis=-1, keepdims=True)   # exact: stored probs sum to 1
        if return_attn:
            a_ref[0, h] = p.astype(a_ref.dtype)      # lane-dense bf16 store

        # per-head context written straight into the (tq, C) scratch slab
        ctx_ref[:, h * dh:(h + 1) * dh] = jnp.dot(
            p.astype(jnp.bfloat16), vh.astype(jnp.bfloat16),
            preferred_element_type=jnp.float32)

    out = jnp.dot(ctx_ref[...].astype(jnp.bfloat16), wo_ref[...],
                  preferred_element_type=jnp.float32) + bo_ref[...]
    o_ref[0] = out.astype(o_ref.dtype)


# ----------------------------------------------------------------------------
# Patch extraction (XLA glue): [B, H*W, C] -> [B, (H/r)*(W/r), r*r*C]
# flattened in (kh, kw, Cin) order.
# ----------------------------------------------------------------------------
def _extract_patches(x, H, W, r):
    B, _, C = x.shape
    x = x.reshape(B, H // r, r, W // r, r, C)
    x = x.transpose(0, 1, 3, 2, 4, 5).reshape(B, (H // r) * (W // r), r * r * C)
    return x


# ----------------------------------------------------------------------------
# SRA forward
# ----------------------------------------------------------------------------
def sra_forward(params, q, k, v, H, W, *, num_heads, sr_ratio, mask=None,
                return_attention=True):
    """Fused SRA forward (inference mode).  Returns bf16 outputs:
    (out, attn) if return_attention else out."""
    if mask is not None:
        # TODO(synk): attention mask not supported (mirrors mask=None only).
        raise NotImplementedError("mask is not supported by the fused kernel")

    B, Nq, C = q.shape
    assert C % num_heads == 0
    dh = C // num_heads

    if sr_ratio > 1:
        assert H % sr_ratio == 0 and W % sr_ratio == 0, (
            "H/W must be multiples of sr_ratio (PyTorch strided conv would "
            "floor-divide non-divisible inputs; not supported here)")
        # k and v patch streams are passed as two separate inputs: no HBM
        # concat materialization; the SR weight is still DMA'd once.
        pk = _extract_patches(k, H, W, sr_ratio).astype(jnp.bfloat16)
        pv = _extract_patches(v, H, W, sr_ratio).astype(jnp.bfloat16)
        Nk, P = pk.shape[1], pk.shape[2]
        apply_sr = True
    else:
        pk = k.astype(jnp.bfloat16)
        pv = v.astype(jnp.bfloat16)
        Nk, P = k.shape[1], C
        apply_sr = False

    # Lane-dense attention-prob output: pad key axis to a 128 multiple inside
    # the kernel, slice it back off below.
    Nk_pad = _round_up(Nk, 128) if return_attention else Nk

    # Query tiling: second "parallel" grid axis for v7x (2 TCs) and to bound
    # the f32 score/ctx working set under its 64 MiB VMEM.  K/V + weights use
    # constant block indices so no extra DMA is issued per q-tile (the SR
    # conv + LN is recomputed per tile — cheap relative to attention).
    tq = _choose_q_tile(Nq)
    n_qt = Nq // tq

    q_b = q.astype(jnp.bfloat16)

    inputs = [q_b, pk, pv]
    in_specs = [
        pl.BlockSpec((1, tq, C), lambda b, i: (b, i, 0)),
        pl.BlockSpec((1, Nk, P), lambda b, i: (b, 0, 0)),
        pl.BlockSpec((1, Nk, P), lambda b, i: (b, 0, 0)),
    ]
    if apply_sr:
        inputs += [params["w_sr"], params["b_sr"], params["ln_g"], params["ln_b"]]
        in_specs += [
            pl.BlockSpec((P, C), lambda b, i: (0, 0)),
            pl.BlockSpec((1, C), lambda b, i: (0, 0)),
            pl.BlockSpec((1, C), lambda b, i: (0, 0)),
            pl.BlockSpec((1, C), lambda b, i: (0, 0)),
        ]
    for wn, bn in (("wq", "bq"), ("wk", "bk"), ("wv", "bv")):
        inputs += [params[wn], params[bn]]
        in_specs += [
            pl.BlockSpec((num_heads, C, dh), lambda b, i: (0, 0, 0)),
            pl.BlockSpec((num_heads, 1, dh), lambda b, i: (0, 0, 0)),
        ]
    inputs += [params["wo"], params["bo"]]
    in_specs += [
        pl.BlockSpec((C, C), lambda b, i: (0, 0)),
        pl.BlockSpec((1, C), lambda b, i: (0, 0)),
    ]
    # TODO(synk): weights could be single-buffered (pipeline_mode) to shave a
    # little more VMEM on v7x; constant index maps already avoid re-DMA.

    out_shapes = [jax.ShapeDtypeStruct((B, Nq, C), jnp.bfloat16)]
    out_specs = [pl.BlockSpec((1, tq, C), lambda b, i: (b, i, 0))]
    if return_attention:
        out_shapes.append(
            jax.ShapeDtypeStruct((B, num_heads, Nq, Nk_pad), jnp.bfloat16))
        out_specs.append(
            pl.BlockSpec((1, num_heads, tq, Nk_pad), lambda b, i: (b, 0, i, 0)))

    # Explicit scoped-VMEM budget sized to the tile-padded working set.
    blk = (2 * _padded_bytes((tq, C), 2)            # q block + out block
           + 2 * _padded_bytes((Nk, P), 2))         # k, v blocks
    if return_attention:
        blk += _padded_bytes((num_heads, tq, Nk_pad), 2)
    wts = (3 * (_padded_bytes((num_heads, C, dh), 2)
                + _padded_bytes((num_heads, 1, dh), 4))
           + _padded_bytes((C, C), 2) + _padded_bytes((1, C), 4))
    if apply_sr:
        wts += _padded_bytes((P, C), 2) + 3 * _padded_bytes((1, C), 4)
    interm = (2 * _padded_bytes((Nk_pad, C), 4)         # reduced K/V (f32 LN math)
              + 4 * _padded_bytes((tq, Nk_pad), 4)      # scores / exp / probs
              + 3 * _padded_bytes((Nk_pad, dh), 4)      # per-head projections
              + 3 * _padded_bytes((tq, C), 4))          # ctx scratch / out / slack
    est = 2 * (blk + wts) + interm                      # 2x: double-buffered blocks
    vmem_limit = int(min(max(2 * est, 32 * 2**20), 96 * 2**20))

    kernel = functools.partial(_sra_kernel, num_heads=num_heads, nk=Nk,
                               nk_pad=Nk_pad, apply_sr=apply_sr,
                               return_attn=return_attention)

    results = pl.pallas_call(
        kernel,
        out_shape=tuple(out_shapes),
        grid=(B, n_qt),
        in_specs=in_specs,
        out_specs=tuple(out_specs),
        scratch_shapes=[pltpu.VMEM((tq, C), jnp.float32)],
        compiler_params=pltpu.CompilerParams(
            dimension_semantics=("parallel", "parallel"),
            vmem_limit_bytes=vmem_limit),
    )(*inputs)

    if return_attention:
        out, attn = results
        if Nk_pad != Nk:
            attn = attn[..., :Nk]
        return out, attn
    (out,) = results
    return out


# ----------------------------------------------------------------------------
# Parameters (deterministic, synthetic — shapes from the module __init__)
# ----------------------------------------------------------------------------
def init_raw_params(key, d_model, sr_ratio):
    """Synthetic f32 params in matmul (in, out) layout.

    TODO(synk): to load real PyTorch weights, nn.Linear.weight (out, in) must
    be transposed, and the Conv2d(d_model, d_model, k=r, s=r) weight
    (Cout, Cin, kh, kw) must be permuted to (kh, kw, Cin, Cout) and reshaped
    to (r*r*Cin, Cout) to match the _extract_patches flattening order.
    """
    ks = jax.random.split(key, 6)
    s = 0.02
    p = {
        "wq": s * jax.random.normal(ks[1], (d_model, d_model), jnp.float32),
        "bq": jnp.zeros((d_model,), jnp.float32),
        "wk": s * jax.random.normal(ks[2], (d_model, d_model), jnp.float32),
        "bk": jnp.zeros((d_model,), jnp.float32),
        "wv": s * jax.random.normal(ks[3], (d_model, d_model), jnp.float32),
        "bv": jnp.zeros((d_model,), jnp.float32),
        "wo": s * jax.random.normal(ks[4], (d_model, d_model), jnp.float32),
        "bo": jnp.zeros((d_model,), jnp.float32),
    }
    if sr_ratio > 1:
        P = sr_ratio * sr_ratio * d_model
        p["w_sr"] = s * jax.random.normal(ks[0], (P, d_model), jnp.float32)
        p["b_sr"] = jnp.zeros((d_model,), jnp.float32)
        p["ln_g"] = jnp.ones((d_model,), jnp.float32)
        p["ln_b"] = jnp.zeros((d_model,), jnp.float32)
    return p


def prepare_params(raw, num_heads):
    """One-time parameter prep for the kernel:
      * head-major Q/K/V projection weights (heads, C, dh) so the kernel never
        slices at lane offsets,
      * 1/sqrt(dh) softmax scale folded into wq / bq,
      * matmul weights pre-cast to bf16 (biases / LN params stay f32).
    """
    C = raw["wq"].shape[0]
    dh = C // num_heads
    scale = dh ** -0.5

    def head_major(w):            # (C, C) -> (heads, C, dh)
        return jnp.transpose(w.reshape(C, num_heads, dh), (1, 0, 2))

    def head_bias(b):             # (C,) -> (heads, 1, dh)
        return b.reshape(num_heads, 1, dh)

    p = {
        "wq": head_major(raw["wq"] * scale).astype(jnp.bfloat16),
        "bq": head_bias(raw["bq"] * scale).astype(jnp.float32),
        "wk": head_major(raw["wk"]).astype(jnp.bfloat16),
        "bk": head_bias(raw["bk"]).astype(jnp.float32),
        "wv": head_major(raw["wv"]).astype(jnp.bfloat16),
        "bv": head_bias(raw["bv"]).astype(jnp.float32),
        "wo": raw["wo"].astype(jnp.bfloat16),
        "bo": raw["bo"].reshape(1, C).astype(jnp.float32),
    }
    if "w_sr" in raw:
        p["w_sr"] = raw["w_sr"].astype(jnp.bfloat16)
        p["b_sr"] = raw["b_sr"].reshape(1, C).astype(jnp.float32)
        p["ln_g"] = raw["ln_g"].reshape(1, C).astype(jnp.float32)
        p["ln_b"] = raw["ln_b"].reshape(1, C).astype(jnp.float32)
    return p


if __name__ == "__main__":
    B, d_model, num_heads, sr_ratio = 2, 32, 4, 2
    H = W = 8
    q_n, kv_n = 8, H * W

    key = jax.random.PRNGKey(0)
    kp, kq, kk, kv_ = jax.random.split(key, 4)
    params = prepare_params(init_raw_params(kp, d_model, sr_ratio), num_heads)

    q = jax.random.normal(kq, (B, q_n, d_model), jnp.float32)
    k = jax.random.normal(kk, (B, kv_n, d_model), jnp.float32)
    v = jax.random.normal(kv_, (B, kv_n, d_model), jnp.float32)

    # sr_ratio > 1 path, attention probs returned
    out, attn = sra_forward(params, q, k, v, H, W,
                            num_heads=num_heads, sr_ratio=sr_ratio)
    jax.block_until_ready((out, attn))

    kv_red = (H // sr_ratio) * (W // sr_ratio)
    assert out.shape == (B, q_n, d_model)
    assert attn.shape == (B, num_heads, q_n, kv_red)
    assert out.dtype == jnp.bfloat16 and attn.dtype == jnp.bfloat16
    of = out.astype(jnp.float32)
    af = attn.astype(jnp.float32)
    assert bool(jnp.all(jnp.isfinite(of))) and bool(jnp.all(jnp.isfinite(af)))
    row_sums = jnp.sum(af, axis=-1)    # exact softmax, bf16 storage => tight-ish
    assert bool(jnp.all(jnp.abs(row_sums - 1.0) < 5e-2))

    # sr_ratio == 1 path, attention probs skipped (fast path)
    params1 = prepare_params(init_raw_params(jax.random.PRNGKey(1), d_model, 1),
                             num_heads)
    out1 = sra_forward(params1, q, k, v, H, W, num_heads=num_heads, sr_ratio=1,
                       return_attention=False)
    jax.block_until_ready(out1)
    assert out1.shape == (B, q_n, d_model)
    assert bool(jnp.all(jnp.isfinite(out1.astype(jnp.float32))))

    print("KERNEL_OK")
</pallas_src>

<mosaic_0001>
module attributes {stable_mosaic.version = 11 : i64} {
  func.func @_sra_kernel(%arg0: i32, %arg1: i32, %arg2: memref<1x8x32xbf16, #tpu.memory_space<vmem>>, %arg3: memref<1x16x128xbf16, #tpu.memory_space<vmem>>, %arg4: memref<1x16x128xbf16, #tpu.memory_space<vmem>>, %arg5: memref<128x32xbf16, #tpu.memory_space<vmem>>, %arg6: memref<1x32xf32, #tpu.memory_space<vmem>>, %arg7: memref<1x32xf32, #tpu.memory_space<vmem>>, %arg8: memref<1x32xf32, #tpu.memory_space<vmem>>, %arg9: memref<4x32x8xbf16, #tpu.memory_space<vmem>>, %arg10: memref<4x1x8xf32, #tpu.memory_space<vmem>>, %arg11: memref<4x32x8xbf16, #tpu.memory_space<vmem>>, %arg12: memref<4x1x8xf32, #tpu.memory_space<vmem>>, %arg13: memref<4x32x8xbf16, #tpu.memory_space<vmem>>, %arg14: memref<4x1x8xf32, #tpu.memory_space<vmem>>, %arg15: memref<32x32xbf16, #tpu.memory_space<vmem>>, %arg16: memref<1x32xf32, #tpu.memory_space<vmem>>, %arg17: memref<1x8x32xbf16, #tpu.memory_space<vmem>>, %arg18: memref<1x4x8x128xbf16, #tpu.memory_space<vmem>>, %arg19: memref<8x32xf32, #tpu.memory_space<vmem>>) attributes {dimension_semantics = [#tpu.dimension_semantics<parallel>, #tpu.dimension_semantics<parallel>], iteration_bounds = array<i64: 2, 1>, scalar_prefetch = 0 : i64, scratch_operands = 1 : i64, tpu.core_type = #tpu.core_type<tc>, window_params = [{transform_indices = @transform_0, window_bounds = array<i64: 1, 8, 32>}, {transform_indices = @transform_1, window_bounds = array<i64: 1, 16, 128>}, {transform_indices = @transform_2, window_bounds = array<i64: 1, 16, 128>}, {pipeline_mode = #tpu.pipeline_mode<synchronous>, transform_indices = @transform_3, window_bounds = array<i64: 128, 32>}, {pipeline_mode = #tpu.pipeline_mode<synchronous>, transform_indices = @transform_4, window_bounds = array<i64: 1, 32>}, {pipeline_mode = #tpu.pipeline_mode<synchronous>, transform_indices = @transform_5, window_bounds = array<i64: 1, 32>}, {pipeline_mode = #tpu.pipeline_mode<synchronous>, transform_indices = @transform_6, window_bounds = array<i64: 1, 32>}, {pipeline_mode = #tpu.pipeline_mode<synchronous>, transform_indices = @transform_7, window_bounds = array<i64: 4, 32, 8>}, {pipeline_mode = #tpu.pipeline_mode<synchronous>, transform_indices = @transform_8, window_bounds = array<i64: 4, 1, 8>}, {pipeline_mode = #tpu.pipeline_mode<synchronous>, transform_indices = @transform_9, window_bounds = array<i64: 4, 32, 8>}, {pipeline_mode = #tpu.pipeline_mode<synchronous>, transform_indices = @transform_10, window_bounds = array<i64: 4, 1, 8>}, {pipeline_mode = #tpu.pipeline_mode<synchronous>, transform_indices = @transform_11, window_bounds = array<i64: 4, 32, 8>}, {pipeline_mode = #tpu.pipeline_mode<synchronous>, transform_indices = @transform_12, window_bounds = array<i64: 4, 1, 8>}, {pipeline_mode = #tpu.pipeline_mode<synchronous>, transform_indices = @transform_13, window_bounds = array<i64: 32, 32>}, {pipeline_mode = #tpu.pipeline_mode<synchronous>, transform_indices = @transform_14, window_bounds = array<i64: 1, 32>}, {transform_indices = @transform_15, window_bounds = array<i64: 1, 8, 32>}, {transform_indices = @transform_16, window_bounds = array<i64: 1, 4, 8, 128>}]} {
    %c0 = arith.constant 0 : index
    %c0_0 = arith.constant 0 : index
    %c0_1 = arith.constant 0 : index
    %0 = vector.load %arg2[%c0, %c0_0, %c0_1] : memref<1x8x32xbf16, #tpu.memory_space<vmem>>, vector<1x8x32xbf16>
    %1 = vector.shape_cast %0 : vector<1x8x32xbf16> to vector<8x32xbf16>
    %c0_2 = arith.constant 0 : index
    %c0_3 = arith.constant 0 : index
    %c0_4 = arith.constant 0 : index
    %2 = vector.load %arg3[%c0_2, %c0_3, %c0_4] : memref<1x16x128xbf16, #tpu.memory_space<vmem>>, vector<1x16x128xbf16>
    %3 = vector.shape_cast %2 : vector<1x16x128xbf16> to vector<16x128xbf16>
    %c0_5 = arith.constant 0 : index
    %c0_6 = arith.constant 0 : index
    %4 = vector.load %arg5[%c0_5, %c0_6] : memref<128x32xbf16, #tpu.memory_space<vmem>>, vector<128x32xbf16>
    %cst = arith.constant dense<0.000000e+00> : vector<16x32xf32>
    %5 = tpu.matmul %3, %4, %cst {dimension_numbers = #tpu.dot_dimension_numbers<[1], [0], [0], [1], [0, 0, 1, 1], [], []>} : vector<16x128xbf16>, vector<128x32xbf16>, vector<16x32xf32> -> vector<16x32xf32>
    %c0_7 = arith.constant 0 : index
    %c0_8 = arith.constant 0 : index
    %6 = vector.load %arg6[%c0_7, %c0_8] : memref<1x32xf32, #tpu.memory_space<vmem>>, vector<1x32xf32>
    %7 = vector.broadcast %6 : vector<1x32xf32> to vector<16x32xf32>
    %8 = arith.addf %5, %7 : vector<16x32xf32>
    %cst_9 = arith.constant dense<0.000000e+00> : vector<16xf32>
    %9 = vector.multi_reduction <add>, %8, %cst_9 [1] : vector<16x32xf32> to vector<16xf32>
    %10 = vector.shape_cast %9 : vector<16xf32> to vector<16x1xf32>
    %cst_10 = arith.constant 3.200000e+01 : f32
    %11 = vector.broadcast %cst_10 : f32 to vector<16x1xf32>
    %12 = arith.divf %10, %11 : vector<16x1xf32>
    %13 = vector.broadcast %12 : vector<16x1xf32> to vector<16x32xf32>
    %14 = arith.subf %8, %13 : vector<16x32xf32>
    %15 = arith.mulf %14, %14 : vector<16x32xf32>
    %cst_11 = arith.constant dense<0.000000e+00> : vector<16xf32>
    %16 = vector.multi_reduction <add>, %15, %cst_11 [1] : vector<16x32xf32> to vector<16xf32>
    %17 = vector.shape_cast %16 : vector<16xf32> to vector<16x1xf32>
    %cst_12 = arith.constant 3.200000e+01 : f32
    %18 = vector.broadcast %cst_12 : f32 to vector<16x1xf32>
    %19 = arith.divf %17, %18 : vector<16x1xf32>
    %20 = vector.broadcast %12 : vector<16x1xf32> to vector<16x32xf32>
    %21 = arith.subf %8, %20 : vector<16x32xf32>
    %cst_13 = arith.constant 9.99999974E-6 : f32
    %22 = vector.broadcast %cst_13 : f32 to vector<16x1xf32>
    %23 = arith.addf %19, %22 : vector<16x1xf32>
    %24 = math.rsqrt %23 : vector<16x1xf32>
    %25 = vector.broadcast %24 : vector<16x1xf32> to vector<16x32xf32>
    %26 = arith.mulf %21, %25 : vector<16x32xf32>
    %c0_14 = arith.constant 0 : index
    %c0_15 = arith.constant 0 : index
    %27 = vector.load %arg7[%c0_14, %c0_15] : memref<1x32xf32, #tpu.memory_space<vmem>>, vector<1x32xf32>
    %28 = vector.broadcast %27 : vector<1x32xf32> to vector<16x32xf32>
    %29 = arith.mulf %26, %28 : vector<16x32xf32>
    %c0_16 = arith.constant 0 : index
    %c0_17 = arith.constant 0 : index
    %30 = vector.load %arg8[%c0_16, %c0_17] : memref<1x32xf32, #tpu.memory_space<vmem>>, vector<1x32xf32>
    %31 = vector.broadcast %30 : vector<1x32xf32> to vector<16x32xf32>
    %32 = arith.addf %29, %31 : vector<16x32xf32>
    %33 = arith.truncf %32 : vector<16x32xf32> to vector<16x32xbf16>
    %c0_18 = arith.constant 0 : index
    %c0_19 = arith.constant 0 : index
    %c0_20 = arith.constant 0 : index
    %34 = vector.load %arg4[%c0_18, %c0_19, %c0_20] : memref<1x16x128xbf16, #tpu.memory_space<vmem>>, vector<1x16x128xbf16>
    %35 = vector.shape_cast %34 : vector<1x16x128xbf16> to vector<16x128xbf16>
    %c0_21 = arith.constant 0 : index
    %c0_22 = arith.constant 0 : index
    %36 = vector.load %arg5[%c0_21, %c0_22] : memref<128x32xbf16, #tpu.memory_space<vmem>>, vector<128x32xbf16>
    %cst_23 = arith.constant dense<0.000000e+00> : vector<16x32xf32>
    %37 = tpu.matmul %35, %36, %cst_23 {dimension_numbers = #tpu.dot_dimension_numbers<[1], [0], [0], [1], [0, 0, 1, 1], [], []>} : vector<16x128xbf16>, vector<128x32xbf16>, vector<16x32xf32> -> vector<16x32xf32>
    %c0_24 = arith.constant 0 : index
    %c0_25 = arith.constant 0 : index
    %38 = vector.load %arg6[%c0_24, %c0_25] : memref<1x32xf32, #tpu.memory_space<vmem>>, vector<1x32xf32>
    %39 = vector.broadcast %38 : vector<1x32xf32> to vector<16x32xf32>
    %40 = arith.addf %37, %39 : vector<16x32xf32>
    %cst_26 = arith.constant dense<0.000000e+00> : vector<16xf32>
    %41 = vector.multi_reduction <add>, %40, %cst_26 [1] : vector<16x32xf32> to vector<16xf32>
    %42 = vector.shape_cast %41 : vector<16xf32> to vector<16x1xf32>
    %cst_27 = arith.constant 3.200000e+01 : f32
    %43 = vector.broadcast %cst_27 : f32 to vector<16x1xf32>
    %44 = arith.divf %42, %43 : vector<16x1xf32>
    %45 = vector.broadcast %44 : vector<16x1xf32> to vector<16x32xf32>
    %46 = arith.subf %40, %45 : vector<16x32xf32>
    %47 = arith.mulf %46, %46 : vector<16x32xf32>
    %cst_28 = arith.constant dense<0.000000e+00> : vector<16xf32>
    %48 = vector.multi_reduction <add>, %47, %cst_28 [1] : vector<16x32xf32> to vector<16xf32>
    %49 = vector.shape_cast %48 : vector<16xf32> to vector<16x1xf32>
    %cst_29 = arith.constant 3.200000e+01 : f32
    %50 = vector.broadcast %cst_29 : f32 to vector<16x1xf32>
    %51 = arith.divf %49, %50 : vector<16x1xf32>
    %52 = vector.broadcast %44 : vector<16x1xf32> to vector<16x32xf32>
    %53 = arith.subf %40, %52 : vector<16x32xf32>
    %cst_30 = arith.constant 9.99999974E-6 : f32
    %54 = vector.broadcast %cst_30 : f32 to vector<16x1xf32>
    %55 = arith.addf %51, %54 : vector<16x1xf32>
    %56 = math.rsqrt %55 : vector<16x1xf32>
    %57 = vector.broadcast %56 : vector<16x1xf32> to vector<16x32xf32>
    %58 = arith.mulf %53, %57 : vector<16x32xf32>
    %c0_31 = arith.constant 0 : index
    %c0_32 = arith.constant 0 : index
    %59 = vector.load %arg7[%c0_31, %c0_32] : memref<1x32xf32, #tpu.memory_space<vmem>>, vector<1x32xf32>
    %60 = vector.broadcast %59 : vector<1x32xf32> to vector<16x32xf32>
    %61 = arith.mulf %58, %60 : vector<16x32xf32>
    %c0_33 = arith.constant 0 : index
    %c0_34 = arith.constant 0 : index
    %62 = vector.load %arg8[%c0_33, %c0_34] : memref<1x32xf32, #tpu.memory_space<vmem>>, vector<1x32xf32>
    %63 = vector.broadcast %62 : vector<1x32xf32> to vector<16x32xf32>
    %64 = arith.addf %61, %63 : vector<16x32xf32>
    %65 = arith.truncf %64 : vector<16x32xf32> to vector<16x32xbf16>
    %cst_35 = arith.constant 0.000000e+00 : bf16
    %66 = vector.broadcast %cst_35 : bf16 to vector<112x32xbf16>
    %67 = tpu.concatenate %33, %66 in 0 : vector<16x32xbf16>, vector<112x32xbf16> -> vector<128x32xbf16>
    %68 = tpu.concatenate %65, %66 in 0 : vector<16x32xbf16>, vector<112x32xbf16> -> vector<128x32xbf16>
    %c0_36 = arith.constant 0 : index
    %c0_37 = arith.constant 0 : index
    %c0_38 = arith.constant 0 : index
    %69 = vector.load %arg9[%c0_36, %c0_37, %c0_38] : memref<4x32x8xbf16, #tpu.memory_space<vmem>>, vector<1x32x8xbf16>
    %70 = vector.shape_cast %69 : vector<1x32x8xbf16> to vector<32x8xbf16>
    %cst_39 = arith.constant dense<0.000000e+00> : vector<8x8xf32>
    %71 = tpu.matmul %1, %70, %cst_39 {dimension_numbers = #tpu.dot_dimension_numbers<[1], [0], [0], [1], [0, 0, 1, 1], [], []>} : vector<8x32xbf16>, vector<32x8xbf16>, vector<8x8xf32> -> vector<8x8xf32>
    %c0_40 = arith.constant 0 : index
    %c0_41 = arith.constant 0 : index
    %c0_42 = arith.constant 0 : index
    %72 = vector.load %arg10[%c0_40, %c0_41, %c0_42] : memref<4x1x8xf32, #tpu.memory_space<vmem>>, vector<1x1x8xf32>
    %73 = vector.shape_cast %72 : vector<1x1x8xf32> to vector<1x8xf32>
    %74 = vector.broadcast %73 : vector<1x8xf32> to vector<8x8xf32>
    %75 = arith.addf %71, %74 : vector<8x8xf32>
    %c0_43 = arith.constant 0 : index
    %c0_44 = arith.constant 0 : index
    %c0_45 = arith.constant 0 : index
    %76 = vector.load %arg11[%c0_43, %c0_44, %c0_45] : memref<4x32x8xbf16, #tpu.memory_space<vmem>>, vector<1x32x8xbf16>
    %77 = vector.shape_cast %76 : vector<1x32x8xbf16> to vector<32x8xbf16>
    %cst_46 = arith.constant dense<0.000000e+00> : vector<128x8xf32>
    %78 = tpu.matmul %67, %77, %cst_46 {dimension_numbers = #tpu.dot_dimension_numbers<[1], [0], [0], [1], [0, 0, 1, 1], [], []>} : vector<128x32xbf16>, vector<32x8xbf16>, vector<128x8xf32> -> vector<128x8xf32>
    %c0_47 = arith.constant 0 : index
    %c0_48 = arith.constant 0 : index
    %c0_49 = arith.constant 0 : index
    %79 = vector.load %arg12[%c0_47, %c0_48, %c0_49] : memref<4x1x8xf32, #tpu.memory_space<vmem>>, vector<1x1x8xf32>
    %80 = vector.shape_cast %79 : vector<1x1x8xf32> to vector<1x8xf32>
    %81 = vector.broadcast %80 : vector<1x8xf32> to vector<128x8xf32>
    %82 = arith.addf %78, %81 : vector<128x8xf32>
    %c0_50 = arith.constant 0 : index
    %c0_51 = arith.constant 0 : index
    %c0_52 = arith.constant 0 : index
    %83 = vector.load %arg13[%c0_50, %c0_51, %c0_52] : memref<4x32x8xbf16, #tpu.memory_space<vmem>>, vector<1x32x8xbf16>
    %84 = vector.shape_cast %83 : vector<1x32x8xbf16> to vector<32x8xbf16>
    %cst_53 = arith.constant dense<0.000000e+00> : vector<128x8xf32>
    %85 = tpu.matmul %68, %84, %cst_53 {dimension_numbers = #tpu.dot_dimension_numbers<[1], [0], [0], [1], [0, 0, 1, 1], [], []>} : vector<128x32xbf16>, vector<32x8xbf16>, vector<128x8xf32> -> vector<128x8xf32>
    %c0_54 = arith.constant 0 : index
    %c0_55 = arith.constant 0 : index
    %c0_56 = arith.constant 0 : index
    %86 = vector.load %arg14[%c0_54, %c0_55, %c0_56] : memref<4x1x8xf32, #tpu.memory_space<vmem>>, vector<1x1x8xf32>
    %87 = vector.shape_cast %86 : vector<1x1x8xf32> to vector<1x8xf32>
    %88 = vector.broadcast %87 : vector<1x8xf32> to vector<128x8xf32>
    %89 = arith.addf %85, %88 : vector<128x8xf32>
    %90 = arith.truncf %75 : vector<8x8xf32> to vector<8x8xbf16>
    %91 = arith.truncf %82 : vector<128x8xf32> to vector<128x8xbf16>
    %cst_57 = arith.constant dense<0.000000e+00> : vector<8x128xf32>
    %92 = tpu.matmul %90, %91, %cst_57 {dimension_numbers = #tpu.dot_dimension_numbers<[1], [1], [0], [0], [0, 0, 1, 0], [], []>} : vector<8x8xbf16>, vector<128x8xbf16>, vector<8x128xf32> -> vector<8x128xf32>
    %93 = tpu.iota {dimensions = array<i32: 1>} : vector<8x128xi32>
    %c16_i32 = arith.constant 16 : i32
    %94 = vector.broadcast %c16_i32 : i32 to vector<8x128xi32>
    %95 = arith.cmpi slt, %93, %94 : vector<8x128xi32>
    %cst_58 = arith.constant -1.000000e+30 : f32
    %96 = vector.broadcast %cst_58 : f32 to vector<8x128xf32>
    %97 = arith.select %95, %92, %96 : vector<8x128xi1>, vector<8x128xf32>
    %cst_59 = arith.constant dense<0xFF800000> : vector<8xf32>
    %98 = vector.multi_reduction <maximumf>, %97, %cst_59 [1] : vector<8x128xf32> to vector<8xf32>
    %99 = vector.shape_cast %98 : vector<8xf32> to vector<8x1xf32>
    %100 = vector.broadcast %99 : vector<8x1xf32> to vector<8x128xf32>
    %101 = arith.subf %97, %100 : vector<8x128xf32>
    %102 = math.exp %101 : vector<8x128xf32>
    %cst_60 = arith.constant dense<0.000000e+00> : vector<8xf32>
    %103 = vector.multi_reduction <add>, %102, %cst_60 [1] : vector<8x128xf32> to vector<8xf32>
    %104 = vector.shape_cast %103 : vector<8xf32> to vector<8x1xf32>
    %105 = vector.broadcast %104 : vector<8x1xf32> to vector<8x128xf32>
    %106 = arith.divf %102, %105 : vector<8x128xf32>
    %107 = arith.truncf %106 : vector<8x128xf32> to vector<8x128xbf16>
    %c0_61 = arith.constant 0 : index
    %c0_62 = arith.constant 0 : index
    %c0_63 = arith.constant 0 : index
    %c0_64 = arith.constant 0 : index
    %108 = vector.load %arg18[%c0_61, %c0_62, %c0_63, %c0_64] : memref<1x4x8x128xbf16, #tpu.memory_space<vmem>>, vector<1x1x8x128xbf16>
    %109 = vector.shape_cast %108 : vector<1x1x8x128xbf16> to vector<8x128xbf16>
    %110 = vector.shape_cast %107 : vector<8x128xbf16> to vector<1x1x8x128xbf16>
    tpu.vector_store %arg18[%c0_61, %c0_62, %c0_63, %c0_64], %110 {strides = array<i32>} : memref<1x4x8x128xbf16, #tpu.memory_space<vmem>>, vector<1x1x8x128xbf16>,
    %111 = arith.truncf %106 : vector<8x128xf32> to vector<8x128xbf16>
    %112 = arith.truncf %89 : vector<128x8xf32> to vector<128x8xbf16>
    %cst_65 = arith.constant dense<0.000000e+00> : vector<8x8xf32>
    %113 = tpu.matmul %111, %112, %cst_65 {dimension_numbers = #tpu.dot_dimension_numbers<[1], [0], [0], [1], [0, 0, 1, 1], [], []>} : vector<8x128xbf16>, vector<128x8xbf16>, vector<8x8xf32> -> vector<8x8xf32>
    %c0_66 = arith.constant 0 : index
    %c0_67 = arith.constant 0 : index
    %114 = vector.load %arg19[%c0_66, %c0_67] : memref<8x32xf32, #tpu.memory_space<vmem>>, vector<8x8xf32>
    tpu.vector_store %arg19[%c0_66, %c0_67], %113 {strides = array<i32>} : memref<8x32xf32, #tpu.memory_space<vmem>>, vector<8x8xf32>,
    %c1 = arith.constant 1 : index
    %c0_68 = arith.constant 0 : index
    %c0_69 = arith.constant 0 : index
    %115 = vector.load %arg9[%c1, %c0_68, %c0_69] : memref<4x32x8xbf16, #tpu.memory_space<vmem>>, vector<1x32x8xbf16>
    %116 = vector.shape_cast %115 : vector<1x32x8xbf16> to vector<32x8xbf16>
    %cst_70 = arith.constant dense<0.000000e+00> : vector<8x8xf32>
    %117 = tpu.matmul %1, %116, %cst_70 {dimension_numbers = #tpu.dot_dimension_numbers<[1], [0], [0], [1], [0, 0, 1, 1], [], []>} : vector<8x32xbf16>, vector<32x8xbf16>, vector<8x8xf32> -> vector<8x8xf32>
    %c1_71 = arith.constant 1 : index
    %c0_72 = arith.constant 0 : index
    %c0_73 = arith.constant 0 : index
    %118 = vector.load %arg10[%c1_71, %c0_72, %c0_73] : memref<4x1x8xf32, #tpu.memory_space<vmem>>, vector<1x1x8xf32>
    %119 = vector.shape_cast %118 : vector<1x1x8xf32> to vector<1x8xf32>
    %120 = vector.broadcast %119 : vector<1x8xf32> to vector<8x8xf32>
    %121 = arith.addf %117, %120 : vector<8x8xf32>
    %c1_74 = arith.constant 1 : index
    %c0_75 = arith.constant 0 : index
    %c0_76 = arith.constant 0 : index
    %122 = vector.load %arg11[%c1_74, %c0_75, %c0_76] : memref<4x32x8xbf16, #tpu.memory_space<vmem>>, vector<1x32x8xbf16>
    %123 = vector.shape_cast %122 : vector<1x32x8xbf16> to vector<32x8xbf16>
    %cst_77 = arith.constant dense<0.000000e+00> : vector<128x8xf32>
    %124 = tpu.matmul %67, %123, %cst_77 {dimension_numbers = #tpu.dot_dimension_numbers<[1], [0], [0], [1], [0, 0, 1, 1], [], []>} : vector<128x32xbf16>, vector<32x8xbf16>, vector<128x8xf32> -> vector<128x8xf32>
    %c1_78 = arith.constant 1 : index
    %c0_79 = arith.constant 0 : index
    %c0_80 = arith.constant 0 : index
    %125 = vector.load %arg12[%c1_78, %c0_79, %c0_80] : memref<4x1x8xf32, #tpu.memory_space<vmem>>, vector<1x1x8xf32>
    %126 = vector.shape_cast %125 : vector<1x1x8xf32> to vector<1x8xf32>
    %127 = vector.broadcast %126 : vector<1x8xf32> to vector<128x8xf32>
    %128 = arith.addf %124, %127 : vector<128x8xf32>
    %c1_81 = arith.constant 1 : index
    %c0_82 = arith.constant 0 : index
    %c0_83 = arith.constant 0 : index
    %129 = vector.load %arg13[%c1_81, %c0_82, %c0_83] : memref<4x32x8xbf16, #tpu.memory_space<vmem>>, vector<1x32x8xbf16>
    %130 = vector.shape_cast %129 : vector<1x32x8xbf16> to vector<32x8xbf16>
    %cst_84 = arith.constant dense<0.000000e+00> : vector<128x8xf32>
    %131 = tpu.matmul %68, %130, %cst_84 {dimension_numbers = #tpu.dot_dimension_numbers<[1], [0], [0], [1], [0, 0, 1, 1], [], []>} : vector<128x32xbf16>, vector<32x8xbf16>, vector<128x8xf32> -> vector<128x8xf32>
    %c1_85 = arith.constant 1 : index
    %c0_86 = arith.constant 0 : index
    %c0_87 = arith.constant 0 : index
    %132 = vector.load %arg14[%c1_85, %c0_86, %c0_87] : memref<4x1x8xf32, #tpu.memory_space<vmem>>, vector<1x1x8xf32>
    %133 = vector.shape_cast %132 : vector<1x1x8xf32> to vector<1x8xf32>
    %134 = vector.broadcast %133 : vector<1x8xf32> to vector<128x8xf32>
    %135 = arith.addf %131, %134 : vector<128x8xf32>
    %136 = arith.truncf %121 : vector<8x8xf32> to vector<8x8xbf16>
    %137 = arith.truncf %128 : vector<128x8xf32> to vector<128x8xbf16>
    %cst_88 = arith.constant dense<0.000000e+00> : vector<8x128xf32>
    %138 = tpu.matmul %136, %137, %cst_88 {dimension_numbers = #tpu.dot_dimension_numbers<[1], [1], [0], [0], [0, 0, 1, 0], [], []>} : vector<8x8xbf16>, vector<128x8xbf16>, vector<8x128xf32> -> vector<8x128xf32>
    %139 = tpu.iota {dimensions = array<i32: 1>} : vector<8x128xi32>
    %c16_i32_89 = arith.constant 16 : i32
    %140 = vector.broadcast %c16_i32_89 : i32 to vector<8x128xi32>
    %141 = arith.cmpi slt, %139, %140 : vector<8x128xi32>
    %cst_90 = arith.constant -1.000000e+30 : f32
    %142 = vector.broadcast %cst_90 : f32 to vector<8x128xf32>
    %143 = arith.select %141, %138, %142 : vector<8x128xi1>, vector<8x128xf32>
    %cst_91 = arith.constant dense<0xFF800000> : vector<8xf32>
    %144 = vector.multi_reduction <maximumf>, %143, %cst_91 [1] : vector<8x128xf32> to vector<8xf32>
    %145 = vector.shape_cast %144 : vector<8xf32> to vector<8x1xf32>
    %146 = vector.broadcast %145 : vector<8x1xf32> to vector<8x128xf32>
    %147 = arith.subf %143, %146 : vector<8x128xf32>
    %148 = math.exp %147 : vector<8x128xf32>
    %cst_92 = arith.constant dense<0.000000e+00> : vector<8xf32>
    %149 = vector.multi_reduction <add>, %148, %cst_92 [1] : vector<8x128xf32> to vector<8xf32>
    %150 = vector.shape_cast %149 : vector<8xf32> to vector<8x1xf32>
    %151 = vector.broadcast %150 : vector<8x1xf32> to vector<8x128xf32>
    %152 = arith.divf %148, %151 : vector<8x128xf32>
    %153 = arith.truncf %152 : vector<8x128xf32> to vector<8x128xbf16>
    %c0_93 = arith.constant 0 : index
    %c1_94 = arith.constant 1 : index
    %c0_95 = arith.constant 0 : index
    %c0_96 = arith.constant 0 : index
    %154 = vector.load %arg18[%c0_93, %c1_94, %c0_95, %c0_96] : memref<1x4x8x128xbf16, #tpu.memory_space<vmem>>, vector<1x1x8x128xbf16>
    %155 = vector.shape_cast %154 : vector<1x1x8x128xbf16> to vector<8x128xbf16>
    %156 = vector.shape_cast %153 : vector<8x128xbf16> to vector<1x1x8x128xbf16>
    tpu.vector_store %arg18[%c0_93, %c1_94, %c0_95, %c0_96], %156 {strides = array<i32>} : memref<1x4x8x128xbf16, #tpu.memory_space<vmem>>, vector<1x1x8x128xbf16>,
    %157 = arith.truncf %152 : vector<8x128xf32> to vector<8x128xbf16>
    %158 = arith.truncf %135 : vector<128x8xf32> to vector<128x8xbf16>
    %cst_97 = arith.constant dense<0.000000e+00> : vector<8x8xf32>
    %159 = tpu.matmul %157, %158, %cst_97 {dimension_numbers = #tpu.dot_dimension_numbers<[1], [0], [0], [1], [0, 0, 1, 1], [], []>} : vector<8x128xbf16>, vector<128x8xbf16>, vector<8x8xf32> -> vector<8x8xf32>
    %c0_98 = arith.constant 0 : index
    %c8 = arith.constant 8 : index
    %160 = vector.load %arg19[%c0_98, %c8] : memref<8x32xf32, #tpu.memory_space<vmem>>, vector<8x8xf32>
    tpu.vector_store %arg19[%c0_98, %c8], %159 {strides = array<i32>} : memref<8x32xf32, #tpu.memory_space<vmem>>, vector<8x8xf32>,
    %c2 = arith.constant 2 : index
    %c0_99 = arith.constant 0 : index
    %c0_100 = arith.constant 0 : index
    %161 = vector.load %arg9[%c2, %c0_99, %c0_100] : memref<4x32x8xbf16, #tpu.memory_space<vmem>>, vector<1x32x8xbf16>
    %162 = vector.shape_cast %161 : vector<1x32x8xbf16> to vector<32x8xbf16>
    %cst_101 = arith.constant dense<0.000000e+00> : vector<8x8xf32>
    %163 = tpu.matmul %1, %162, %cst_101 {dimension_numbers = #tpu.dot_dimension_numbers<[1], [0], [0], [1], [0, 0, 1, 1], [], []>} : vector<8x32xbf16>, vector<32x8xbf16>, vector<8x8xf32> -> vector<8x8xf32>
    %c2_102 = arith.constant 2 : index
    %c0_103 = arith.constant 0 : index
    %c0_104 = arith.constant 0 : index
    %164 = vector.load %arg10[%c2_102, %c0_103, %c0_104] : memref<4x1x8xf32, #tpu.memory_space<vmem>>, vector<1x1x8xf32>
    %165 = vector.shape_cast %164 : vector<1x1x8xf32> to vector<1x8xf32>
    %166 = vector.broadcast %165 : vector<1x8xf32> to vector<8x8xf32>
    %167 = arith.addf %163, %166 : vector<8x8xf32>
    %c2_105 = arith.constant 2 : index
    %c0_106 = arith.constant 0 : index
    %c0_107 = arith.constant 0 : index
    %168 = vector.load %arg11[%c2_105, %c0_106, %c0_107] : memref<4x32x8xbf16, #tpu.memory_space<vmem>>, vector<1x32x8xbf16>
    %169 = vector.shape_cast %168 : vector<1x32x8xbf16> to vector<32x8xbf16>
    %cst_108 = arith.constant dense<0.000000e+00> : vector<128x8xf32>
    %170 = tpu.matmul %67, %169, %cst_108 {dimension_numbers = #tpu.dot_dimension_numbers<[1], [0], [0], [1], [0, 0, 1, 1], [], []>} : vector<128x32xbf16>, vector<32x8xbf16>, vector<128x8xf32> -> vector<128x8xf32>
    %c2_109 = arith.constant 2 : index
    %c0_110 = arith.constant 0 : index
    %c0_111 = arith.constant 0 : index
    %171 = vector.load %arg12[%c2_109, %c0_110, %c0_111] : memref<4x1x8xf32, #tpu.memory_space<vmem>>, vector<1x1x8xf32>
    %172 = vector.shape_cast %171 : vector<1x1x8xf32> to vector<1x8xf32>
    %173 = vector.broadcast %172 : vector<1x8xf32> to vector<128x8xf32>
    %174 = arith.addf %170, %173 : vector<128x8xf32>
    %c2_112 = arith.constant 2 : index
    %c0_113 = arith.constant 0 : index
    %c0_114 = arith.constant 0 : index
    %175 = vector.load %arg13[%c2_112, %c0_113, %c0_114] : memref<4x32x8xbf16, #tpu.memory_space<vmem>>, vector<1x32x8xbf16>
    %176 = vector.shape_cast %175 : vector<1x32x8xbf16> to vector<32x8xbf16>
    %cst_115 = arith.constant dense<0.000000e+00> : vector<128x8xf32>
    %177 = tpu.matmul %68, %176, %cst_115 {dimension_numbers = #tpu.dot_dimension_numbers<[1], [0], [0], [1], [0, 0, 1, 1], [], []>} : vector<128x32xbf16>, vector<32x8xbf16>, vector<128x8xf32> -> vector<128x8xf32>
    %c2_116 = arith.constant 2 : index
    %c0_117 = arith.constant 0 : index
    %c0_118 = arith.constant 0 : index
    %178 = vector.load %arg14[%c2_116, %c0_117, %c0_118] : memref<4x1x8xf32, #tpu.memory_space<vmem>>, vector<1x1x8xf32>
    %179 = vector.shape_cast %178 : vector<1x1x8xf32> to vector<1x8xf32>
    %180 = vector.broadcast %179 : vector<1x8xf32> to vector<128x8xf32>
    %181 = arith.addf %177, %180 : vector<128x8xf32>
    %182 = arith.truncf %167 : vector<8x8xf32> to vector<8x8xbf16>
    %183 = arith.truncf %174 : vector<128x8xf32> to vector<128x8xbf16>
    %cst_119 = arith.constant dense<0.000000e+00> : vector<8x128xf32>
    %184 = tpu.matmul %182, %183, %cst_119 {dimension_numbers = #tpu.dot_dimension_numbers<[1], [1], [0], [0], [0, 0, 1, 0], [], []>} : vector<8x8xbf16>, vector<128x8xbf16>, vector<8x128xf32> -> vector<8x128xf32>
    %185 = tpu.iota {dimensions = array<i32: 1>} : vector<8x128xi32>
    %c16_i32_120 = arith.constant 16 : i32
    %186 = vector.broadcast %c16_i32_120 : i32 to vector<8x128xi32>
    %187 = arith.cmpi slt, %185, %186 : vector<8x128xi32>
    %cst_121 = arith.constant -1.000000e+30 : f32
    %188 = vector.broadcast %cst_121 : f32 to vector<8x128xf32>
    %189 = arith.select %187, %184, %188 : vector<8x128xi1>, vector<8x128xf32>
    %cst_122 = arith.constant dense<0xFF800000> : vector<8xf32>
    %190 = vector.multi_reduction <maximumf>, %189, %cst_122 [1] : vector<8x128xf32> to vector<8xf32>
    %191 = vector.shape_cast %190 : vector<8xf32> to vector<8x1xf32>
    %192 = vector.broadcast %191 : vector<8x1xf32> to vector<8x128xf32>
    %193 = arith.subf %189, %192 : vector<8x128xf32>
    %194 = math.exp %193 : vector<8x128xf32>
    %cst_123 = arith.constant dense<0.000000e+00> : vector<8xf32>
    %195 = vector.multi_reduction <add>, %194, %cst_123 [1] : vector<8x128xf32> to vector<8xf32>
    %196 = vector.shape_cast %195 : vector<8xf32> to vector<8x1xf32>
    %197 = vector.broadcast %196 : vector<8x1xf32> to vector<8x128xf32>
    %198 = arith.divf %194, %197 : vector<8x128xf32>
    %199 = arith.truncf %198 : vector<8x128xf32> to vector<8x128xbf16>
    %c0_124 = arith.constant 0 : index
    %c2_125 = arith.constant 2 : index
    %c0_126 = arith.constant 0 : index
    %c0_127 = arith.constant 0 : index
    %200 = vector.load %arg18[%c0_124, %c2_125, %c0_126, %c0_127] : memref<1x4x8x128xbf16, #tpu.memory_space<vmem>>, vector<1x1x8x128xbf16>
    %201 = vector.shape_cast %200 : vector<1x1x8x128xbf16> to vector<8x128xbf16>
    %202 = vector.shape_cast %199 : vector<8x128xbf16> to vector<1x1x8x128xbf16>
    tpu.vector_store %arg18[%c0_124, %c2_125, %c0_126, %c0_127], %202 {strides = array<i32>} : memref<1x4x8x128xbf16, #tpu.memory_space<vmem>>, vector<1x1x8x128xbf16>,
    %203 = arith.truncf %198 : vector<8x128xf32> to vector<8x128xbf16>
    %204 = arith.truncf %181 : vector<128x8xf32> to vector<128x8xbf16>
    %cst_128 = arith.constant dense<0.000000e+00> : vector<8x8xf32>
    %205 = tpu.matmul %203, %204, %cst_128 {dimension_numbers = #tpu.dot_dimension_numbers<[1], [0], [0], [1], [0, 0, 1, 1], [], []>} : vector<8x128xbf16>, vector<128x8xbf16>, vector<8x8xf32> -> vector<8x8xf32>
    %c0_129 = arith.constant 0 : index
    %c16 = arith.constant 16 : index
    %206 = vector.load %arg19[%c0_129, %c16] : memref<8x32xf32, #tpu.memory_space<vmem>>, vector<8x8xf32>
    tpu.vector_store %arg19[%c0_129, %c16], %205 {strides = array<i32>} : memref<8x32xf32, #tpu.memory_space<vmem>>, vector<8x8xf32>,
    %c3 = arith.constant 3 : index
    %c0_130 = arith.constant 0 : index
    %c0_131 = arith.constant 0 : index
    %207 = vector.load %arg9[%c3, %c0_130, %c0_131] : memref<4x32x8xbf16, #tpu.memory_space<vmem>>, vector<1x32x8xbf16>
    %208 = vector.shape_cast %207 : vector<1x32x8xbf16> to vector<32x8xbf16>
    %cst_132 = arith.constant dense<0.000000e+00> : vector<8x8xf32>
    %209 = tpu.matmul %1, %208, %cst_132 {dimension_numbers = #tpu.dot_dimension_numbers<[1], [0], [0], [1], [0, 0, 1, 1], [], []>} : vector<8x32xbf16>, vector<32x8xbf16>, vector<8x8xf32> -> vector<8x8xf32>
    %c3_133 = arith.constant 3 : index
    %c0_134 = arith.constant 0 : index
    %c0_135 = arith.constant 0 : index
    %210 = vector.load %arg10[%c3_133, %c0_134, %c0_135] : memref<4x1x8xf32, #tpu.memory_space<vmem>>, vector<1x1x8xf32>
    %211 = vector.shape_cast %210 : vector<1x1x8xf32> to vector<1x8xf32>
    %212 = vector.broadcast %211 : vector<1x8xf32> to vector<8x8xf32>
    %213 = arith.addf %209, %212 : vector<8x8xf32>
    %c3_136 = arith.constant 3 : index
    %c0_137 = arith.constant 0 : index
    %c0_138 = arith.constant 0 : index
    %214 = vector.load %arg11[%c3_136, %c0_137, %c0_138] : memref<4x32x8xbf16, #tpu.memory_space<vmem>>, vector<1x32x8xbf16>
    %215 = vector.shape_cast %214 : vector<1x32x8xbf16> to vector<32x8xbf16>
    %cst_139 = arith.constant dense<0.000000e+00> : vector<128x8xf32>
    %216 = tpu.matmul %67, %215, %cst_139 {dimension_numbers = #tpu.dot_dimension_numbers<[1], [0], [0], [1], [0, 0, 1, 1], [], []>} : vector<128x32xbf16>, vector<32x8xbf16>, vector<128x8xf32> -> vector<128x8xf32>
    %c3_140 = arith.constant 3 : index
    %c0_141 = arith.constant 0 : index
    %c0_142 = arith.constant 0 : index
    %217 = vector.load %arg12[%c3_140, %c0_141, %c0_142] : memref<4x1x8xf32, #tpu.memory_space<vmem>>, vector<1x1x8xf32>
    %218 = vector.shape_cast %217 : vector<1x1x8xf32> to vector<1x8xf32>
    %219 = vector.broadcast %218 : vector<1x8xf32> to vector<128x8xf32>
    %220 = arith.addf %216, %219 : vector<128x8xf32>
    %c3_143 = arith.constant 3 : index
    %c0_144 = arith.constant 0 : index
    %c0_145 = arith.constant 0 : index
    %221 = vector.load %arg13[%c3_143, %c0_144, %c0_145] : memref<4x32x8xbf16, #tpu.memory_space<vmem>>, vector<1x32x8xbf16>
    %222 = vector.shape_cast %221 : vector<1x32x8xbf16> to vector<32x8xbf16>
    %cst_146 = arith.constant dense<0.000000e+00> : vector<128x8xf32>
    %223 = tpu.matmul %68, %222, %cst_146 {dimension_numbers = #tpu.dot_dimension_numbers<[1], [0], [0], [1], [0, 0, 1, 1], [], []>} : vector<128x32xbf16>, vector<32x8xbf16>, vector<128x8xf32> -> vector<128x8xf32>
    %c3_147 = arith.constant 3 : index
    %c0_148 = arith.constant 0 : index
    %c0_149 = arith.constant 0 : index
    %224 = vector.load %arg14[%c3_147, %c0_148, %c0_149] : memref<4x1x8xf32, #tpu.memory_space<vmem>>, vector<1x1x8xf32>
    %225 = vector.shape_cast %224 : vector<1x1x8xf32> to vector<1x8xf32>
    %226 = vector.broadcast %225 : vector<1x8xf32> to vector<128x8xf32>
    %227 = arith.addf %223, %226 : vector<128x8xf32>
    %228 = arith.truncf %213 : vector<8x8xf32> to vector<8x8xbf16>
    %229 = arith.truncf %220 : vector<128x8xf32> to vector<128x8xbf16>
    %cst_150 = arith.constant dense<0.000000e+00> : vector<8x128xf32>
    %230 = tpu.matmul %228, %229, %cst_150 {dimension_numbers = #tpu.dot_dimension_numbers<[1], [1], [0], [0], [0, 0, 1, 0], [], []>} : vector<8x8xbf16>, vector<128x8xbf16>, vector<8x128xf32> -> vector<8x128xf32>
    %231 = tpu.iota {dimensions = array<i32: 1>} : vector<8x128xi32>
    %c16_i32_151 = arith.constant 16 : i32
    %232 = vector.broadcast %c16_i32_151 : i32 to vector<8x128xi32>
    %233 = arith.cmpi slt, %231, %232 : vector<8x128xi32>
    %cst_152 = arith.constant -1.000000e+30 : f32
    %234 = vector.broadcast %cst_152 : f32 to vector<8x128xf32>
    %235 = arith.select %233, %230, %234 : vector<8x128xi1>, vector<8x128xf32>
    %cst_153 = arith.constant dense<0xFF800000> : vector<8xf32>
    %236 = vector.multi_reduction <maximumf>, %235, %cst_153 [1] : vector<8x128xf32> to vector<8xf32>
    %237 = vector.shape_cast %236 : vector<8xf32> to vector<8x1xf32>
    %238 = vector.broadcast %237 : vector<8x1xf32> to vector<8x128xf32>
    %239 = arith.subf %235, %238 : vector<8x128xf32>
    %240 = math.exp %239 : vector<8x128xf32>
    %cst_154 = arith.constant dense<0.000000e+00> : vector<8xf32>
    %241 = vector.multi_reduction <add>, %240, %cst_154 [1] : vector<8x128xf32> to vector<8xf32>
    %242 = vector.shape_cast %241 : vector<8xf32> to vector<8x1xf32>
    %243 = vector.broadcast %242 : vector<8x1xf32> to vector<8x128xf32>
    %244 = arith.divf %240, %243 : vector<8x128xf32>
    %245 = arith.truncf %244 : vector<8x128xf32> to vector<8x128xbf16>
    %c0_155 = arith.constant 0 : index
    %c3_156 = arith.constant 3 : index
    %c0_157 = arith.constant 0 : index
    %c0_158 = arith.constant 0 : index
    %246 = vector.load %arg18[%c0_155, %c3_156, %c0_157, %c0_158] : memref<1x4x8x128xbf16, #tpu.memory_space<vmem>>, vector<1x1x8x128xbf16>
    %247 = vector.shape_cast %246 : vector<1x1x8x128xbf16> to vector<8x128xbf16>
    %248 = vector.shape_cast %245 : vector<8x128xbf16> to vector<1x1x8x128xbf16>
    tpu.vector_store %arg18[%c0_155, %c3_156, %c0_157, %c0_158], %248 {strides = array<i32>} : memref<1x4x8x128xbf16, #tpu.memory_space<vmem>>, vector<1x1x8x128xbf16>,
    %249 = arith.truncf %244 : vector<8x128xf32> to vector<8x128xbf16>
    %250 = arith.truncf %227 : vector<128x8xf32> to vector<128x8xbf16>
    %cst_159 = arith.constant dense<0.000000e+00> : vector<8x8xf32>
    %251 = tpu.matmul %249, %250, %cst_159 {dimension_numbers = #tpu.dot_dimension_numbers<[1], [0], [0], [1], [0, 0, 1, 1], [], []>} : vector<8x128xbf16>, vector<128x8xbf16>, vector<8x8xf32> -> vector<8x8xf32>
    %c0_160 = arith.constant 0 : index
    %c24 = arith.constant 24 : index
    %252 = vector.load %arg19[%c0_160, %c24] : memref<8x32xf32, #tpu.memory_space<vmem>>, vector<8x8xf32>
    tpu.vector_store %arg19[%c0_160, %c24], %251 {strides = array<i32>} : memref<8x32xf32, #tpu.memory_space<vmem>>, vector<8x8xf32>,
    %c0_161 = arith.constant 0 : index
    %c0_162 = arith.constant 0 : index
    %253 = vector.load %arg19[%c0_161, %c0_162] : memref<8x32xf32, #tpu.memory_space<vmem>>, vector<8x32xf32>
    %254 = arith.truncf %253 : vector<8x32xf32> to vector<8x32xbf16>
    %c0_163 = arith.constant 0 : index
    %c0_164 = arith.constant 0 : index
    %255 = vector.load %arg15[%c0_163, %c0_164] : memref<32x32xbf16, #tpu.memory_space<vmem>>, vector<32x32xbf16>
    %cst_165 = arith.constant dense<0.000000e+00> : vector<8x32xf32>
    %256 = tpu.matmul %254, %255, %cst_165 {dimension_numbers = #tpu.dot_dimension_numbers<[1], [0], [0], [1], [0, 0, 1, 1], [], []>} : vector<8x32xbf16>, vector<32x32xbf16>, vector<8x32xf32> -> vector<8x32xf32>
    %c0_166 = arith.constant 0 : index
    %c0_167 = arith.constant 0 : index
    %257 = vector.load %arg16[%c0_166, %c0_167] : memref<1x32xf32, #tpu.memory_space<vmem>>, vector<1x32xf32>
    %258 = vector.broadcast %257 : vector<1x32xf32> to vector<8x32xf32>
    %259 = arith.addf %256, %258 : vector<8x32xf32>
    %260 = arith.truncf %259 : vector<8x32xf32> to vector<8x32xbf16>
    %c0_168 = arith.constant 0 : index
    %c0_169 = arith.constant 0 : index
    %c0_170 = arith.constant 0 : index
    %261 = vector.load %arg17[%c0_168, %c0_169, %c0_170] : memref<1x8x32xbf16, #tpu.memory_space<vmem>>, vector<1x8x32xbf16>
    %262 = vector.shape_cast %261 : vector<1x8x32xbf16> to vector<8x32xbf16>
    %263 = vector.shape_cast %260 : vector<8x32xbf16> to vector<1x8x32xbf16>
    tpu.vector_store %arg17[%c0_168, %c0_169, %c0_170], %263 {strides = array<i32>} : memref<1x8x32xbf16, #tpu.memory_space<vmem>>, vector<1x8x32xbf16>,
    return
  }
  func.func @transform_0(%arg0: i32, %arg1: i32) -> (i32, i32, i32) {
    %c0_i32 = arith.constant 0 : i32
    %c0_i32_0 = arith.constant 0 : i32
    return %arg0, %arg1, %c0_i32 : i32, i32, i32
  }
  func.func @transform_1(%arg0: i32, %arg1: i32) -> (i32, i32, i32) {
    %c0_i32 = arith.constant 0 : i32
    %c0_i32_0 = arith.constant 0 : i32
    %c0_i32_1 = arith.constant 0 : i32
    return %arg0, %c0_i32, %c0_i32_0 : i32, i32, i32
  }
  func.func @transform_2(%arg0: i32, %arg1: i32) -> (i32, i32, i32) {
    %c0_i32 = arith.constant 0 : i32
    %c0_i32_0 = arith.constant 0 : i32
    %c0_i32_1 = arith.constant 0 : i32
    return %arg0, %c0_i32, %c0_i32_0 : i32, i32, i32
  }
  func.func @transform_3(%arg0: i32, %arg1: i32) -> (i32, i32) {
    %c0_i32 = arith.constant 0 : i32
    %c0_i32_0 = arith.constant 0 : i32
    %c0_i32_1 = arith.constant 0 : i32
    return %c0_i32, %c0_i32_0 : i32, i32
  }
  func.func @transform_4(%arg0: i32, %arg1: i32) -> (i32, i32) {
    %c0_i32 = arith.constant 0 : i32
    %c0_i32_0 = arith.constant 0 : i32
    %c0_i32_1 = arith.constant 0 : i32
    return %c0_i32, %c0_i32_0 : i32, i32
  }
  func.func @transform_5(%arg0: i32, %arg1: i32) -> (i32, i32) {
    %c0_i32 = arith.constant 0 : i32
    %c0_i32_0 = arith.constant 0 : i32
    %c0_i32_1 = arith.constant 0 : i32
    return %c0_i32, %c0_i32_0 : i32, i32
  }
  func.func @transform_6(%arg0: i32, %arg1: i32) -> (i32, i32) {
    %c0_i32 = arith.constant 0 : i32
    %c0_i32_0 = arith.constant 0 : i32
    %c0_i32_1 = arith.constant 0 : i32
    return %c0_i32, %c0_i32_0 : i32, i32
  }
  func.func @transform_7(%arg0: i32, %arg1: i32) -> (i32, i32, i32) {
    %c0_i32 = arith.constant 0 : i32
    %c0_i32_0 = arith.constant 0 : i32
    %c0_i32_1 = arith.constant 0 : i32
    %c0_i32_2 = arith.constant 0 : i32
    return %c0_i32, %c0_i32_0, %c0_i32_1 : i32, i32, i32
  }
  func.func @transform_8(%arg0: i32, %arg1: i32) -> (i32, i32, i32) {
    %c0_i32 = arith.constant 0 : i32
    %c0_i32_0 = arith.constant 0 : i32
    %c0_i32_1 = arith.constant 0 : i32
    %c0_i32_2 = arith.constant 0 : i32
    return %c0_i32, %c0_i32_0, %c0_i32_1 : i32, i32, i32
  }
  func.func @transform_9(%arg0: i32, %arg1: i32) -> (i32, i32, i32) {
    %c0_i32 = arith.constant 0 : i32
    %c0_i32_0 = arith.constant 0 : i32
    %c0_i32_1 = arith.constant 0 : i32
    %c0_i32_2 = arith.constant 0 : i32
    return %c0_i32, %c0_i32_0, %c0_i32_1 : i32, i32, i32
  }
  func.func @transform_10(%arg0: i32, %arg1: i32) -> (i32, i32, i32) {
    %c0_i32 = arith.constant 0 : i32
    %c0_i32_0 = arith.constant 0 : i32
    %c0_i32_1 = arith.constant 0 : i32
    %c0_i32_2 = arith.constant 0 : i32
    return %c0_i32, %c0_i32_0, %c0_i32_1 : i32, i32, i32
  }
  func.func @transform_11(%arg0: i32, %arg1: i32) -> (i32, i32, i32) {
    %c0_i32 = arith.constant 0 : i32
    %c0_i32_0 = arith.constant 0 : i32
    %c0_i32_1 = arith.constant 0 : i32
    %c0_i32_2 = arith.constant 0 : i32
    return %c0_i32, %c0_i32_0, %c0_i32_1 : i32, i32, i32
  }
  func.func @transform_12(%arg0: i32, %arg1: i32) -> (i32, i32, i32) {
    %c0_i32 = arith.constant 0 : i32
    %c0_i32_0 = arith.constant 0 : i32
    %c0_i32_1 = arith.constant 0 : i32
    %c0_i32_2 = arith.constant 0 : i32
    return %c0_i32, %c0_i32_0, %c0_i32_1 : i32, i32, i32
  }
  func.func @transform_13(%arg0: i32, %arg1: i32) -> (i32, i32) {
    %c0_i32 = arith.constant 0 : i32
    %c0_i32_0 = arith.constant 0 : i32
    %c0_i32_1 = arith.constant 0 : i32
    return %c0_i32, %c0_i32_0 : i32, i32
  }
  func.func @transform_14(%arg0: i32, %arg1: i32) -> (i32, i32) {
    %c0_i32 = arith.constant 0 : i32
    %c0_i32_0 = arith.constant 0 : i32
    %c0_i32_1 = arith.constant 0 : i32
    return %c0_i32, %c0_i32_0 : i32, i32
  }
  func.func @transform_15(%arg0: i32, %arg1: i32) -> (i32, i32, i32) {
    %c0_i32 = arith.constant 0 : i32
    %c0_i32_0 = arith.constant 0 : i32
    return %arg0, %arg1, %c0_i32 : i32, i32, i32
  }
  func.func @transform_16(%arg0: i32, %arg1: i32) -> (i32, i32, i32, i32) {
    %c0_i32 = arith.constant 0 : i32
    %c0_i32_0 = arith.constant 0 : i32
    %c0_i32_1 = arith.constant 0 : i32
    return %arg0, %c0_i32, %arg1, %c0_i32_0 : i32, i32, i32, i32
  }
}

</mosaic_0001>

<llo_original>
// kernel: tpu_custom_call.1
$region0: #{tpu_custom_call.1}
  #allocation0 [shape = 'u32[]', space=smem, size = 0x4, offset = 0x4, fixed_abs, tag = 'smem constant byte address 0x4 - core index']
  #allocation1 [shape = 'u32[144,128]{1,0:T(1,128)}', space=vmem, size = 0x12000, scoped, tag = 'internal scratch']
  #allocation2 [shape = 'f32[8,32]{1,0:T(8,128)}', space=vmem, size = 0x1000, scoped, tag = 'scratch operand']
  %s0 = inlined_call_operand.vmem [shape: bf16[2,8,32], index: 0, kind: input, shape index: {}]
  %s1 = inlined_call_operand.vmem [shape: bf16[2,16,128], index: 1, kind: input, shape index: {}]
  %s2 = inlined_call_operand.vmem [shape: bf16[2,16,128], index: 2, kind: input, shape index: {}]
  %s3 = inlined_call_operand.vmem [shape: bf16[128,32], index: 3, kind: input, shape index: {}]
  %s4 = inlined_call_operand.vmem [shape: f32[1,32], index: 4, kind: input, shape index: {}]
  %s5 = inlined_call_operand.vmem [shape: f32[1,32], index: 5, kind: input, shape index: {}]
  %s6 = inlined_call_operand.vmem [shape: f32[1,32], index: 6, kind: input, shape index: {}]
  %s7 = inlined_call_operand.vmem [shape: bf16[4,32,8], index: 7, kind: input, shape index: {}]
  %s8 = inlined_call_operand.vmem [shape: f32[4,1,8], index: 8, kind: input, shape index: {}]
  %s9 = inlined_call_operand.vmem [shape: bf16[4,32,8], index: 9, kind: input, shape index: {}]
  %s10 = inlined_call_operand.vmem [shape: f32[4,1,8], index: 10, kind: input, shape index: {}]
  %s11 = inlined_call_operand.vmem [shape: bf16[4,32,8], index: 11, kind: input, shape index: {}]
  %s12 = inlined_call_operand.vmem [shape: f32[4,1,8], index: 12, kind: input, shape index: {}]
  %s13 = inlined_call_operand.vmem [shape: bf16[32,32], index: 13, kind: input, shape index: {}]
  %s14 = inlined_call_operand.vmem [shape: f32[1,32], index: 14, kind: input, shape index: {}]
  %s15 = inlined_call_operand.hbm [shape: bf16[2,8,32], index: 15, kind: output, shape index: {0}]
  %s16 = inlined_call_operand.hbm [shape: bf16[2,4,8,128], index: 16, kind: output, shape index: {1}]
  %17 = xla_tuple %s15, %s16
  %s18 = sld [smem:[#allocation0]]
  $region101: #{tpu_custom_call.1} parent=0
    _
  %s20 = ssub.s32 1, %s18
  %s21 = scalar_select 0, %s20, %s18
  $region1: #{tpu_custom_call.1} parent=0
    #allocation3 [shape = 'u8[4096]{0}', space=vmem, size = 0x1000, scoped, tag = 'output window, operand 0']
    #allocation4 [shape = 's32[2]{0}', space=sflag, size = 0x8, scoped, tag = 'scoped memory for tpu_custom_call.1']
    #allocation5 [shape = 'u8[16384]{0}', space=vmem, size = 0x4000, scoped, tag = 'output window, operand 1']
    #allocation6 [shape = 's32[2]{0}', space=sflag, size = 0x8, scoped, tag = 'scoped memory for tpu_custom_call.1']
    %22 = vsyncpa [#allocation4], 0
    %s23 = scalar_lea.sflag [#allocation4], 1
    %24 = vsyncpa %s23, 0
    %25 = vsyncpa [#allocation6], 0
    %s26 = scalar_lea.sflag [#allocation6], 1
    %27 = vsyncpa %s26, 0
    loop: start=0, step=1, limit=4
    $region2: #{tpu_custom_call.1} parent=1 // loop_pre_header
      _
    $region3: #{tpu_custom_call.1} parent=1 // loop_header
      %s29 = sphi 0, %s33
      %p30 = scmp.ge.s32.totalorder %s29, 4
      %s36 = sphi 0, %s48
      %s37 = sphi 0, %s44
      %s38 = sphi 0, %s36
      %s39 = sphi 0, %s37
      %s40 = sphi 0, %s38
      %s41 = sphi 0, %s39
      %s53 = sphi 0, %s55
      %s56 = sphi 0, %s53
      %s57 = sphi 0, %s56
      %s73 = sphi 0, %s57
      %s79 = sphi 0, %s81
      %s82 = sphi 0, %s79
      %s83 = sphi 0, %s82
      %s99 = sphi 0, %s83
      %s105 = sphi 0, %s107
      %s108 = sphi 0, %s105
      %s109 = sphi 0, %s108
      %s125 = sphi 0, %s109
      %s129 = sphi 0, %s129
      %s131 = sphi 0, %s129
      %s132 = sphi 0, %s131
      %s146 = sphi 0, %s132
      %s150 = sphi 0, %s150
      %s152 = sphi 0, %s150
      %s153 = sphi 0, %s152
      %s167 = sphi 0, %s153
      %s171 = sphi 0, %s171
      %s173 = sphi 0, %s171
      %s174 = sphi 0, %s173
      %s188 = sphi 0, %s174
      %s192 = sphi 0, %s192
      %s194 = sphi 0, %s192
      %s195 = sphi 0, %s194
      %s209 = sphi 0, %s195
      %s213 = sphi 0, %s213
      %s215 = sphi 0, %s213
      %s216 = sphi 0, %s215
      %s230 = sphi 0, %s216
      %s234 = sphi 0, %s234
      %s236 = sphi 0, %s234
      %s237 = sphi 0, %s236
      %s251 = sphi 0, %s237
      %s255 = sphi 0, %s255
      %s257 = sphi 0, %s255
      %s258 = sphi 0, %s257
      %s272 = sphi 0, %s258
      %s276 = sphi 0, %s276
      %s278 = sphi 0, %s276
      %s279 = sphi 0, %s278
      %s293 = sphi 0, %s279
      %s297 = sphi 0, %s297
      %s299 = sphi 0, %s297
      %s300 = sphi 0, %s299
      %s314 = sphi 0, %s300
      %s318 = sphi 0, %s318
      %s320 = sphi 0, %s318
      %s321 = sphi 0, %s320
      %s335 = sphi 0, %s321
      %s339 = sphi 0, %s339
      %s341 = sphi 0, %s339
      %s342 = sphi 0, %s341
      %s356 = sphi 0, %s342
      %s360 = sphi 0, %s360
      %s362 = sphi 0, %s360
      %s363 = sphi 0, %s362
      %s377 = sphi 0, %s363
      %s385 = sphi 0, %s387
      %s388 = sphi 0, %s385
      %s389 = sphi 0, %s388
      %s405 = sphi 0, %s389
      %s413 = sphi 0, %s415
      %s416 = sphi 0, %s413
      %s417 = sphi 0, %s416
      %s433 = sphi 0, %s417
    $region4: #{tpu_custom_call.1} parent=1 // loop_header_branch
      %32 = sbr.rel (%p30) target = $region8
    $region5: #{tpu_custom_call.1} parent=1 // loop_body
      %s34 = ssub.s32 %s29, 1
      %s35 = ssub.s32 %s29, 2
      %s42 = sadd.s32 1, %s37
      %p43 = scmp.ge.s32.totalorder %s42, 1
      %s44 = scalar_select %p43, 0, %s42
      %s45 = sadd.s32 1, %s36
      %s46 = scalar_select %p43, %s45, %s36
      %p47 = scmp.ge.s32.totalorder %s46, 2
      %s48 = scalar_select %p47, 0, %s46
      %s49 = ssub.s32 %s36, %s48
      %s50 = ssub.s32 %s37, %s44
      %s51 = sor.u32 %s49, %s50
      %p52 = scmp.eq.s32.totalorder %s51, 0
      %s54 = sadd.s32 %s53, 1
      %s55 = scalar_select %p52, %s53, %s54
      %p58 = pneg %p52
      %p59 = scmp.eq.s32.totalorder %s29, 1
      %p60 = por %p58, %p59
      %p61 = scmp.ne.s32.totalorder %s53, %s56
      %p62 = scmp.eq.s32.totalorder %s29, 0
      %p63 = por %p61, %p62
      %p64 = scmp.ne.s32.totalorder %s53, %s56
      %p65 = scmp.eq.s32.totalorder %s34, 1
      %p66 = por %p64, %p65
      %p67 = scmp.ne.s32.totalorder %s56, %s57
      %p68 = scmp.eq.s32.totalorder %s34, 0
      %p69 = por %p67, %p68
      %p70 = scmp.ne.s32.totalorder %s56, %s57
      %p71 = scmp.eq.s32.totalorder %s35, 1
      %p72 = por %p70, %p71
      %p74 = scmp.ne.s32.totalorder %s57, %s73
      %p75 = scmp.eq.s32.totalorder %s35, 0
      %p76 = por %p74, %p75
      %s77 = ssub.s32 %s36, %s48
      %p78 = scmp.eq.s32.totalorder %s77, 0
      %s80 = sadd.s32 %s79, 1
      %s81 = scalar_select %p78, %s79, %s80
      %p84 = pneg %p78
      %p85 = scmp.eq.s32.totalorder %s29, 1
      %p86 = por %p84, %p85
      %p87 = scmp.ne.s32.totalorder %s79, %s82
      %p88 = scmp.eq.s32.totalorder %s29, 0
      %p89 = por %p87, %p88
      %p90 = scmp.ne.s32.totalorder %s79, %s82
      %p91 = scmp.eq.s32.totalorder %s34, 1
      %p92 = por %p90, %p91
      %p93 = scmp.ne.s32.totalorder %s82, %s83
      %p94 = scmp.eq.s32.totalorder %s34, 0
      %p95 = por %p93, %p94
      %p96 = scmp.ne.s32.totalorder %s82, %s83
      %p97 = scmp.eq.s32.totalorder %s35, 1
      %p98 = por %p96, %p97
      %p100 = scmp.ne.s32.totalorder %s83, %s99
      %p101 = scmp.eq.s32.totalorder %s35, 0
      %p102 = por %p100, %p101
      %s103 = ssub.s32 %s36, %s48
      %p104 = scmp.eq.s32.totalorder %s103, 0
      %s106 = sadd.s32 %s105, 1
      %s107 = scalar_select %p104, %s105, %s106
      %p110 = pneg %p104
      %p111 = scmp.eq.s32.totalorder %s29, 1
      %p112 = por %p110, %p111
      %p113 = scmp.ne.s32.totalorder %s105, %s108
      %p114 = scmp.eq.s32.totalorder %s29, 0
      %p115 = por %p113, %p114
      %p116 = scmp.ne.s32.totalorder %s105, %s108
      %p117 = scmp.eq.s32.totalorder %s34, 1
      %p118 = por %p116, %p117
      %p119 = scmp.ne.s32.totalorder %s108, %s109
      %p120 = scmp.eq.s32.totalorder %s34, 0
      %p121 = por %p119, %p120
      %p122 = scmp.ne.s32.totalorder %s108, %s109
      %p123 = scmp.eq.s32.totalorder %s35, 1
      %p124 = por %p122, %p123
      %p126 = scmp.ne.s32.totalorder %s109, %s125
      %p127 = scmp.eq.s32.totalorder %s35, 0
      %p128 = por %p126, %p127
      %s130 = sadd.s32 %s129, 1
      %p133 = scmp.eq.s32.totalorder %s29, 1
      %p134 = scmp.ne.s32.totalorder %s129, %s131
      %p135 = scmp.eq.s32.totalorder %s29, 0
      %p136 = por %p134, %p135
      %p137 = scmp.ne.s32.totalorder %s129, %s131
      %p138 = scmp.eq.s32.totalorder %s34, 1
      %p139 = por %p137, %p138
      %p140 = scmp.ne.s32.totalorder %s131, %s132
      %p141 = scmp.eq.s32.totalorder %s34, 0
      %p142 = por %p140, %p141
      %p143 = scmp.ne.s32.totalorder %s131, %s132
      %p144 = scmp.eq.s32.totalorder %s35, 1
      %p145 = por %p143, %p144
      %p147 = scmp.ne.s32.totalorder %s132, %s146
      %p148 = scmp.eq.s32.totalorder %s35, 0
      %p149 = por %p147, %p148
      %s151 = sadd.s32 %s150, 1
      %p154 = scmp.eq.s32.totalorder %s29, 1
      %p155 = scmp.ne.s32.totalorder %s150, %s152
      %p156 = scmp.eq.s32.totalorder %s29, 0
      %p157 = por %p155, %p156
      %p158 = scmp.ne.s32.totalorder %s150, %s152
      %p159 = scmp.eq.s32.totalorder %s34, 1
      %p160 = por %p158, %p159
      %p161 = scmp.ne.s32.totalorder %s152, %s153
      %p162 = scmp.eq.s32.totalorder %s34, 0
      %p163 = por %p161, %p162
      %p164 = scmp.ne.s32.totalorder %s152, %s153
      %p165 = scmp.eq.s32.totalorder %s35, 1
      %p166 = por %p164, %p165
      %p168 = scmp.ne.s32.totalorder %s153, %s167
      %p169 = scmp.eq.s32.totalorder %s35, 0
      %p170 = por %p168, %p169
      %s172 = sadd.s32 %s171, 1
      %p175 = scmp.eq.s32.totalorder %s29, 1
      %p176 = scmp.ne.s32.totalorder %s171, %s173
      %p177 = scmp.eq.s32.totalorder %s29, 0
      %p178 = por %p176, %p177
      %p179 = scmp.ne.s32.totalorder %s171, %s173
      %p180 = scmp.eq.s32.totalorder %s34, 1
      %p181 = por %p179, %p180
      %p182 = scmp.ne.s32.totalorder %s173, %s174
      %p183 = scmp.eq.s32.totalorder %s34, 0
      %p184 = por %p182, %p183
      %p185 = scmp.ne.s32.totalorder %s173, %s174
      %p186 = scmp.eq.s32.totalorder %s35, 1
      %p187 = por %p185, %p186
      %p189 = scmp.ne.s32.totalorder %s174, %s188
      %p190 = scmp.eq.s32.totalorder %s35, 0
      %p191 = por %p189, %p190
      %s193 = sadd.s32 %s192, 1
      %p196 = scmp.eq.s32.totalorder %s29, 1
      %p197 = scmp.ne.s32.totalorder %s192, %s194
      %p198 = scmp.eq.s32.totalorder %s29, 0
      %p199 = por %p197, %p198
      %p200 = scmp.ne.s32.totalorder %s192, %s194
      %p201 = scmp.eq.s32.totalorder %s34, 1
      %p202 = por %p200, %p201
      %p203 = scmp.ne.s32.totalorder %s194, %s195
      %p204 = scmp.eq.s32.totalorder %s34, 0
      %p205 = por %p203, %p204
      %p206 = scmp.ne.s32.totalorder %s194, %s195
      %p207 = scmp.eq.s32.totalorder %s35, 1
      %p208 = por %p206, %p207
      %p210 = scmp.ne.s32.totalorder %s195, %s209
      %p211 = scmp.eq.s32.totalorder %s35, 0
      %p212 = por %p210, %p211
      %s214 = sadd.s32 %s213, 1
      %p217 = scmp.eq.s32.totalorder %s29, 1
      %p218 = scmp.ne.s32.totalorder %s213, %s215
      %p219 = scmp.eq.s32.totalorder %s29, 0
      %p220 = por %p218, %p219
      %p221 = scmp.ne.s32.totalorder %s213, %s215
      %p222 = scmp.eq.s32.totalorder %s34, 1
      %p223 = por %p221, %p222
      %p224 = scmp.ne.s32.totalorder %s215, %s216
      %p225 = scmp.eq.s32.totalorder %s34, 0
      %p226 = por %p224, %p225
      %p227 = scmp.ne.s32.totalorder %s215, %s216
      %p228 = scmp.eq.s32.totalorder %s35, 1
      %p229 = por %p227, %p228
      %p231 = scmp.ne.s32.totalorder %s216, %s230
      %p232 = scmp.eq.s32.totalorder %s35, 0
      %p233 = por %p231, %p232
      %s235 = sadd.s32 %s234, 1
      %p238 = scmp.eq.s32.totalorder %s29, 1
      %p239 = scmp.ne.s32.totalorder %s234, %s236
      %p240 = scmp.eq.s32.totalorder %s29, 0
      %p241 = por %p239, %p240
      %p242 = scmp.ne.s32.totalorder %s234, %s236
      %p243 = scmp.eq.s32.totalorder %s34, 1
      %p244 = por %p242, %p243
      %p245 = scmp.ne.s32.totalorder %s236, %s237
      %p246 = scmp.eq.s32.totalorder %s34, 0
      %p247 = por %p245, %p246
      %p248 = scmp.ne.s32.totalorder %s236, %s237
      %p249 = scmp.eq.s32.totalorder %s35, 1
      %p250 = por %p248, %p249
      %p252 = scmp.ne.s32.totalorder %s237, %s251
      %p253 = scmp.eq.s32.totalorder %s35, 0
      %p254 = por %p252, %p253
      %s256 = sadd.s32 %s255, 1
      %p259 = scmp.eq.s32.totalorder %s29, 1
      %p260 = scmp.ne.s32.totalorder %s255, %s257
      %p261 = scmp.eq.s32.totalorder %s29, 0
      %p262 = por %p260, %p261
      %p263 = scmp.ne.s32.totalorder %s255, %s257
      %p264 = scmp.eq.s32.totalorder %s34, 1
      %p265 = por %p263, %p264
      %p266 = scmp.ne.s32.totalorder %s257, %s258
      %p267 = scmp.eq.s32.totalorder %s34, 0
      %p268 = por %p266, %p267
      %p269 = scmp.ne.s32.totalorder %s257, %s258
      %p270 = scmp.eq.s32.totalorder %s35, 1
      %p271 = por %p269, %p270
      %p273 = scmp.ne.s32.totalorder %s258, %s272
      %p274 = scmp.eq.s32.totalorder %s35, 0
      %p275 = por %p273, %p274
      %s277 = sadd.s32 %s276, 1
      %p280 = scmp.eq.s32.totalorder %s29, 1
      %p281 = scmp.ne.s32.totalorder %s276, %s278
      %p282 = scmp.eq.s32.totalorder %s29, 0
      %p283 = por %p281, %p282
      %p284 = scmp.ne.s32.totalorder %s276, %s278
      %p285 = scmp.eq.s32.totalorder %s34, 1
      %p286 = por %p284, %p285
      %p287 = scmp.ne.s32.totalorder %s278, %s279
      %p288 = scmp.eq.s32.totalorder %s34, 0
      %p289 = por %p287, %p288
      %p290 = scmp.ne.s32.totalorder %s278, %s279
      %p291 = scmp.eq.s32.totalorder %s35, 1
      %p292 = por %p290, %p291
      %p294 = scmp.ne.s32.totalorder %s279, %s293
      %p295 = scmp.eq.s32.totalorder %s35, 0
      %p296 = por %p294, %p295
      %s298 = sadd.s32 %s297, 1
      %p301 = scmp.eq.s32.totalorder %s29, 1
      %p302 = scmp.ne.s32.totalorder %s297, %s299
      %p303 = scmp.eq.s32.totalorder %s29, 0
      %p304 = por %p302, %p303
      %p305 = scmp.ne.s32.totalorder %s297, %s299
      %p306 = scmp.eq.s32.totalorder %s34, 1
      %p307 = por %p305, %p306
      %p308 = scmp.ne.s32.totalorder %s299, %s300
      %p309 = scmp.eq.s32.totalorder %s34, 0
      %p310 = por %p308, %p309
      %p311 = scmp.ne.s32.totalorder %s299, %s300
      %p312 = scmp.eq.s32.totalorder %s35, 1
      %p313 = por %p311, %p312
      %p315 = scmp.ne.s32.totalorder %s300, %s314
      %p316 = scmp.eq.s32.totalorder %s35, 0
      %p317 = por %p315, %p316
      %s319 = sadd.s32 %s318, 1
      %p322 = scmp.eq.s32.totalorder %s29, 1
      %p323 = scmp.ne.s32.totalorder %s318, %s320
      %p324 = scmp.eq.s32.totalorder %s29, 0
      %p325 = por %p323, %p324
      %p326 = scmp.ne.s32.totalorder %s318, %s320
      %p327 = scmp.eq.s32.totalorder %s34, 1
      %p328 = por %p326, %p327
      %p329 = scmp.ne.s32.totalorder %s320, %s321
      %p330 = scmp.eq.s32.totalorder %s34, 0
      %p331 = por %p329, %p330
      %p332 = scmp.ne.s32.totalorder %s320, %s321
      %p333 = scmp.eq.s32.totalorder %s35, 1
      %p334 = por %p332, %p333
      %p336 = scmp.ne.s32.totalorder %s321, %s335
      %p337 = scmp.eq.s32.totalorder %s35, 0
      %p338 = por %p336, %p337
      %s340 = sadd.s32 %s339, 1
      %p343 = scmp.eq.s32.totalorder %s29, 1
      %p344 = scmp.ne.s32.totalorder %s339, %s341
      %p345 = scmp.eq.s32.totalorder %s29, 0
      %p346 = por %p344, %p345
      %p347 = scmp.ne.s32.totalorder %s339, %s341
      %p348 = scmp.eq.s32.totalorder %s34, 1
      %p349 = por %p347, %p348
      %p350 = scmp.ne.s32.totalorder %s341, %s342
      %p351 = scmp.eq.s32.totalorder %s34, 0
      %p352 = por %p350, %p351
      %p353 = scmp.ne.s32.totalorder %s341, %s342
      %p354 = scmp.eq.s32.totalorder %s35, 1
      %p355 = por %p353, %p354
      %p357 = scmp.ne.s32.totalorder %s342, %s356
      %p358 = scmp.eq.s32.totalorder %s35, 0
      %p359 = por %p357, %p358
      %s361 = sadd.s32 %s360, 1
      %p364 = scmp.eq.s32.totalorder %s29, 1
      %p365 = scmp.ne.s32.totalorder %s360, %s362
      %p366 = scmp.eq.s32.totalorder %s29, 0
      %p367 = por %p365, %p366
      %p368 = scmp.ne.s32.totalorder %s360, %s362
      %p369 = scmp.eq.s32.totalorder %s34, 1
      %p370 = por %p368, %p369
      %p371 = scmp.ne.s32.totalorder %s362, %s363
      %p372 = scmp.eq.s32.totalorder %s34, 0
      %p373 = por %p371, %p372
      %p374 = scmp.ne.s32.totalorder %s362, %s363
      %p375 = scmp.eq.s32.totalorder %s35, 1
      %p376 = por %p374, %p375
      %p378 = scmp.ne.s32.totalorder %s363, %s377
      %p379 = scmp.eq.s32.totalorder %s35, 0
      %p380 = por %p378, %p379
      %s381 = ssub.s32 %s36, %s48
      %s382 = ssub.s32 %s37, %s44
      %s383 = sor.u32 %s381, %s382
      %p384 = scmp.eq.s32.totalorder %s383, 0
      %s386 = sadd.s32 %s385, 1
      %s387 = scalar_select %p384, %s385, %s386
      %p390 = pneg %p384
      %p391 = scmp.eq.s32.totalorder %s29, 1
      %p392 = por %p390, %p391
      %p393 = scmp.ne.s32.totalorder %s385, %s388
      %p394 = scmp.eq.s32.totalorder %s29, 0
      %p395 = por %p393, %p394
      %p396 = scmp.ne.s32.totalorder %s385, %s388
      %p397 = scmp.eq.s32.totalorder %s34, 1
      %p398 = por %p396, %p397
      %p399 = scmp.ne.s32.totalorder %s388, %s389
      %p400 = scmp.eq.s32.totalorder %s34, 0
      %p401 = por %p399, %p400
      %p402 = scmp.ne.s32.totalorder %s388, %s389
      %p403 = scmp.eq.s32.totalorder %s35, 1
      %p404 = por %p402, %p403
      %p406 = scmp.ne.s32.totalorder %s389, %s405
      %p407 = scmp.eq.s32.totalorder %s35, 0
      %p408 = por %p406, %p407
      %s409 = ssub.s32 %s36, %s48
      %s410 = ssub.s32 %s37, %s44
      %s411 = sor.u32 %s409, %s410
      %p412 = scmp.eq.s32.totalorder %s411, 0
      %s414 = sadd.s32 %s413, 1
      %s415 = scalar_select %p412, %s413, %s414
      %p418 = pneg %p412
      %p419 = scmp.eq.s32.totalorder %s29, 1
      %p420 = por %p418, %p419
      %p421 = scmp.ne.s32.totalorder %s413, %s416
      %p422 = scmp.eq.s32.totalorder %s29, 0
      %p423 = por %p421, %p422
      %p424 = scmp.ne.s32.totalorder %s413, %s416
      %p425 = scmp.eq.s32.totalorder %s34, 1
      %p426 = por %p424, %p425
      %p427 = scmp.ne.s32.totalorder %s416, %s417
      %p428 = scmp.eq.s32.totalorder %s34, 0
      %p429 = por %p427, %p428
      %p430 = scmp.ne.s32.totalorder %s416, %s417
      %p431 = scmp.eq.s32.totalorder %s35, 1
      %p432 = por %p430, %p431
      %p434 = scmp.ne.s32.totalorder %s417, %s433
      %p435 = scmp.eq.s32.totalorder %s35, 0
      %p436 = por %p434, %p435
      %p437 = scmp.le.s32.totalorder 1, %s29
      %p438 = scmp.lt.s32.totalorder %s29, 3
      %p439 = pnand %p437, %p438
      %p440 = pneg %p439
      // Predicated region
      $region9: #{tpu_custom_call.1} parent=5 // pred_check
        _
      $region10: #{tpu_custom_call.1} parent=5 // pred_check_branch
        %442 = sbr.rel (%p439) target = $region12
      $region11: #{tpu_custom_call.1} parent=5 // pred_region
        %s443 = ssub.s32 %s29, 1
        // Predicated region
        $region13: #{tpu_custom_call.1} parent=11 // pred_check
          %p444 = pneg %p142
        $region14: #{tpu_custom_call.1} parent=11 // pred_check_branch
          %446 = sbr.rel (%p444) target = $region16
        $region15: #{tpu_custom_call.1} parent=11 // pred_region
          _
        $region16: #{tpu_custom_call.1} parent=11 // pred_fallthru
          _
        // Predicated region
        $region17: #{tpu_custom_call.1} parent=11 // pred_check
          %p447 = pneg %p163
        $region18: #{tpu_custom_call.1} parent=11 // pred_check_branch
          %449 = sbr.rel (%p447) target = $region20
        $region19: #{tpu_custom_call.1} parent=11 // pred_region
          _
        $region20: #{tpu_custom_call.1} parent=11 // pred_fallthru
          _
        // Predicated region
        $region21: #{tpu_custom_call.1} parent=11 // pred_check
          %p450 = pneg %p184
        $region22: #{tpu_custom_call.1} parent=11 // pred_check_branch
          %452 = sbr.rel (%p450) target = $region24
        $region23: #{tpu_custom_call.1} parent=11 // pred_region
          _
        $region24: #{tpu_custom_call.1} parent=11 // pred_fallthru
          _
        // Predicated region
        $region25: #{tpu_custom_call.1} parent=11 // pred_check
          %p453 = pneg %p205
        $region26: #{tpu_custom_call.1} parent=11 // pred_check_branch
          %455 = sbr.rel (%p453) target = $region28
        $region27: #{tpu_custom_call.1} parent=11 // pred_region
          _
        $region28: #{tpu_custom_call.1} parent=11 // pred_fallthru
          _
        // Predicated region
        $region29: #{tpu_custom_call.1} parent=11 // pred_check
          %p456 = pneg %p226
        $region30: #{tpu_custom_call.1} parent=11 // pred_check_branch
          %458 = sbr.rel (%p456) target = $region32
        $region31: #{tpu_custom_call.1} parent=11 // pred_region
          _
        $region32: #{tpu_custom_call.1} parent=11 // pred_fallthru
          _
        // Predicated region
        $region33: #{tpu_custom_call.1} parent=11 // pred_check
          %p459 = pneg %p247
        $region34: #{tpu_custom_call.1} parent=11 // pred_check_branch
          %461 = sbr.rel (%p459) target = $region36
        $region35: #{tpu_custom_call.1} parent=11 // pred_region
          _
        $region36: #{tpu_custom_call.1} parent=11 // pred_fallthru
          _
        // Predicated region
        $region37: #{tpu_custom_call.1} parent=11 // pred_check
          %p462 = pneg %p268
        $region38: #{tpu_custom_call.1} parent=11 // pred_check_branch
          %464 = sbr.rel (%p462) target = $region40
        $region39: #{tpu_custom_call.1} parent=11 // pred_region
          _
        $region40: #{tpu_custom_call.1} parent=11 // pred_fallthru
          _
        // Predicated region
        $region41: #{tpu_custom_call.1} parent=11 // pred_check
          %p465 = pneg %p289
        $region42: #{tpu_custom_call.1} parent=11 // pred_check_branch
          %467 = sbr.rel (%p465) target = $region44
        $region43: #{tpu_custom_call.1} parent=11 // pred_region
          _
        $region44: #{tpu_custom_call.1} parent=11 // pred_fallthru
          _
        // Predicated region
        $region45: #{tpu_custom_call.1} parent=11 // pred_check
          %p468 = pneg %p310
        $region46: #{tpu_custom_call.1} parent=11 // pred_check_branch
          %470 = sbr.rel (%p468) target = $region48
        $region47: #{tpu_custom_call.1} parent=11 // pred_region
          _
        $region48: #{tpu_custom_call.1} parent=11 // pred_fallthru
          _
        // Predicated region
        $region49: #{tpu_custom_call.1} parent=11 // pred_check
          %p471 = pneg %p331
        $region50: #{tpu_custom_call.1} parent=11 // pred_check_branch
          %473 = sbr.rel (%p471) target = $region52
        $region51: #{tpu_custom_call.1} parent=11 // pred_region
          _
        $region52: #{tpu_custom_call.1} parent=11 // pred_fallthru
          _
        // Predicated region
        $region53: #{tpu_custom_call.1} parent=11 // pred_check
          %p474 = pneg %p352
        $region54: #{tpu_custom_call.1} parent=11 // pred_check_branch
          %476 = sbr.rel (%p474) target = $region56
        $region55: #{tpu_custom_call.1} parent=11 // pred_region
          _
        $region56: #{tpu_custom_call.1} parent=11 // pred_fallthru
          _
        // Predicated region
        $region57: #{tpu_custom_call.1} parent=11 // pred_check
          %p477 = pneg %p373
        $region58: #{tpu_custom_call.1} parent=11 // pred_check_branch
          %479 = sbr.rel (%p477) target = $region60
        $region59: #{tpu_custom_call.1} parent=11 // pred_region
          _
        $region60: #{tpu_custom_call.1} parent=11 // pred_fallthru
          _
      $region12: #{tpu_custom_call.1} parent=5 // pred_fallthru
        _
      %p480 = scmp.lt.s32.totalorder %s29, 2
      // Predicated region
      $region61: #{tpu_custom_call.1} parent=5 // pred_check
        %p481 = pneg %p480
      $region62: #{tpu_custom_call.1} parent=5 // pred_check_branch
        %483 = sbr.rel (%p481) target = $region64
      $region63: #{tpu_custom_call.1} parent=5 // pred_region
        // Predicated region
        $region65: #{tpu_custom_call.1} parent=63 // pred_check
          %p484 = pneg %p63
        $region66: #{tpu_custom_call.1} parent=63 // pred_check_branch
          %486 = sbr.rel (%p484) target = $region68
        $region67: #{tpu_custom_call.1} parent=63 // pred_region
          %p487 = scmp.lt.s32.totalorder %s36, 1
          %s488 = scalar_select %p487, %s36, 1
          %p489 = scmp.lt.s32.totalorder %s37, 0
          %s490 = scalar_select %p489, %s37, 0
          %s491 = sadd.s32 %s490, %s488
          %s492 = smul.addr %s491, 4
          %s493 = scalar_lea.vmem %s0, %s492
        $region68: #{tpu_custom_call.1} parent=63 // pred_fallthru
          _
        // Predicated region
        $region69: #{tpu_custom_call.1} parent=63 // pred_check
          %p494 = pneg %p89
        $region70: #{tpu_custom_call.1} parent=63 // pred_check_branch
          %496 = sbr.rel (%p494) target = $region72
        $region71: #{tpu_custom_call.1} parent=63 // pred_region
          %p497 = scmp.lt.s32.totalorder %s36, 1
          %s498 = scalar_select %p497, %s36, 1
          %s499 = smul.addr %s498, 2
          %s500 = smul.addr %s499, 4
          %s501 = scalar_lea.vmem %s1, %s500
        $region72: #{tpu_custom_call.1} parent=63 // pred_fallthru
          _
        // Predicated region
        $region73: #{tpu_custom_call.1} parent=63 // pred_check
          %p502 = pneg %p115
        $region74: #{tpu_custom_call.1} parent=63 // pred_check_branch
          %504 = sbr.rel (%p502) target = $region76
        $region75: #{tpu_custom_call.1} parent=63 // pred_region
          %p505 = scmp.lt.s32.totalorder %s36, 1
          %s506 = scalar_select %p505, %s36, 1
          %s507 = smul.addr %s506, 2
          %s508 = smul.addr %s507, 4
          %s509 = scalar_lea.vmem %s2, %s508
        $region76: #{tpu_custom_call.1} parent=63 // pred_fallthru
          _
      $region64: #{tpu_custom_call.1} parent=5 // pred_fallthru
        _
      %p510 = scmp.le.s32.totalorder 1, %s29
      %p511 = scmp.lt.s32.totalorder %s29, 3
      %p512 = pnand %p510, %p511
      %p513 = pneg %p512
      // Predicated region
      $region77: #{tpu_custom_call.1} parent=5 // pred_check
        _
      $region78: #{tpu_custom_call.1} parent=5 // pred_check_branch
        %515 = sbr.rel (%p512) target = $region80
      $region79: #{tpu_custom_call.1} parent=5 // pred_region
        %s516 = ssub.s32 %s29, 1
        %p517 = scmp.lt.s32.totalorder %s38, 1
        %s518 = scalar_select %p517, %s38, 1
        %p519 = scmp.lt.s32.totalorder %s39, 0
        %s520 = scalar_select %p519, %s39, 0
        %s521 = sadd.s32 %s520, %s518
        %s522 = smul.addr %s521, 4
        %s523 = scalar_lea.vmem %s0, %s522
        %p524 = pneg %p69
        %p525 = pneg %p66
        %p526 = scmp.lt.s32.totalorder %s38, 1
        %s527 = scalar_select %p526, %s38, 1
        %s528 = smul.addr %s527, 2
        %s529 = smul.addr %s528, 4
        %s530 = scalar_lea.vmem %s1, %s529
        %p531 = pneg %p95
        %p532 = pneg %p92
        %p533 = scmp.lt.s32.totalorder %s38, 1
        %s534 = scalar_select %p533, %s38, 1
        %s535 = smul.addr %s534, 2
        %s536 = smul.addr %s535, 4
        %s537 = scalar_lea.vmem %s2, %s536
        %p538 = pneg %p121
        %p539 = pneg %p118
        %p540 = pneg %p142
        %p541 = pneg %p139
        %p542 = pneg %p163
        %p543 = pneg %p160
        %p544 = pneg %p184
        %p545 = pneg %p181
        %p546 = pneg %p205
        %p547 = pneg %p202
        %p548 = pneg %p226
        %p549 = pneg %p223
        %p550 = pneg %p247
        %p551 = pneg %p244
        %p552 = pneg %p268
        %p553 = pneg %p265
        %p554 = pneg %p289
        %p555 = pneg %p286
        %p556 = pneg %p310
        %p557 = pneg %p307
        %p558 = pneg %p331
        %p559 = pneg %p328
        %p560 = pneg %p352
        %p561 = pneg %p349
        %p562 = pneg %p373
        %p563 = pneg %p370
        %p564 = pneg %p401
        %p565 = pneg %p398
        %s566 = sand.u32 %s388, 1
        %s567 = scalar_lea.sflag [#allocation4], %s566
        %s568 = sand.u32 %s388, 1
        %s569 = smul.addr %s568, 4
        %s570 = scalar_lea.vmem [#allocation3], %s569
        %p571 = pneg %p429
        %p572 = pneg %p426
        %s573 = sand.u32 %s416, 1
        %s574 = scalar_lea.sflag [#allocation6], %s573
        %s575 = sand.u32 %s416, 1
        %s576 = smul.addr %s575, 16
        %s577 = scalar_lea.vmem [#allocation5], %s576
        %p578 = scmp.lt.s32.totalorder %s38, 1
        %s579 = scalar_select %p578, %s38, 1
        %p580 = scmp.lt.s32.totalorder %s39, 0
        %s581 = scalar_select %p580, %s39, 0
        %s582 = sadd.s32 %s581, %s579
        %s583 = smul.addr %s582, 4
        %s584 = scalar_lea.vmem %s0, %s583
        %p585 = scmp.lt.s32.totalorder %s38, 1
        %s586 = scalar_select %p585, %s38, 1
        %s587 = smul.addr %s586, 2
        %s588 = smul.addr %s587, 4
        %s589 = scalar_lea.vmem %s1, %s588
        %p590 = scmp.lt.s32.totalorder %s38, 1
        %s591 = scalar_select %p590, %s38, 1
        %s592 = smul.addr %s591, 2
        %s593 = smul.addr %s592, 4
        %s594 = scalar_lea.vmem %s2, %s593
        %v596 = vld [vmem:[%s584] sm:$0xf]
        %v597 = vld [vmem:[%s589] sm:$0xf]
        %v598 = vld [vmem:[%s589 + $0x4] sm:$0xf]
        %v599 = vld [vmem:[%s3] sm:$0xf]
        %v600 = vld [vmem:[%s3 + $0x4] sm:$0xf]
        %v601 = vld [vmem:[%s3 + $0x8] sm:$0xf]
        %v602 = vld [vmem:[%s3 + $0xc] sm:$0xf]
        %v603 = vld [vmem:[%s3 + $0x10] sm:$0xf]
        %v604 = vld [vmem:[%s3 + $0x14] sm:$0xf]
        %v605 = vld [vmem:[%s3 + $0x18] sm:$0xf]
        %v606 = vld [vmem:[%s3 + $0x1c] sm:$0xf]
        %v607 = vld [vmem:[%s3 + $0x20] sm:$0xf]
        %v608 = vld [vmem:[%s3 + $0x24] sm:$0xf]
        %v609 = vld [vmem:[%s3 + $0x28] sm:$0xf]
        %v610 = vld [vmem:[%s3 + $0x2c] sm:$0xf]
        %v611 = vld [vmem:[%s3 + $0x30] sm:$0xf]
        %v612 = vld [vmem:[%s3 + $0x34] sm:$0xf]
        %v613 = vld [vmem:[%s3 + $0x38] sm:$0xf]
        %v614 = vld [vmem:[%s3 + $0x3c] sm:$0xf]
        %v615 = vld [vmem:[%s4] sm:$0x1]
        %v617 = vlaneseq
        %v618 = vshrl.u32 %v617, 7
        %v619 = vsub.s32 0, %v618
        %v620 = vrot.slane %v615, %v619
        %v624 = vunpack.c.l.b16 %v597
        %v625 = vunpack.c.l.b16 %v598
        %v626 = vpack.c.b16 %v625, %v624
        %v644 = vunpack.c.l.b16 %v599
        %v645 = vunpack.c.l.b16 %v600
        %v646 = vunpack.c.l.b16 %v601
        %v647 = vunpack.c.l.b16 %v602
        %v648 = vunpack.c.l.b16 %v603
        %v649 = vunpack.c.l.b16 %v604
        %v650 = vunpack.c.l.b16 %v605
        %v651 = vunpack.c.l.b16 %v606
        %v652 = vunpack.c.l.b16 %v607
        %v653 = vunpack.c.l.b16 %v608
        %v654 = vunpack.c.l.b16 %v609
        %v655 = vunpack.c.l.b16 %v610
        %v656 = vunpack.c.l.b16 %v611
        %v657 = vunpack.c.l.b16 %v612
        %v658 = vunpack.c.l.b16 %v613
        %v659 = vunpack.c.l.b16 %v614
        %v660 = vpack.c.b16 %v645, %v644
        %v661 = vpack.c.b16 %v647, %v646
        %v662 = vpack.c.b16 %v649, %v648
        %v663 = vpack.c.b16 %v651, %v650
        %v664 = vpack.c.b16 %v653, %v652
        %v665 = vpack.c.b16 %v655, %v654
        %v666 = vpack.c.b16 %v657, %v656
        %v667 = vpack.c.b16 %v659, %v658
        %676 = vmatprep.subr.bf16.mxu0 0
        %677 = vmatpush1.bf16.msra.mxu0 %v660
        %678 = vmatprep.subr.bf16.mxu0 0
        %679 = vmatpush1.bf16.msra.mxu0 %v661
        %680 = vmatprep.subr.bf16.mxu0 0
        %681 = vmatpush1.bf16.msra.mxu0 %v662
        %682 = vmatprep.subr.bf16.mxu0 0
        %683 = vmatpush1.bf16.msra.mxu0 %v663
        %684 = vmatprep.subr.bf16.mxu0 0
        %685 = vmatpush1.bf16.msra.mxu0 %v664
        %686 = vmatprep.subr.bf16.mxu0 0
        %687 = vmatpush1.bf16.msra.mxu0 %v665
        %688 = vmatprep.subr.bf16.mxu0 0
        %689 = vmatpush1.bf16.msra.mxu0 %v666
        %690 = vmatprep.subr.bf16.mxu0 0
        %691 = vmatpush1.bf16.msra.mxu0 %v667
        %692 = vmatprep.subr.bf16.mxu0 0
        %693 = vmatpush1.bf16.msra.mxu0 0
        %694 = vmatprep.subr.bf16.mxu0 0
        %695 = vmatpush1.bf16.msra.mxu0 0
        %696 = vmatprep.subr.bf16.mxu0 0
        %697 = vmatpush1.bf16.msra.mxu0 0
        %698 = vmatprep.subr.bf16.mxu0 0
        %699 = vmatpush1.bf16.msra.mxu0 0
        %700 = vmatprep.subr.bf16.mxu0 0
        %701 = vmatpush1.bf16.msra.mxu0 0
        %702 = vmatprep.subr.bf16.mxu0 0
        %703 = vmatpush1.bf16.msra.mxu0 0
        %704 = vmatprep.subr.bf16.mxu0 0
        %705 = vmatpush1.bf16.msra.mxu0 0
        %706 = vmatprep.subr.bf16.mxu0 0
        %707 = vmatpush1.bf16.msra.mxu0 0
        %708 = vmatprep.mubr.bf16.mxu0 0
        %709 = vmatmul.mubr.bf16.gmra.mrb[0].mxu0 %v626
        %v710 = vpop.f32.mrb[0].mxu0
        %v711 = vadd.f32 %v620, %v710
        %v712 = vpop.f32.mrb[0].mxu0
        %v713 = vpop.f32.mrb[0].mxu0
        %v714 = vadd.f32 %v620, %v713
        %v715 = vpop.f32.mrb[0].mxu0
        %716 = vdwg.mxu0
        %vm717 = vcmask 261120
        %v718 = vsel %vm717, %v711, 0.0
        %719 = vadd.xlane.f32.xlu0 %v718
        %v720 = vpop.xlane.xlu0 %719
        %v721 = vsel %vm717, %v714, 0.0
        %722 = vadd.xlane.f32.xlu0 %v721
        %v723 = vpop.xlane.xlu0 %722
        %v724 = vrcp.pop 32.0
        %v725 = vmul.f32 %v720, %v724
        %v726 = vmul.f32 %v723, %v724
        %v727 = vsub.f32 %v711, %v725
        %v728 = vsub.f32 %v714, %v726
        %v729 = vmul.f32 %v727, %v727
        %v730 = vmul.f32 %v728, %v728
        %v731 = vsel %vm717, %v729, 0.0
        %732 = vadd.xlane.f32.xlu0 %v731
        %v733 = vpop.xlane.xlu0 %732
        %v734 = vsel %vm717, %v730, 0.0
        %735 = vadd.xlane.f32.xlu0 %v734
        %v736 = vpop.xlane.xlu0 %735
        %v737 = vmul.f32 %v733, %v724
        %v738 = vmul.f32 %v736, %v724
        %v739 = vadd.f32 %v737, 1e-05
        %v740 = vadd.f32 %v738, 1e-05
        %v741 = vrsqrt.pop %v739
        %v742 = vrsqrt.pop %v740
        %v743 = vmul.f32 %v727, %v741
        %v744 = vmul.f32 %v728, %v742
        %v745 = vld [vmem:[%s5] sm:$0x1]
        %v747 = vlaneseq
        %v748 = vshrl.u32 %v747, 7
        %v749 = vsub.s32 0, %v748
        %v750 = vrot.slane %v745, %v749
        %v752 = vmul.f32 %v743, %v750
        %v753 = vmul.f32 %v744, %v750
        %v754 = vld [vmem:[%s6] sm:$0x1]
        %v756 = vlaneseq
        %v757 = vshrl.u32 %v756, 7
        %v758 = vsub.s32 0, %v757
        %v759 = vrot.slane %v754, %v758
        %v761 = vadd.f32 %v752, %v759
        %v762 = vadd.f32 %v753, %v759
        %v763 = vpack.c.bf16 %v762, %v761
        %v764 = vld [vmem:[%s594] sm:$0xf]
        %v765 = vld [vmem:[%s594 + $0x4] sm:$0xf]
        %v768 = vunpack.c.l.b16 %v764
        %v769 = vunpack.c.l.b16 %v765
        %v770 = vpack.c.b16 %v769, %v768
        %772 = vmatprep.subr.bf16.mxu0 0
        %773 = vmatpush1.bf16.msra.mxu0 %v660
        %774 = vmatprep.subr.bf16.mxu0 0
        %775 = vmatpush1.bf16.msra.mxu0 %v661
        %776 = vmatprep.subr.bf16.mxu0 0
        %777 = vmatpush1.bf16.msra.mxu0 %v662
        %778 = vmatprep.subr.bf16.mxu0 0
        %779 = vmatpush1.bf16.msra.mxu0 %v663
        %780 = vmatprep.subr.bf16.mxu0 0
        %781 = vmatpush1.bf16.msra.mxu0 %v664
        %782 = vmatprep.subr.bf16.mxu0 0
        %783 = vmatpush1.bf16.msra.mxu0 %v665
        %784 = vmatprep.subr.bf16.mxu0 0
        %785 = vmatpush1.bf16.msra.mxu0 %v666
        %786 = vmatprep.subr.bf16.mxu0 0
        %787 = vmatpush1.bf16.msra.mxu0 %v667
        %788 = vmatprep.subr.bf16.mxu0 0
        %789 = vmatpush1.bf16.msra.mxu0 0
        %790 = vmatprep.subr.bf16.mxu0 0
        %791 = vmatpush1.bf16.msra.mxu0 0
        %792 = vmatprep.subr.bf16.mxu0 0
        %793 = vmatpush1.bf16.msra.mxu0 0
        %794 = vmatprep.subr.bf16.mxu0 0
        %795 = vmatpush1.bf16.msra.mxu0 0
        %796 = vmatprep.subr.bf16.mxu0 0
        %797 = vmatpush1.bf16.msra.mxu0 0
        %798 = vmatprep.subr.bf16.mxu0 0
        %799 = vmatpush1.bf16.msra.mxu0 0
        %800 = vmatprep.subr.bf16.mxu0 0
        %801 = vmatpush1.bf16.msra.mxu0 0
        %802 = vmatprep.subr.bf16.mxu0 0
        %803 = vmatpush1.bf16.msra.mxu0 0
        %804 = vmatprep.mubr.bf16.mxu0 0
        %805 = vmatmul.mubr.bf16.gmra.mrb[0].mxu0 %v770
        %v806 = vpop.f32.mrb[0].mxu0
        %v807 = vadd.f32 %v620, %v806
        %v808 = vpop.f32.mrb[0].mxu0
        %v809 = vpop.f32.mrb[0].mxu0
        %v810 = vadd.f32 %v620, %v809
        %v811 = vpop.f32.mrb[0].mxu0
        %812 = vdwg.mxu0
        %v813 = vsel %vm717, %v807, 0.0
        %814 = vadd.xlane.f32.xlu0 %v813
        %v815 = vpop.xlane.xlu0 %814
        %v816 = vsel %vm717, %v810, 0.0
        %817 = vadd.xlane.f32.xlu0 %v816
        %v818 = vpop.xlane.xlu0 %817
        %v819 = vmul.f32 %v815, %v724
        %v820 = vmul.f32 %v818, %v724
        %v821 = vsub.f32 %v807, %v819
        %v822 = vsub.f32 %v810, %v820
        %v823 = vmul.f32 %v821, %v821
        %v824 = vmul.f32 %v822, %v822
        %v825 = vsel %vm717, %v823, 0.0
        %826 = vadd.xlane.f32.xlu0 %v825
        %v827 = vpop.xlane.xlu0 %826
        %v828 = vsel %vm717, %v824, 0.0
        %829 = vadd.xlane.f32.xlu0 %v828
        %v830 = vpop.xlane.xlu0 %829
        %v831 = vmul.f32 %v827, %v724
        %v832 = vmul.f32 %v830, %v724
        %v833 = vadd.f32 %v831, 1e-05
        %v834 = vadd.f32 %v832, 1e-05
        %v835 = vrsqrt.pop %v833
        %v836 = vrsqrt.pop %v834
        %v837 = vmul.f32 %v821, %v835
        %v838 = vmul.f32 %v822, %v836
        %v839 = vmul.f32 %v837, %v750
        %v840 = vmul.f32 %v838, %v750
        %v841 = vadd.f32 %v839, %v759
        %v842 = vadd.f32 %v840, %v759
        %v843 = vpack.c.bf16 %v842, %v841
        %v844 = vld [vmem:[%s7] sm:$0xf]
        %v845 = vld [vmem:[%s7 + $0x4] sm:$0xf]
        %v846 = vld [vmem:[%s7 + $0x8] sm:$0xf]
        %v847 = vld [vmem:[%s7 + $0xc] sm:$0xf]
        %v848 = vld [vmem:[%s8] sm:$0x1]
        %v850 = vlaneseq
        %v851 = vshrl.u32 %v850, 7
        %v852 = vsub.s32 0, %v851
        %v853 = vrot.slane %v848, %v852
        %v859 = vunpack.c.l.b16 %v844
        %v860 = vunpack.c.l.b16 %v845
        %v861 = vunpack.c.l.b16 %v846
        %v862 = vunpack.c.l.b16 %v847
        %v863 = vpack.c.b16 %v860, %v859
        %v864 = vpack.c.b16 %v862, %v861
        %v868 = vsel %vm717, %v596, 0
        %870 = vmatprep.subr.bf16.mxu0 0
        %871 = vmatpush1.bf16.msra.mxu0 %v863
        %872 = vmatprep.subr.bf16.mxu0 0
        %873 = vmatpush1.bf16.msra.mxu0 %v864
        %874 = vmatprep.subr.bf16.mxu0 0
        %875 = vmatpush1.bf16.msra.mxu0 0
        %876 = vmatprep.subr.bf16.mxu0 0
        %877 = vmatpush1.bf16.msra.mxu0 0
        %878 = vmatprep.subr.bf16.mxu0 0
        %879 = vmatpush1.bf16.msra.mxu0 0
        %880 = vmatprep.subr.bf16.mxu0 0
        %881 = vmatpush1.bf16.msra.mxu0 0
        %882 = vmatprep.subr.bf16.mxu0 0
        %883 = vmatpush1.bf16.msra.mxu0 0
        %884 = vmatprep.subr.bf16.mxu0 0
        %885 = vmatpush1.bf16.msra.mxu0 0
        %886 = vmatprep.subr.bf16.mxu0 0
        %887 = vmatpush1.bf16.msra.mxu0 0
        %888 = vmatprep.subr.bf16.mxu0 0
        %889 = vmatpush1.bf16.msra.mxu0 0
        %890 = vmatprep.subr.bf16.mxu0 0
        %891 = vmatpush1.bf16.msra.mxu0 0
        %892 = vmatprep.subr.bf16.mxu0 0
        %893 = vmatpush1.bf16.msra.mxu0 0
        %894 = vmatprep.subr.bf16.mxu0 0
        %895 = vmatpush1.bf16.msra.mxu0 0
        %896 = vmatprep.subr.bf16.mxu0 0
        %897 = vmatpush1.bf16.msra.mxu0 0
        %898 = vmatprep.subr.bf16.mxu0 0
        %899 = vmatpush1.bf16.msra.mxu0 0
        %900 = vmatprep.subr.bf16.mxu0 0
        %901 = vmatpush1.bf16.msra.mxu0 0
        %902 = vmatprep.mubr.bf16.mxu0 0
        %903 = vmatmul.mubr.bf16.gmra.mrb[0].mxu0 %v868
        %v904 = vpop.f32.mrb[0].mxu0
        %v905 = vadd.f32 %v853, %v904
        %v906 = vpop.f32.mrb[0].mxu0
        %v907 = vpop.f32.mrb[0].mxu0
        %v908 = vpop.f32.mrb[0].mxu0
        %909 = vdwg.mxu0
        %v910 = vld [vmem:[%s9] sm:$0xf]
        %v911 = vld [vmem:[%s9 + $0x4] sm:$0xf]
        %v912 = vld [vmem:[%s9 + $0x8] sm:$0xf]
        %v913 = vld [vmem:[%s9 + $0xc] sm:$0xf]
        %v914 = vld [vmem:[%s10] sm:$0x1]
        %v916 = vlaneseq
        %v917 = vshrl.u32 %v916, 7
        %v918 = vsub.s32 0, %v917
        %v919 = vrot.slane %v914, %v918
        %v925 = vunpack.c.l.b16 %v910
        %v926 = vunpack.c.l.b16 %v911
        %v927 = vunpack.c.l.b16 %v912
        %v928 = vunpack.c.l.b16 %v913
        %v929 = vpack.c.b16 %v926, %v925
        %v930 = vpack.c.b16 %v928, %v927
        %v934 = vsel %vm717, %v763, 0
        %v937 = vsel %vm717, 0, 0
        %939 = vmatprep.subr.bf16.mxu0 0
        %940 = vmatpush1.bf16.msra.mxu0 %v929
        %941 = vmatprep.subr.bf16.mxu0 0
        %942 = vmatpush1.bf16.msra.mxu0 %v930
        %943 = vmatprep.subr.bf16.mxu0 0
        %944 = vmatpush1.bf16.msra.mxu0 0
        %945 = vmatprep.subr.bf16.mxu0 0
        %946 = vmatpush1.bf16.msra.mxu0 0
        %947 = vmatprep.subr.bf16.mxu0 0
        %948 = vmatpush1.bf16.msra.mxu0 0
        %949 = vmatprep.subr.bf16.mxu0 0
        %950 = vmatpush1.bf16.msra.mxu0 0
        %951 = vmatprep.subr.bf16.mxu0 0
        %952 = vmatpush1.bf16.msra.mxu0 0
        %953 = vmatprep.subr.bf16.mxu0 0
        %954 = vmatpush1.bf16.msra.mxu0 0
        %955 = vmatprep.subr.bf16.mxu0 0
        %956 = vmatpush1.bf16.msra.mxu0 0
        %957 = vmatprep.subr.bf16.mxu0 0
        %958 = vmatpush1.bf16.msra.mxu0 0
        %959 = vmatprep.subr.bf16.mxu0 0
        %960 = vmatpush1.bf16.msra.mxu0 0
        %961 = vmatprep.subr.bf16.mxu0 0
        %962 = vmatpush1.bf16.msra.mxu0 0
        %963 = vmatprep.subr.bf16.mxu0 0
        %964 = vmatpush1.bf16.msra.mxu0 0
        %965 = vmatprep.subr.bf16.mxu0 0
        %966 = vmatpush1.bf16.msra.mxu0 0
        %967 = vmatprep.subr.bf16.mxu0 0
        %968 = vmatpush1.bf16.msra.mxu0 0
        %969 = vmatprep.subr.bf16.mxu0 0
        %970 = vmatpush1.bf16.msra.mxu0 0
        %971 = vmatprep.mubr.bf16.mxu0 0
        %972 = vmatmul.mubr.bf16.gmra.mrb[0].mxu0 %v934
        %v973 = vpop.f32.mrb[0].mxu0
        %v974 = vadd.f32 %v919, %v973
        %v975 = vpop.f32.mrb[0].mxu0
        %v976 = vpop.f32.mrb[0].mxu0
        %v977 = vadd.f32 %v919, %v976
        %v978 = vpop.f32.mrb[0].mxu0
        %979 = vmatprep.mubr.bf16.mxu0 0
        %980 = vmatmul.mubr.bf16.gmra.mrb[0].mxu0 %v937
        %v981 = vpop.f32.mrb[0].mxu0
        %v982 = vadd.f32 %v919, %v981
        %v983 = vpop.f32.mrb[0].mxu0
        %v984 = vpop.f32.mrb[0].mxu0
        %v985 = vadd.f32 %v919, %v984
        %v986 = vpop.f32.mrb[0].mxu0
        %987 = vmatprep.mubr.bf16.mxu0 0
        %988 = vmatmul.mubr.bf16.gmra.mrb[0].mxu0 %v937
        %v989 = vpop.f32.mrb[0].mxu0
        %v990 = vadd.f32 %v919, %v989
        %v991 = vpop.f32.mrb[0].mxu0
        %v992 = vpop.f32.mrb[0].mxu0
        %v993 = vadd.f32 %v919, %v992
        %v994 = vpop.f32.mrb[0].mxu0
        %995 = vmatprep.mubr.bf16.mxu0 0
        %996 = vmatmul.mubr.bf16.gmra.mrb[0].mxu0 %v937
        %v997 = vpop.f32.mrb[0].mxu0
        %v998 = vadd.f32 %v919, %v997
        %v999 = vpop.f32.mrb[0].mxu0
        %v1000 = vpop.f32.mrb[0].mxu0
        %v1001 = vadd.f32 %v919, %v1000
        %v1002 = vpop.f32.mrb[0].mxu0
        %1003 = vmatprep.mubr.bf16.mxu0 0
        %1004 = vmatmul.mubr.bf16.gmra.mrb[0].mxu0 %v937
        %v1005 = vpop.f32.mrb[0].mxu0
        %v1006 = vadd.f32 %v919, %v1005
        %v1007 = vpop.f32.mrb[0].mxu0
        %v1008 = vpop.f32.mrb[0].mxu0
        %v1009 = vadd.f32 %v919, %v1008
        %v1010 = vpop.f32.mrb[0].mxu0
        %1011 = vmatprep.mubr.bf16.mxu0 0
        %1012 = vmatmul.mubr.bf16.gmra.mrb[0].mxu0 %v937
        %v1013 = vpop.f32.mrb[0].mxu0
        %v1014 = vadd.f32 %v919, %v1013
        %v1015 = vpop.f32.mrb[0].mxu0
        %v1016 = vpop.f32.mrb[0].mxu0
        %v1017 = vadd.f32 %v919, %v1016
        %v1018 = vpop.f32.mrb[0].mxu0
        %1019 = vmatprep.mubr.bf16.mxu0 0
        %1020 = vmatmul.mubr.bf16.gmra.mrb[0].mxu0 %v937
        %v1021 = vpop.f32.mrb[0].mxu0
        %v1022 = vadd.f32 %v919, %v1021
        %v1023 = vpop.f32.mrb[0].mxu0
        %v1024 = vpop.f32.mrb[0].mxu0
        %v1025 = vadd.f32 %v919, %v1024
        %v1026 = vpop.f32.mrb[0].mxu0
        %1027 = vmatprep.mubr.bf16.mxu0 0
        %1028 = vmatmul.mubr.bf16.gmra.mrb[0].mxu0 %v937
        %v1029 = vpop.f32.mrb[0].mxu0
        %v1030 = vadd.f32 %v919, %v1029
        %v1031 = vpop.f32.mrb[0].mxu0
        %v1032 = vpop.f32.mrb[0].mxu0
        %v1033 = vadd.f32 %v919, %v1032
        %v1034 = vpop.f32.mrb[0].mxu0
        %1035 = vdwg.mxu0
        %v1036 = vld [vmem:[%s11] sm:$0xf]
        %v1037 = vld [vmem:[%s11 + $0x4] sm:$0xf]
        %v1038 = vld [vmem:[%s11 + $0x8] sm:$0xf]
        %v1039 = vld [vmem:[%s11 + $0xc] sm:$0xf]
        %v1040 = vld [vmem:[%s12] sm:$0x1]
        %v1042 = vlaneseq
        %v1043 = vshrl.u32 %v1042, 7
        %v1044 = vsub.s32 0, %v1043
        %v1045 = vrot.slane %v1040, %v1044
        %v1051 = vunpack.c.l.b16 %v1036
        %v1052 = vunpack.c.l.b16 %v1037
        %v1053 = vunpack.c.l.b16 %v1038
        %v1054 = vunpack.c.l.b16 %v1039
        %v1055 = vpack.c.b16 %v1052, %v1051
        %v1056 = vpack.c.b16 %v1054, %v1053
        %v1060 = vsel %vm717, %v843, 0
        %1062 = vmatprep.subr.bf16.mxu0 0
        %1063 = vmatpush1.bf16.msra.mxu0 %v1055
        %1064 = vmatprep.subr.bf16.mxu0 0
        %1065 = vmatpush1.bf16.msra.mxu0 %v1056
        %1066 = vmatprep.subr.bf16.mxu0 0
        %1067 = vmatpush1.bf16.msra.mxu0 0
        %1068 = vmatprep.subr.bf16.mxu0 0
        %1069 = vmatpush1.bf16.msra.mxu0 0
        %1070 = vmatprep.subr.bf16.mxu0 0
        %1071 = vmatpush1.bf16.msra.mxu0 0
        %1072 = vmatprep.subr.bf16.mxu0 0
        %1073 = vmatpush1.bf16.msra.mxu0 0
        %1074 = vmatprep.subr.bf16.mxu0 0
        %1075 = vmatpush1.bf16.msra.mxu0 0
        %1076 = vmatprep.subr.bf16.mxu0 0
        %1077 = vmatpush1.bf16.msra.mxu0 0
        %1078 = vmatprep.subr.bf16.mxu0 0
        %1079 = vmatpush1.bf16.msra.mxu0 0
        %1080 = vmatprep.subr.bf16.mxu0 0
        %1081 = vmatpush1.bf16.msra.mxu0 0
        %1082 = vmatprep.subr.bf16.mxu0 0
        %1083 = vmatpush1.bf16.msra.mxu0 0
        %1084 = vmatprep.subr.bf16.mxu0 0
        %1085 = vmatpush1.bf16.msra.mxu0 0
        %1086 = vmatprep.subr.bf16.mxu0 0
        %1087 = vmatpush1.bf16.msra.mxu0 0
        %1088 = vmatprep.subr.bf16.mxu0 0
        %1089 = vmatpush1.bf16.msra.mxu0 0
        %1090 = vmatprep.subr.bf16.mxu0 0
        %1091 = vmatpush1.bf16.msra.mxu0 0
        %1092 = vmatprep.subr.bf16.mxu0 0
        %1093 = vmatpush1.bf16.msra.mxu0 0
        %1094 = vmatprep.mubr.bf16.mxu0 0
        %1095 = vmatmul.mubr.bf16.gmra.mrb[0].mxu0 %v1060
        %v1096 = vpop.f32.mrb[0].mxu0
        %v1097 = vadd.f32 %v1045, %v1096
        %v1098 = vpop.f32.mrb[0].mxu0
        %v1099 = vpop.f32.mrb[0].mxu0
        %v1100 = vadd.f32 %v1045, %v1099
        %v1101 = vpop.f32.mrb[0].mxu0
        %1102 = vmatprep.mubr.bf16.mxu0 0
        %1103 = vmatmul.mubr.bf16.gmra.mrb[0].mxu0 %v937
        %v1104 = vpop.f32.mrb[0].mxu0
        %v1105 = vadd.f32 %v1045, %v1104
        %v1106 = vpop.f32.mrb[0].mxu0
        %v1107 = vpop.f32.mrb[0].mxu0
        %v1108 = vadd.f32 %v1045, %v1107
        %v1109 = vpop.f32.mrb[0].mxu0
        %1110 = vmatprep.mubr.bf16.mxu0 0
        %1111 = vmatmul.mubr.bf16.gmra.mrb[0].mxu0 %v937
        %v1112 = vpop.f32.mrb[0].mxu0
        %v1113 = vadd.f32 %v1045, %v1112
        %v1114 = vpop.f32.mrb[0].mxu0
        %v1115 = vpop.f32.mrb[0].mxu0
        %v1116 = vadd.f32 %v1045, %v1115
        %v1117 = vpop.f32.mrb[0].mxu0
        %1118 = vmatprep.mubr.bf16.mxu0 0
        %1119 = vmatmul.mubr.bf16.gmra.mrb[0].mxu0 %v937
        %v1120 = vpop.f32.mrb[0].mxu0
        %v1121 = vadd.f32 %v1045, %v1120
        %v1122 = vpop.f32.mrb[0].mxu0
        %v1123 = vpop.f32.mrb[0].mxu0
        %v1124 = vadd.f32 %v1045, %v1123
        %v1125 = vpop.f32.mrb[0].mxu0
        %1126 = vmatprep.mubr.bf16.mxu0 0
        %1127 = vmatmul.mubr.bf16.gmra.mrb[0].mxu0 %v937
        %v1128 = vpop.f32.mrb[0].mxu0
        %v1129 = vadd.f32 %v1045, %v1128
        %v1130 = vpop.f32.mrb[0].mxu0
        %v1131 = vpop.f32.mrb[0].mxu0
        %v1132 = vadd.f32 %v1045, %v1131
        %v1133 = vpop.f32.mrb[0].mxu0
        %1134 = vmatprep.mubr.bf16.mxu0 0
        %1135 = vmatmul.mubr.bf16.gmra.mrb[0].mxu0 %v937
        %v1136 = vpop.f32.mrb[0].mxu0
        %v1137 = vadd.f32 %v1045, %v1136
        %v1138 = vpop.f32.mrb[0].mxu0
        %v1139 = vpop.f32.mrb[0].mxu0
        %v1140 = vadd.f32 %v1045, %v1139
        %v1141 = vpop.f32.mrb[0].mxu0
        %1142 = vmatprep.mubr.bf16.mxu0 0
        %1143 = vmatmul.mubr.bf16.gmra.mrb[0].mxu0 %v937
        %v1144 = vpop.f32.mrb[0].mxu0
        %v1145 = vadd.f32 %v1045, %v1144
        %v1146 = vpop.f32.mrb[0].mxu0
        %v1147 = vpop.f32.mrb[0].mxu0
        %v1148 = vadd.f32 %v1045, %v1147
        %v1149 = vpop.f32.mrb[0].mxu0
        %1150 = vmatprep.mubr.bf16.mxu0 0
        %1151 = vmatmul.mubr.bf16.gmra.mrb[0].mxu0 %v937
        %v1152 = vpop.f32.mrb[0].mxu0
        %v1153 = vadd.f32 %v1045, %v1152
        %v1154 = vpop.f32.mrb[0].mxu0
        %v1155 = vpop.f32.mrb[0].mxu0
        %v1156 = vadd.f32 %v1045, %v1155
        %v1157 = vpop.f32.mrb[0].mxu0
        %1158 = vdwg.mxu0
        %v1159 = vpack.c.bf16 %v905, %v905
        %v1160 = vpack.c.bf16 %v977, %v974
        %v1161 = vpack.c.bf16 %v985, %v982
        %v1162 = vpack.c.bf16 %v993, %v990
        %v1163 = vpack.c.bf16 %v1001, %v998
        %v1164 = vpack.c.bf16 %v1009, %v1006
        %v1165 = vpack.c.bf16 %v1017, %v1014
        %v1166 = vpack.c.bf16 %v1025, %v1022
        %v1167 = vpack.c.bf16 %v1033, %v1030
        %vm1168 = vcmask 64512
        %v1170 = vsel %vm1168, %v1159, 0
        %v1173 = vsel %vm1168, %v1160, 0
        %v1176 = vsel %vm1168, %v1161, 0
        %v1179 = vsel %vm1168, %v1162, 0
        %v1182 = vsel %vm1168, %v1163, 0
        %v1185 = vsel %vm1168, %v1164, 0
        %v1188 = vsel %vm1168, %v1165, 0
        %v1191 = vsel %vm1168, %v1166, 0
        %v1194 = vsel %vm1168, %v1167, 0
        %1196 = vmatprep.subr.bf16.mxu0 0
        %1197 = vmatpush1.bf16.xpose.msra.mxu0 %v1173
        %1198 = vmatprep.subr.bf16.mxu0 0
        %1199 = vmatpush1.bf16.xpose.msra.mxu0 %v1176
        %1200 = vmatprep.subr.bf16.mxu0 0
        %1201 = vmatpush1.bf16.xpose.msra.mxu0 %v1179
        %1202 = vmatprep.subr.bf16.mxu0 0
        %1203 = vmatpush1.bf16.xpose.msra.mxu0 %v1182
        %1204 = vmatprep.subr.bf16.mxu0 0
        %1205 = vmatpush1.bf16.xpose.msra.mxu0 %v1185
        %1206 = vmatprep.subr.bf16.mxu0 0
        %1207 = vmatpush1.bf16.xpose.msra.mxu0 %v1188
        %1208 = vmatprep.subr.bf16.mxu0 0
        %1209 = vmatpush1.bf16.xpose.msra.mxu0 %v1191
        %1210 = vmatprep.subr.bf16.mxu0 0
        %1211 = vmatpush1.bf16.xpose.msra.mxu0 %v1194
        %1212 = vmatprep.subr.bf16.mxu0 0
        %1213 = vmatpush1.bf16.xpose.msra.mxu0 0
        %1214 = vmatprep.subr.bf16.mxu0 0
        %1215 = vmatpush1.bf16.xpose.msra.mxu0 0
        %1216 = vmatprep.subr.bf16.mxu0 0
        %1217 = vmatpush1.bf16.xpose.msra.mxu0 0
        %1218 = vmatprep.subr.bf16.mxu0 0
        %1219 = vmatpush1.bf16.xpose.msra.mxu0 0
        %1220 = vmatprep.subr.bf16.mxu0 0
        %1221 = vmatpush1.bf16.xpose.msra.mxu0 0
        %1222 = vmatprep.subr.bf16.mxu0 0
        %1223 = vmatpush1.bf16.xpose.msra.mxu0 0
        %1224 = vmatprep.subr.bf16.mxu0 0
        %1225 = vmatpush1.bf16.xpose.msra.mxu0 0
        %1226 = vmatprep.subr.bf16.mxu0 0
        %1227 = vmatpush1.bf16.xpose.msra.mxu0 0
        %1228 = vmatprep.mubr.bf16.mxu0 0
        %1229 = vmatmul.mubr.bf16.gmra.mrb[0].mxu0 %v1170
        %v1230 = vpop.f32.mrb[0].mxu0
        %v1231 = vadd.f32 0.0, %v1230
        %v1232 = vpop.f32.mrb[0].mxu0
        %v1233 = vpop.f32.mrb[0].mxu0
        %v1234 = vpop.f32.mrb[0].mxu0
        %1235 = vdwg.mxu0
        %v1236 = vlaneseq
        %v1237 = vand.u32 %v1236, 127
        %vm1238 = vcmp.lt.s32.totalorder %v1237, 16
        %v1239 = vsel %vm1238, %v1231, -1e+30
        %1240 = vmax.xlane.f32.xlu0 %v1239
        %v1241 = vpop.xlane.xlu0 %1240
        %v1242 = vsub.f32 %v1239, %v1241
        %v1243 = vmul.f32 %v1242, 1.442695
        %v1244 = vpow.pop %v1243
        %1245 = vadd.xlane.f32.xlu0 %v1244
        %v1246 = vpop.xlane.xlu0 %1245
        %v1247 = vrcp.pop %v1246
        %v1248 = vmul.f32 %v1244, %v1247
        %v1249 = vpack.c.bf16 %v1248, %v1248
        %1250 = vst [vmem:[%s577] sm:$0xf] %v1249
        %v1251 = vpack.c.bf16 %v1100, %v1097
        %v1252 = vpack.c.bf16 %v1108, %v1105
        %v1253 = vpack.c.bf16 %v1116, %v1113
        %v1254 = vpack.c.bf16 %v1124, %v1121
        %v1255 = vpack.c.bf16 %v1132, %v1129
        %v1256 = vpack.c.bf16 %v1140, %v1137
        %v1257 = vpack.c.bf16 %v1148, %v1145
        %v1258 = vpack.c.bf16 %v1156, %v1153
        %1259 = vmatprep.subr.bf16.mxu0 0
        %1260 = vmatpush1.bf16.msra.mxu0 %v1251
        %1261 = vmatprep.subr.bf16.mxu0 0
        %1262 = vmatpush1.bf16.msra.mxu0 %v1252
        %1263 = vmatprep.subr.bf16.mxu0 0
        %1264 = vmatpush1.bf16.msra.mxu0 %v1253
        %1265 = vmatprep.subr.bf16.mxu0 0
        %1266 = vmatpush1.bf16.msra.mxu0 %v1254
        %1267 = vmatprep.subr.bf16.mxu0 0
        %1268 = vmatpush1.bf16.msra.mxu0 %v1255
        %1269 = vmatprep.subr.bf16.mxu0 0
        %1270 = vmatpush1.bf16.msra.mxu0 %v1256
        %1271 = vmatprep.subr.bf16.mxu0 0
        %1272 = vmatpush1.bf16.msra.mxu0 %v1257
        %1273 = vmatprep.subr.bf16.mxu0 0
        %1274 = vmatpush1.bf16.msra.mxu0 %v1258
        %1275 = vmatprep.subr.bf16.mxu0 0
        %1276 = vmatpush1.bf16.msra.mxu0 0
        %1277 = vmatprep.subr.bf16.mxu0 0
        %1278 = vmatpush1.bf16.msra.mxu0 0
        %1279 = vmatprep.subr.bf16.mxu0 0
        %1280 = vmatpush1.bf16.msra.mxu0 0
        %1281 = vmatprep.subr.bf16.mxu0 0
        %1282 = vmatpush1.bf16.msra.mxu0 0
        %1283 = vmatprep.subr.bf16.mxu0 0
        %1284 = vmatpush1.bf16.msra.mxu0 0
        %1285 = vmatprep.subr.bf16.mxu0 0
        %1286 = vmatpush1.bf16.msra.mxu0 0
        %1287 = vmatprep.subr.bf16.mxu0 0
        %1288 = vmatpush1.bf16.msra.mxu0 0
        %1289 = vmatprep.subr.bf16.mxu0 0
        %1290 = vmatpush1.bf16.msra.mxu0 0
        %1291 = vmatprep.mubr.bf16.mxu0 0
        %1292 = vmatmul.mubr.bf16.gmra.mrb[0].mxu0 %v1249
        %v1293 = vpop.f32.mrb[0].mxu0
        %v1294 = vadd.f32 0.0, %v1293
        %v1295 = vpop.f32.mrb[0].mxu0
        %v1296 = vpop.f32.mrb[0].mxu0
        %v1297 = vpop.f32.mrb[0].mxu0
        %1298 = vdwg.mxu0
        %1299 = vst.msk [vmem:[#allocation2] sm:$0xff] %vm1168, %v1294
        %s1300 = scalar_lea.vmem %s7, 16
        %v1301 = vld [vmem:[%s1300] sm:$0xf]
        %v1302 = vld [vmem:[%s1300 + $0x4] sm:$0xf]
        %v1303 = vld [vmem:[%s1300 + $0x8] sm:$0xf]
        %v1304 = vld [vmem:[%s1300 + $0xc] sm:$0xf]
        %s1305 = scalar_lea.vmem %s8, 1
        %v1306 = vld [vmem:[%s1305] sm:$0x1]
        %v1308 = vlaneseq
        %v1309 = vshrl.u32 %v1308, 7
        %v1310 = vsub.s32 0, %v1309
        %v1311 = vrot.slane %v1306, %v1310
        %v1317 = vunpack.c.l.b16 %v1301
        %v1318 = vunpack.c.l.b16 %v1302
        %v1319 = vunpack.c.l.b16 %v1303
        %v1320 = vunpack.c.l.b16 %v1304
        %v1321 = vpack.c.b16 %v1318, %v1317
        %v1322 = vpack.c.b16 %v1320, %v1319
        %1325 = vmatprep.subr.bf16.mxu0 0
        %1326 = vmatpush1.bf16.msra.mxu0 %v1321
        %1327 = vmatprep.subr.bf16.mxu0 0
        %1328 = vmatpush1.bf16.msra.mxu0 %v1322
        %1329 = vmatprep.subr.bf16.mxu0 0
        %1330 = vmatpush1.bf16.msra.mxu0 0
        %1331 = vmatprep.subr.bf16.mxu0 0
        %1332 = vmatpush1.bf16.msra.mxu0 0
        %1333 = vmatprep.subr.bf16.mxu0 0
        %1334 = vmatpush1.bf16.msra.mxu0 0
        %1335 = vmatprep.subr.bf16.mxu0 0
        %1336 = vmatpush1.bf16.msra.mxu0 0
        %1337 = vmatprep.subr.bf16.mxu0 0
        %1338 = vmatpush1.bf16.msra.mxu0 0
        %1339 = vmatprep.subr.bf16.mxu0 0
        %1340 = vmatpush1.bf16.msra.mxu0 0
        %1341 = vmatprep.subr.bf16.mxu0 0
        %1342 = vmatpush1.bf16.msra.mxu0 0
        %1343 = vmatprep.subr.bf16.mxu0 0
        %1344 = vmatpush1.bf16.msra.mxu0 0
        %1345 = vmatprep.subr.bf16.mxu0 0
        %1346 = vmatpush1.bf16.msra.mxu0 0
        %1347 = vmatprep.subr.bf16.mxu0 0
        %1348 = vmatpush1.bf16.msra.mxu0 0
        %1349 = vmatprep.subr.bf16.mxu0 0
        %1350 = vmatpush1.bf16.msra.mxu0 0
        %1351 = vmatprep.subr.bf16.mxu0 0
        %1352 = vmatpush1.bf16.msra.mxu0 0
        %1353 = vmatprep.subr.bf16.mxu0 0
        %1354 = vmatpush1.bf16.msra.mxu0 0
        %1355 = vmatprep.subr.bf16.mxu0 0
        %1356 = vmatpush1.bf16.msra.mxu0 0
        %1357 = vmatprep.mubr.bf16.mxu0 0
        %1358 = vmatmul.mubr.bf16.gmra.mrb[0].mxu0 %v868
        %v1359 = vpop.f32.mrb[0].mxu0
        %v1360 = vadd.f32 %v1311, %v1359
        %v1361 = vpop.f32.mrb[0].mxu0
        %v1362 = vpop.f32.mrb[0].mxu0
        %v1363 = vpop.f32.mrb[0].mxu0
        %1364 = vdwg.mxu0
        %s1365 = scalar_lea.vmem %s9, 16
        %v1366 = vld [vmem:[%s1365] sm:$0xf]
        %v1367 = vld [vmem:[%s1365 + $0x4] sm:$0xf]
        %v1368 = vld [vmem:[%s1365 + $0x8] sm:$0xf]
        %v1369 = vld [vmem:[%s1365 + $0xc] sm:$0xf]
        %s1370 = scalar_lea.vmem %s10, 1
        %v1371 = vld [vmem:[%s1370] sm:$0x1]
        %v1373 = vlaneseq
        %v1374 = vshrl.u32 %v1373, 7
        %v1375 = vsub.s32 0, %v1374
        %v1376 = vrot.slane %v1371, %v1375
        %v1382 = vunpack.c.l.b16 %v1366
        %v1383 = vunpack.c.l.b16 %v1367
        %v1384 = vunpack.c.l.b16 %v1368
        %v1385 = vunpack.c.l.b16 %v1369
        %v1386 = vpack.c.b16 %v1383, %v1382
        %v1387 = vpack.c.b16 %v1385, %v1384
        %1390 = vmatprep.subr.bf16.mxu0 0
        %1391 = vmatpush1.bf16.msra.mxu0 %v1386
        %1392 = vmatprep.subr.bf16.mxu0 0
        %1393 = vmatpush1.bf16.msra.mxu0 %v1387
        %1394 = vmatprep.subr.bf16.mxu0 0
        %1395 = vmatpush1.bf16.msra.mxu0 0
        %1396 = vmatprep.subr.bf16.mxu0 0
        %1397 = vmatpush1.bf16.msra.mxu0 0
        %1398 = vmatprep.subr.bf16.mxu0 0
        %1399 = vmatpush1.bf16.msra.mxu0 0
        %1400 = vmatprep.subr.bf16.mxu0 0
        %1401 = vmatpush1.bf16.msra.mxu0 0
        %1402 = vmatprep.subr.bf16.mxu0 0
        %1403 = vmatpush1.bf16.msra.mxu0 0
        %1404 = vmatprep.subr.bf16.mxu0 0
        %1405 = vmatpush1.bf16.msra.mxu0 0
        %1406 = vmatprep.subr.bf16.mxu0 0
        %1407 = vmatpush1.bf16.msra.mxu0 0
        %1408 = vmatprep.subr.bf16.mxu0 0
        %1409 = vmatpush1.bf16.msra.mxu0 0
        %1410 = vmatprep.subr.bf16.mxu0 0
        %1411 = vmatpush1.bf16.msra.mxu0 0
        %1412 = vmatprep.subr.bf16.mxu0 0
        %1413 = vmatpush1.bf16.msra.mxu0 0
        %1414 = vmatprep.subr.bf16.mxu0 0
        %1415 = vmatpush1.bf16.msra.mxu0 0
        %1416 = vmatprep.subr.bf16.mxu0 0
        %1417 = vmatpush1.bf16.msra.mxu0 0
        %1418 = vmatprep.subr.bf16.mxu0 0
        %1419 = vmatpush1.bf16.msra.mxu0 0
        %1420 = vmatprep.subr.bf16.mxu0 0
        %1421 = vmatpush1.bf16.msra.mxu0 0
        %1422 = vmatprep.mubr.bf16.mxu0 0
        %1423 = vmatmul.mubr.bf16.gmra.mrb[0].mxu0 %v934
        %v1424 = vpop.f32.mrb[0].mxu0
        %v1425 = vadd.f32 %v1376, %v1424
        %v1426 = vpop.f32.mrb[0].mxu0
        %v1427 = vpop.f32.mrb[0].mxu0
        %v1428 = vadd.f32 %v1376, %v1427
        %v1429 = vpop.f32.mrb[0].mxu0
        %1430 = vmatprep.mubr.bf16.mxu0 0
        %1431 = vmatmul.mubr.bf16.gmra.mrb[0].mxu0 %v937
        %v1432 = vpop.f32.mrb[0].mxu0
        %v1433 = vadd.f32 %v1376, %v1432
        %v1434 = vpop.f32.mrb[0].mxu0
        %v1435 = vpop.f32.mrb[0].mxu0
        %v1436 = vadd.f32 %v1376, %v1435
        %v1437 = vpop.f32.mrb[0].mxu0
        %1438 = vmatprep.mubr.bf16.mxu0 0
        %1439 = vmatmul.mubr.bf16.gmra.mrb[0].mxu0 %v937
        %v1440 = vpop.f32.mrb[0].mxu0
        %v1441 = vadd.f32 %v1376, %v1440
        %v1442 = vpop.f32.mrb[0].mxu0
        %v1443 = vpop.f32.mrb[0].mxu0
        %v1444 = vadd.f32 %v1376, %v1443
        %v1445 = vpop.f32.mrb[0].mxu0
        %1446 = vmatprep.mubr.bf16.mxu0 0
        %1447 = vmatmul.mubr.bf16.gmra.mrb[0].mxu0 %v937
        %v1448 = vpop.f32.mrb[0].mxu0
        %v1449 = vadd.f32 %v1376, %v1448
        %v1450 = vpop.f32.mrb[0].mxu0
        %v1451 = vpop.f32.mrb[0].mxu0
        %v1452 = vadd.f32 %v1376, %v1451
        %v1453 = vpop.f32.mrb[0].mxu0
        %1454 = vmatprep.mubr.bf16.mxu0 0
        %1455 = vmatmul.mubr.bf16.gmra.mrb[0].mxu0 %v937
        %v1456 = vpop.f32.mrb[0].mxu0
        %v1457 = vadd.f32 %v1376, %v1456
        %v1458 = vpop.f32.mrb[0].mxu0
        %v1459 = vpop.f32.mrb[0].mxu0
        %v1460 = vadd.f32 %v1376, %v1459
        %v1461 = vpop.f32.mrb[0].mxu0
        %1462 = vmatprep.mubr.bf16.mxu0 0
        %1463 = vmatmul.mubr.bf16.gmra.mrb[0].mxu0 %v937
        %v1464 = vpop.f32.mrb[0].mxu0
        %v1465 = vadd.f32 %v1376, %v1464
        %v1466 = vpop.f32.mrb[0].mxu0
        %v1467 = vpop.f32.mrb[0].mxu0
        %v1468 = vadd.f32 %v1376, %v1467
        %v1469 = vpop.f32.mrb[0].mxu0
        %1470 = vmatprep.mubr.bf16.mxu0 0
        %1471 = vmatmul.mubr.bf16.gmra.mrb[0].mxu0 %v937
        %v1472 = vpop.f32.mrb[0].mxu0
        %v1473 = vadd.f32 %v1376, %v1472
        %v1474 = vpop.f32.mrb[0].mxu0
        %v1475 = vpop.f32.mrb[0].mxu0
        %v1476 = vadd.f32 %v1376, %v1475
        %v1477 = vpop.f32.mrb[0].mxu0
        %1478 = vmatprep.mubr.bf16.mxu0 0
        %1479 = vmatmul.mubr.bf16.gmra.mrb[0].mxu0 %v937
        %v1480 = vpop.f32.mrb[0].mxu0
        %v1481 = vadd.f32 %v1376, %v1480
        %v1482 = vpop.f32.mrb[0].mxu0
        %v1483 = vpop.f32.mrb[0].mxu0
        %v1484 = vadd.f32 %v1376, %v1483
        %v1485 = vpop.f32.mrb[0].mxu0
        %1486 = vdwg.mxu0
        %s1487 = scalar_lea.vmem %s11, 16
        %v1488 = vld [vmem:[%s1487] sm:$0xf]
        %v1489 = vld [vmem:[%s1487 + $0x4] sm:$0xf]
        %v1490 = vld [vmem:[%s1487 + $0x8] sm:$0xf]
        %v1491 = vld [vmem:[%s1487 + $0xc] sm:$0xf]
        %s1492 = scalar_lea.vmem %s12, 1
        %v1493 = vld [vmem:[%s1492] sm:$0x1]
        %v1495 = vlaneseq
        %v1496 = vshrl.u32 %v1495, 7
        %v1497 = vsub.s32 0, %v1496
        %v1498 = vrot.slane %v1493, %v1497
        %v1504 = vunpack.c.l.b16 %v1488
        %v1505 = vunpack.c.l.b16 %v1489
        %v1506 = vunpack.c.l.b16 %v1490
        %v1507 = vunpack.c.l.b16 %v1491
        %v1508 = vpack.c.b16 %v1505, %v1504
        %v1509 = vpack.c.b16 %v1507, %v1506
        %1512 = vmatprep.subr.bf16.mxu0 0
        %1513 = vmatpush1.bf16.msra.mxu0 %v1508
        %1514 = vmatprep.subr.bf16.mxu0 0
        %1515 = vmatpush1.bf16.msra.mxu0 %v1509
        %1516 = vmatprep.subr.bf16.mxu0 0
        %1517 = vmatpush1.bf16.msra.mxu0 0
        %1518 = vmatprep.subr.bf16.mxu0 0
        %1519 = vmatpush1.bf16.msra.mxu0 0
        %1520 = vmatprep.subr.bf16.mxu0 0
        %1521 = vmatpush1.bf16.msra.mxu0 0
        %1522 = vmatprep.subr.bf16.mxu0 0
        %1523 = vmatpush1.bf16.msra.mxu0 0
        %1524 = vmatprep.subr.bf16.mxu0 0
        %1525 = vmatpush1.bf16.msra.mxu0 0
        %1526 = vmatprep.subr.bf16.mxu0 0
        %1527 = vmatpush1.bf16.msra.mxu0 0
        %1528 = vmatprep.subr.bf16.mxu0 0
        %1529 = vmatpush1.bf16.msra.mxu0 0
        %1530 = vmatprep.subr.bf16.mxu0 0
        %1531 = vmatpush1.bf16.msra.mxu0 0
        %1532 = vmatprep.subr.bf16.mxu0 0
        %1533 = vmatpush1.bf16.msra.mxu0 0
        %1534 = vmatprep.subr.bf16.mxu0 0
        %1535 = vmatpush1.bf16.msra.mxu0 0
        %1536 = vmatprep.subr.bf16.mxu0 0
        %1537 = vmatpush1.bf16.msra.mxu0 0
        %1538 = vmatprep.subr.bf16.mxu0 0
        %1539 = vmatpush1.bf16.msra.mxu0 0
        %1540 = vmatprep.subr.bf16.mxu0 0
        %1541 = vmatpush1.bf16.msra.mxu0 0
        %1542 = vmatprep.subr.bf16.mxu0 0
        %1543 = vmatpush1.bf16.msra.mxu0 0
        %1544 = vmatprep.mubr.bf16.mxu0 0
        %1545 = vmatmul.mubr.bf16.gmra.mrb[0].mxu0 %v1060
        %v1546 = vpop.f32.mrb[0].mxu0
        %v1547 = vadd.f32 %v1498, %v1546
        %v1548 = vpop.f32.mrb[0].mxu0
        %v1549 = vpop.f32.mrb[0].mxu0
        %v1550 = vadd.f32 %v1498, %v1549
        %v1551 = vpop.f32.mrb[0].mxu0
        %1552 = vmatprep.mubr.bf16.mxu0 0
        %1553 = vmatmul.mubr.bf16.gmra.mrb[0].mxu0 %v937
        %v1554 = vpop.f32.mrb[0].mxu0
        %v1555 = vadd.f32 %v1498, %v1554
        %v1556 = vpop.f32.mrb[0].mxu0
        %v1557 = vpop.f32.mrb[0].mxu0
        %v1558 = vadd.f32 %v1498, %v1557
        %v1559 = vpop.f32.mrb[0].mxu0
        %1560 = vmatprep.mubr.bf16.mxu0 0
        %1561 = vmatmul.mubr.bf16.gmra.mrb[0].mxu0 %v937
        %v1562 = vpop.f32.mrb[0].mxu0
        %v1563 = vadd.f32 %v1498, %v1562
        %v1564 = vpop.f32.mrb[0].mxu0
        %v1565 = vpop.f32.mrb[0].mxu0
        %v1566 = vadd.f32 %v1498, %v1565
        %v1567 = vpop.f32.mrb[0].mxu0
        %1568 = vmatprep.mubr.bf16.mxu0 0
        %1569 = vmatmul.mubr.bf16.gmra.mrb[0].mxu0 %v937
        %v1570 = vpop.f32.mrb[0].mxu0
        %v1571 = vadd.f32 %v1498, %v1570
        %v1572 = vpop.f32.mrb[0].mxu0
        %v1573 = vpop.f32.mrb[0].mxu0
        %v1574 = vadd.f32 %v1498, %v1573
        %v1575 = vpop.f32.mrb[0].mxu0
        %1576 = vmatprep.mubr.bf16.mxu0 0
        %1577 = vmatmul.mubr.bf16.gmra.mrb[0].mxu0 %v937
        %v1578 = vpop.f32.mrb[0].mxu0
        %v1579 = vadd.f32 %v1498, %v1578
        %v1580 = vpop.f32.mrb[0].mxu0
        %v1581 = vpop.f32.mrb[0].mxu0
        %v1582 = vadd.f32 %v1498, %v1581
        %v1583 = vpop.f32.mrb[0].mxu0
        %1584 = vmatprep.mubr.bf16.mxu0 0
        %1585 = vmatmul.mubr.bf16.gmra.mrb[0].mxu0 %v937
        %v1586 = vpop.f32.mrb[0].mxu0
        %v1587 = vadd.f32 %v1498, %v1586
        %v1588 = vpop.f32.mrb[0].mxu0
        %v1589 = vpop.f32.mrb[0].mxu0
        %v1590 = vadd.f32 %v1498, %v1589
        %v1591 = vpop.f32.mrb[0].mxu0
        %1592 = vmatprep.mubr.bf16.mxu0 0
        %1593 = vmatmul.mubr.bf16.gmra.mrb[0].mxu0 %v937
        %v1594 = vpop.f32.mrb[0].mxu0
        %v1595 = vadd.f32 %v1498, %v1594
        %v1596 = vpop.f32.mrb[0].mxu0
        %v1597 = vpop.f32.mrb[0].mxu0
        %v1598 = vadd.f32 %v1498, %v1597
        %v1599 = vpop.f32.mrb[0].mxu0
        %1600 = vmatprep.mubr.bf16.mxu0 0
        %1601 = vmatmul.mubr.bf16.gmra.mrb[0].mxu0 %v937
        %v1602 = vpop.f32.mrb[0].mxu0
        %v1603 = vadd.f32 %v1498, %v1602
        %v1604 = vpop.f32.mrb[0].mxu0
        %v1605 = vpop.f32.mrb[0].mxu0
        %v1606 = vadd.f32 %v1498, %v1605
        %v1607 = vpop.f32.mrb[0].mxu0
        %1608 = vdwg.mxu0
        %v1609 = vpack.c.bf16 %v1360, %v1360
        %v1610 = vpack.c.bf16 %v1428, %v1425
        %v1611 = vpack.c.bf16 %v1436, %v1433
        %v1612 = vpack.c.bf16 %v1444, %v1441
        %v1613 = vpack.c.bf16 %v1452, %v1449
        %v1614 = vpack.c.bf16 %v1460, %v1457
        %v1615 = vpack.c.bf16 %v1468, %v1465
        %v1616 = vpack.c.bf16 %v1476, %v1473
        %v1617 = vpack.c.bf16 %v1484, %v1481
        %v1619 = vsel %vm1168, %v1609, 0
        %v1622 = vsel %vm1168, %v1610, 0
        %v1625 = vsel %vm1168, %v1611, 0
        %v1628 = vsel %vm1168, %v1612, 0
        %v1631 = vsel %vm1168, %v1613, 0
        %v1634 = vsel %vm1168, %v1614, 0
        %v1637 = vsel %vm1168, %v1615, 0
        %v1640 = vsel %vm1168, %v1616, 0
        %v1643 = vsel %vm1168, %v1617, 0
        %1645 = vmatprep.subr.bf16.mxu0 0
        %1646 = vmatpush1.bf16.xpose.msra.mxu0 %v1622
        %1647 = vmatprep.subr.bf16.mxu0 0
        %1648 = vmatpush1.bf16.xpose.msra.mxu0 %v1625
        %1649 = vmatprep.subr.bf16.mxu0 0
        %1650 = vmatpush1.bf16.xpose.msra.mxu0 %v1628
        %1651 = vmatprep.subr.bf16.mxu0 0
        %1652 = vmatpush1.bf16.xpose.msra.mxu0 %v1631
        %1653 = vmatprep.subr.bf16.mxu0 0
        %1654 = vmatpush1.bf16.xpose.msra.mxu0 %v1634
        %1655 = vmatprep.subr.bf16.mxu0 0
        %1656 = vmatpush1.bf16.xpose.msra.mxu0 %v1637
        %1657 = vmatprep.subr.bf16.mxu0 0
        %1658 = vmatpush1.bf16.xpose.msra.mxu0 %v1640
        %1659 = vmatprep.subr.bf16.mxu0 0
        %1660 = vmatpush1.bf16.xpose.msra.mxu0 %v1643
        %1661 = vmatprep.subr.bf16.mxu0 0
        %1662 = vmatpush1.bf16.xpose.msra.mxu0 0
        %1663 = vmatprep.subr.bf16.mxu0 0
        %1664 = vmatpush1.bf16.xpose.msra.mxu0 0
        %1665 = vmatprep.subr.bf16.mxu0 0
        %1666 = vmatpush1.bf16.xpose.msra.mxu0 0
        %1667 = vmatprep.subr.bf16.mxu0 0
        %1668 = vmatpush1.bf16.xpose.msra.mxu0 0
        %1669 = vmatprep.subr.bf16.mxu0 0
        %1670 = vmatpush1.bf16.xpose.msra.mxu0 0
        %1671 = vmatprep.subr.bf16.mxu0 0
        %1672 = vmatpush1.bf16.xpose.msra.mxu0 0
        %1673 = vmatprep.subr.bf16.mxu0 0
        %1674 = vmatpush1.bf16.xpose.msra.mxu0 0
        %1675 = vmatprep.subr.bf16.mxu0 0
        %1676 = vmatpush1.bf16.xpose.msra.mxu0 0
        %1677 = vmatprep.mubr.bf16.mxu0 0
        %1678 = vmatmul.mubr.bf16.gmra.mrb[0].mxu0 %v1619
        %v1679 = vpop.f32.mrb[0].mxu0
        %v1680 = vadd.f32 0.0, %v1679
        %v1681 = vpop.f32.mrb[0].mxu0
        %v1682 = vpop.f32.mrb[0].mxu0
        %v1683 = vpop.f32.mrb[0].mxu0
        %1684 = vdwg.mxu0
        %v1685 = vsel %vm1238, %v1680, -1e+30
        %1686 = vmax.xlane.f32.xlu0 %v1685
        %v1687 = vpop.xlane.xlu0 %1686
        %v1688 = vsub.f32 %v1685, %v1687
        %v1689 = vmul.f32 %v1688, 1.442695
        %v1690 = vpow.pop %v1689
        %1691 = vadd.xlane.f32.xlu0 %v1690
        %v1692 = vpop.xlane.xlu0 %1691
        %v1693 = vrcp.pop %v1692
        %v1694 = vmul.f32 %v1690, %v1693
        %v1695 = vpack.c.bf16 %v1694, %v1694
        %s1696 = scalar_lea.vmem %s577, 4 [#allocation5]
        %1697 = vst [vmem:[%s1696] sm:$0xf] %v1695
        %v1698 = vpack.c.bf16 %v1550, %v1547
        %v1699 = vpack.c.bf16 %v1558, %v1555
        %v1700 = vpack.c.bf16 %v1566, %v1563
        %v1701 = vpack.c.bf16 %v1574, %v1571
        %v1702 = vpack.c.bf16 %v1582, %v1579
        %v1703 = vpack.c.bf16 %v1590, %v1587
        %v1704 = vpack.c.bf16 %v1598, %v1595
        %v1705 = vpack.c.bf16 %v1606, %v1603
        %1706 = vmatprep.subr.bf16.mxu0 0
        %1707 = vmatpush1.bf16.msra.mxu0 %v1698
        %1708 = vmatprep.subr.bf16.mxu0 0
        %1709 = vmatpush1.bf16.msra.mxu0 %v1699
        %1710 = vmatprep.subr.bf16.mxu0 0
        %1711 = vmatpush1.bf16.msra.mxu0 %v1700
        %1712 = vmatprep.subr.bf16.mxu0 0
        %1713 = vmatpush1.bf16.msra.mxu0 %v1701
        %1714 = vmatprep.subr.bf16.mxu0 0
        %1715 = vmatpush1.bf16.msra.mxu0 %v1702
        %1716 = vmatprep.subr.bf16.mxu0 0
        %1717 = vmatpush1.bf16.msra.mxu0 %v1703
        %1718 = vmatprep.subr.bf16.mxu0 0
        %1719 = vmatpush1.bf16.msra.mxu0 %v1704
        %1720 = vmatprep.subr.bf16.mxu0 0
        %1721 = vmatpush1.bf16.msra.mxu0 %v1705
        %1722 = vmatprep.subr.bf16.mxu0 0
        %1723 = vmatpush1.bf16.msra.mxu0 0
        %1724 = vmatprep.subr.bf16.mxu0 0
        %1725 = vmatpush1.bf16.msra.mxu0 0
        %1726 = vmatprep.subr.bf16.mxu0 0
        %1727 = vmatpush1.bf16.msra.mxu0 0
        %1728 = vmatprep.subr.bf16.mxu0 0
        %1729 = vmatpush1.bf16.msra.mxu0 0
        %1730 = vmatprep.subr.bf16.mxu0 0
        %1731 = vmatpush1.bf16.msra.mxu0 0
        %1732 = vmatprep.subr.bf16.mxu0 0
        %1733 = vmatpush1.bf16.msra.mxu0 0
        %1734 = vmatprep.subr.bf16.mxu0 0
        %1735 = vmatpush1.bf16.msra.mxu0 0
        %1736 = vmatprep.subr.bf16.mxu0 0
        %1737 = vmatpush1.bf16.msra.mxu0 0
        %1738 = vmatprep.mubr.bf16.mxu0 0
        %1739 = vmatmul.mubr.bf16.gmra.mrb[0].mxu0 %v1695
        %v1740 = vpop.f32.mrb[0].mxu0
        %v1741 = vadd.f32 0.0, %v1740
        %v1742 = vpop.f32.mrb[0].mxu0
        %v1743 = vpop.f32.mrb[0].mxu0
        %v1744 = vpop.f32.mrb[0].mxu0
        %1745 = vdwg.mxu0
        %1747 = vrot.lane.b32.xlu0 %v1741, 8
        %v1748 = vpop.permute.xlu0 %1747
        %vm1750 = vcmask 130112
        %1751 = vst.msk [vmem:[#allocation2] sm:$0xff] %vm1750, %v1748
        %s1752 = scalar_lea.vmem %s7, 32
        %v1753 = vld [vmem:[%s1752] sm:$0xf]
        %v1754 = vld [vmem:[%s1752 + $0x4] sm:$0xf]
        %v1755 = vld [vmem:[%s1752 + $0x8] sm:$0xf]
        %v1756 = vld [vmem:[%s1752 + $0xc] sm:$0xf]
        %s1757 = scalar_lea.vmem %s8, 2
        %v1758 = vld [vmem:[%s1757] sm:$0x1]
        %v1760 = vlaneseq
        %v1761 = vshrl.u32 %v1760, 7
        %v1762 = vsub.s32 0, %v1761
        %v1763 = vrot.slane %v1758, %v1762
        %v1769 = vunpack.c.l.b16 %v1753
        %v1770 = vunpack.c.l.b16 %v1754
        %v1771 = vunpack.c.l.b16 %v1755
        %v1772 = vunpack.c.l.b16 %v1756
        %v1773 = vpack.c.b16 %v1770, %v1769
        %v1774 = vpack.c.b16 %v1772, %v1771
        %1777 = vmatprep.subr.bf16.mxu0 0
        %1778 = vmatpush1.bf16.msra.mxu0 %v1773
        %1779 = vmatprep.subr.bf16.mxu0 0
        %1780 = vmatpush1.bf16.msra.mxu0 %v1774
        %1781 = vmatprep.subr.bf16.mxu0 0
        %1782 = vmatpush1.bf16.msra.mxu0 0
        %1783 = vmatprep.subr.bf16.mxu0 0
        %1784 = vmatpush1.bf16.msra.mxu0 0
        %1785 = vmatprep.subr.bf16.mxu0 0
        %1786 = vmatpush1.bf16.msra.mxu0 0
        %1787 = vmatprep.subr.bf16.mxu0 0
        %1788 = vmatpush1.bf16.msra.mxu0 0
        %1789 = vmatprep.subr.bf16.mxu0 0
        %1790 = vmatpush1.bf16.msra.mxu0 0
        %1791 = vmatprep.subr.bf16.mxu0 0
        %1792 = vmatpush1.bf16.msra.mxu0 0
        %1793 = vmatprep.subr.bf16.mxu0 0
        %1794 = vmatpush1.bf16.msra.mxu0 0
        %1795 = vmatprep.subr.bf16.mxu0 0
        %1796 = vmatpush1.bf16.msra.mxu0 0
        %1797 = vmatprep.subr.bf16.mxu0 0
        %1798 = vmatpush1.bf16.msra.mxu0 0
        %1799 = vmatprep.subr.bf16.mxu0 0
        %1800 = vmatpush1.bf16.msra.mxu0 0
        %1801 = vmatprep.subr.bf16.mxu0 0
        %1802 = vmatpush1.bf16.msra.mxu0 0
        %1803 = vmatprep.subr.bf16.mxu0 0
        %1804 = vmatpush1.bf16.msra.mxu0 0
        %1805 = vmatprep.subr.bf16.mxu0 0
        %1806 = vmatpush1.bf16.msra.mxu0 0
        %1807 = vmatprep.subr.bf16.mxu0 0
        %1808 = vmatpush1.bf16.msra.mxu0 0
        %1809 = vmatprep.mubr.bf16.mxu0 0
        %1810 = vmatmul.mubr.bf16.gmra.mrb[0].mxu0 %v868
        %v1811 = vpop.f32.mrb[0].mxu0
        %v1812 = vadd.f32 %v1763, %v1811
        %v1813 = vpop.f32.mrb[0].mxu0
        %v1814 = vpop.f32.mrb[0].mxu0
        %v1815 = vpop.f32.mrb[0].mxu0
        %1816 = vdwg.mxu0
        %s1817 = scalar_lea.vmem %s9, 32
        %v1818 = vld [vmem:[%s1817] sm:$0xf]
        %v1819 = vld [vmem:[%s1817 + $0x4] sm:$0xf]
        %v1820 = vld [vmem:[%s1817 + $0x8] sm:$0xf]
        %v1821 = vld [vmem:[%s1817 + $0xc] sm:$0xf]
        %s1822 = scalar_lea.vmem %s10, 2
        %v1823 = vld [vmem:[%s1822] sm:$0x1]
        %v1825 = vlaneseq
        %v1826 = vshrl.u32 %v1825, 7
        %v1827 = vsub.s32 0, %v1826
        %v1828 = vrot.slane %v1823, %v1827
        %v1834 = vunpack.c.l.b16 %v1818
        %v1835 = vunpack.c.l.b16 %v1819
        %v1836 = vunpack.c.l.b16 %v1820
        %v1837 = vunpack.c.l.b16 %v1821
        %v1838 = vpack.c.b16 %v1835, %v1834
        %v1839 = vpack.c.b16 %v1837, %v1836
        %1842 = vmatprep.subr.bf16.mxu0 0
        %1843 = vmatpush1.bf16.msra.mxu0 %v1838
        %1844 = vmatprep.subr.bf16.mxu0 0
        %1845 = vmatpush1.bf16.msra.mxu0 %v1839
        %1846 = vmatprep.subr.bf16.mxu0 0
        %1847 = vmatpush1.bf16.msra.mxu0 0
        %1848 = vmatprep.subr.bf16.mxu0 0
        %1849 = vmatpush1.bf16.msra.mxu0 0
        %1850 = vmatprep.subr.bf16.mxu0 0
        %1851 = vmatpush1.bf16.msra.mxu0 0
        %1852 = vmatprep.subr.bf16.mxu0 0
        %1853 = vmatpush1.bf16.msra.mxu0 0
        %1854 = vmatprep.subr.bf16.mxu0 0
        %1855 = vmatpush1.bf16.msra.mxu0 0
        %1856 = vmatprep.subr.bf16.mxu0 0
        %1857 = vmatpush1.bf16.msra.mxu0 0
        %1858 = vmatprep.subr.bf16.mxu0 0
        %1859 = vmatpush1.bf16.msra.mxu0 0
        %1860 = vmatprep.subr.bf16.mxu0 0
        %1861 = vmatpush1.bf16.msra.mxu0 0
        %1862 = vmatprep.subr.bf16.mxu0 0
        %1863 = vmatpush1.bf16.msra.mxu0 0
        %1864 = vmatprep.subr.bf16.mxu0 0
        %1865 = vmatpush1.bf16.msra.mxu0 0
        %1866 = vmatprep.subr.bf16.mxu0 0
        %1867 = vmatpush1.bf16.msra.mxu0 0
        %1868 = vmatprep.subr.bf16.mxu0 0
        %1869 = vmatpush1.bf16.msra.mxu0 0
        %1870 = vmatprep.subr.bf16.mxu0 0
        %1871 = vmatpush1.bf16.msra.mxu0 0
        %1872 = vmatprep.subr.bf16.mxu0 0
        %1873 = vmatpush1.bf16.msra.mxu0 0
        %1874 = vmatprep.mubr.bf16.mxu0 0
        %1875 = vmatmul.mubr.bf16.gmra.mrb[0].mxu0 %v934
        %v1876 = vpop.f32.mrb[0].mxu0
        %v1877 = vadd.f32 %v1828, %v1876
        %v1878 = vpop.f32.mrb[0].mxu0
        %v1879 = vpop.f32.mrb[0].mxu0
        %v1880 = vadd.f32 %v1828, %v1879
        %v1881 = vpop.f32.mrb[0].mxu0
        %1882 = vmatprep.mubr.bf16.mxu0 0
        %1883 = vmatmul.mubr.bf16.gmra.mrb[0].mxu0 %v937
        %v1884 = vpop.f32.mrb[0].mxu0
        %v1885 = vadd.f32 %v1828, %v1884
        %v1886 = vpop.f32.mrb[0].mxu0
        %v1887 = vpop.f32.mrb[0].mxu0
        %v1888 = vadd.f32 %v1828, %v1887
        %v1889 = vpop.f32.mrb[0].mxu0
        %1890 = vmatprep.mubr.bf16.mxu0 0
        %1891 = vmatmul.mubr.bf16.gmra.mrb[0].mxu0 %v937
        %v1892 = vpop.f32.mrb[0].mxu0
        %v1893 = vadd.f32 %v1828, %v1892
        %v1894 = vpop.f32.mrb[0].mxu0
        %v1895 = vpop.f32.mrb[0].mxu0
        %v1896 = vadd.f32 %v1828, %v1895
        %v1897 = vpop.f32.mrb[0].mxu0
        %1898 = vmatprep.mubr.bf16.mxu0 0
        %1899 = vmatmul.mubr.bf16.gmra.mrb[0].mxu0 %v937
        %v1900 = vpop.f32.mrb[0].mxu0
        %v1901 = vadd.f32 %v1828, %v1900
        %v1902 = vpop.f32.mrb[0].mxu0
        %v1903 = vpop.f32.mrb[0].mxu0
        %v1904 = vadd.f32 %v1828, %v1903
        %v1905 = vpop.f32.mrb[0].mxu0
        %1906 = vmatprep.mubr.bf16.mxu0 0
        %1907 = vmatmul.mubr.bf16.gmra.mrb[0].mxu0 %v937
        %v1908 = vpop.f32.mrb[0].mxu0
        %v1909 = vadd.f32 %v1828, %v1908
        %v1910 = vpop.f32.mrb[0].mxu0
        %v1911 = vpop.f32.mrb[0].mxu0
        %v1912 = vadd.f32 %v1828, %v1911
        %v1913 = vpop.f32.mrb[0].mxu0
        %1914 = vmatprep.mubr.bf16.mxu0 0
        %1915 = vmatmul.mubr.bf16.gmra.mrb[0].mxu0 %v937
        %v1916 = vpop.f32.mrb[0].mxu0
        %v1917 = vadd.f32 %v1828, %v1916
        %v1918 = vpop.f32.mrb[0].mxu0
        %v1919 = vpop.f32.mrb[0].mxu0
        %v1920 = vadd.f32 %v1828, %v1919
        %v1921 = vpop.f32.mrb[0].mxu0
        %1922 = vmatprep.mubr.bf16.mxu0 0
        %1923 = vmatmul.mubr.bf16.gmra.mrb[0].mxu0 %v937
        %v1924 = vpop.f32.mrb[0].mxu0
        %v1925 = vadd.f32 %v1828, %v1924
        %v1926 = vpop.f32.mrb[0].mxu0
        %v1927 = vpop.f32.mrb[0].mxu0
        %v1928 = vadd.f32 %v1828, %v1927
        %v1929 = vpop.f32.mrb[0].mxu0
        %1930 = vmatprep.mubr.bf16.mxu0 0
        %1931 = vmatmul.mubr.bf16.gmra.mrb[0].mxu0 %v937
        %v1932 = vpop.f32.mrb[0].mxu0
        %v1933 = vadd.f32 %v1828, %v1932
        %v1934 = vpop.f32.mrb[0].mxu0
        %v1935 = vpop.f32.mrb[0].mxu0
        %v1936 = vadd.f32 %v1828, %v1935
        %v1937 = vpop.f32.mrb[0].mxu0
        %1938 = vdwg.mxu0
        %s1939 = scalar_lea.vmem %s11, 32
        %v1940 = vld [vmem:[%s1939] sm:$0xf]
        %v1941 = vld [vmem:[%s1939 + $0x4] sm:$0xf]
        %v1942 = vld [vmem:[%s1939 + $0x8] sm:$0xf]
        %v1943 = vld [vmem:[%s1939 + $0xc] sm:$0xf]
        %s1944 = scalar_lea.vmem %s12, 2
        %v1945 = vld [vmem:[%s1944] sm:$0x1]
        %v1947 = vlaneseq
        %v1948 = vshrl.u32 %v1947, 7
        %v1949 = vsub.s32 0, %v1948
        %v1950 = vrot.slane %v1945, %v1949
        %v1956 = vunpack.c.l.b16 %v1940
        %v1957 = vunpack.c.l.b16 %v1941
        %v1958 = vunpack.c.l.b16 %v1942
        %v1959 = vunpack.c.l.b16 %v1943
        %v1960 = vpack.c.b16 %v1957, %v1956
        %v1961 = vpack.c.b16 %v1959, %v1958
        %1964 = vmatprep.subr.bf16.mxu0 0
        %1965 = vmatpush1.bf16.msra.mxu0 %v1960
        %1966 = vmatprep.subr.bf16.mxu0 0
        %1967 = vmatpush1.bf16.msra.mxu0 %v1961
        %1968 = vmatprep.subr.bf16.mxu0 0
        %1969 = vmatpush1.bf16.msra.mxu0 0
        %1970 = vmatprep.subr.bf16.mxu0 0
        %1971 = vmatpush1.bf16.msra.mxu0 0
        %1972 = vmatprep.subr.bf16.mxu0 0
        %1973 = vmatpush1.bf16.msra.mxu0 0
        %1974 = vmatprep.subr.bf16.mxu0 0
        %1975 = vmatpush1.bf16.msra.mxu0 0
        %1976 = vmatprep.subr.bf16.mxu0 0
        %1977 = vmatpush1.bf16.msra.mxu0 0
        %1978 = vmatprep.subr.bf16.mxu0 0
        %1979 = vmatpush1.bf16.msra.mxu0 0
        %1980 = vmatprep.subr.bf16.mxu0 0
        %1981 = vmatpush1.bf16.msra.mxu0 0
        %1982 = vmatprep.subr.bf16.mxu0 0
        %1983 = vmatpush1.bf16.msra.mxu0 0
        %1984 = vmatprep.subr.bf16.mxu0 0
        %1985 = vmatpush1.bf16.msra.mxu0 0
        %1986 = vmatprep.subr.bf16.mxu0 0
        %1987 = vmatpush1.bf16.msra.mxu0 0
        %1988 = vmatprep.subr.bf16.mxu0 0
        %1989 = vmatpush1.bf16.msra.mxu0 0
        %1990 = vmatprep.subr.bf16.mxu0 0
        %1991 = vmatpush1.bf16.msra.mxu0 0
        %1992 = vmatprep.subr.bf16.mxu0 0
        %1993 = vmatpush1.bf16.msra.mxu0 0
        %1994 = vmatprep.subr.bf16.mxu0 0
        %1995 = vmatpush1.bf16.msra.mxu0 0
        %1996 = vmatprep.mubr.bf16.mxu0 0
        %1997 = vmatmul.mubr.bf16.gmra.mrb[0].mxu0 %v1060
        %v1998 = vpop.f32.mrb[0].mxu0
        %v1999 = vadd.f32 %v1950, %v1998
        %v2000 = vpop.f32.mrb[0].mxu0
        %v2001 = vpop.f32.mrb[0].mxu0
        %v2002 = vadd.f32 %v1950, %v2001
        %v2003 = vpop.f32.mrb[0].mxu0
        %2004 = vmatprep.mubr.bf16.mxu0 0
        %2005 = vmatmul.mubr.bf16.gmra.mrb[0].mxu0 %v937
        %v2006 = vpop.f32.mrb[0].mxu0
        %v2007 = vadd.f32 %v1950, %v2006
        %v2008 = vpop.f32.mrb[0].mxu0
        %v2009 = vpop.f32.mrb[0].mxu0
        %v2010 = vadd.f32 %v1950, %v2009
        %v2011 = vpop.f32.mrb[0].mxu0
        %2012 = vmatprep.mubr.bf16.mxu0 0
        %2013 = vmatmul.mubr.bf16.gmra.mrb[0].mxu0 %v937
        %v2014 = vpop.f32.mrb[0].mxu0
        %v2015 = vadd.f32 %v1950, %v2014
        %v2016 = vpop.f32.mrb[0].mxu0
        %v2017 = vpop.f32.mrb[0].mxu0
        %v2018 = vadd.f32 %v1950, %v2017
        %v2019 = vpop.f32.mrb[0].mxu0
        %2020 = vmatprep.mubr.bf16.mxu0 0
        %2021 = vmatmul.mubr.bf16.gmra.mrb[0].mxu0 %v937
        %v2022 = vpop.f32.mrb[0].mxu0
        %v2023 = vadd.f32 %v1950, %v2022
        %v2024 = vpop.f32.mrb[0].mxu0
        %v2025 = vpop.f32.mrb[0].mxu0
        %v2026 = vadd.f32 %v1950, %v2025
        %v2027 = vpop.f32.mrb[0].mxu0
        %2028 = vmatprep.mubr.bf16.mxu0 0
        %2029 = vmatmul.mubr.bf16.gmra.mrb[0].mxu0 %v937
        %v2030 = vpop.f32.mrb[0].mxu0
        %v2031 = vadd.f32 %v1950, %v2030
        %v2032 = vpop.f32.mrb[0].mxu0
        %v2033 = vpop.f32.mrb[0].mxu0
        %v2034 = vadd.f32 %v1950, %v2033
        %v2035 = vpop.f32.mrb[0].mxu0
        %2036 = vmatprep.mubr.bf16.mxu0 0
        %2037 = vmatmul.mubr.bf16.gmra.mrb[0].mxu0 %v937
        %v2038 = vpop.f32.mrb[0].mxu0
        %v2039 = vadd.f32 %v1950, %v2038
        %v2040 = vpop.f32.mrb[0].mxu0
        %v2041 = vpop.f32.mrb[0].mxu0
        %v2042 = vadd.f32 %v1950, %v2041
        %v2043 = vpop.f32.mrb[0].mxu0
        %2044 = vmatprep.mubr.bf16.mxu0 0
        %2045 = vmatmul.mubr.bf16.gmra.mrb[0].mxu0 %v937
        %v2046 = vpop.f32.mrb[0].mxu0
        %v2047 = vadd.f32 %v1950, %v2046
        %v2048 = vpop.f32.mrb[0].mxu0
        %v2049 = vpop.f32.mrb[0].mxu0
        %v2050 = vadd.f32 %v1950, %v2049
        %v2051 = vpop.f32.mrb[0].mxu0
        %2052 = vmatprep.mubr.bf16.mxu0 0
        %2053 = vmatmul.mubr.bf16.gmra.mrb[0].mxu0 %v937
        %v2054 = vpop.f32.mrb[0].mxu0
        %v2055 = vadd.f32 %v1950, %v2054
        %v2056 = vpop.f32.mrb[0].mxu0
        %v2057 = vpop.f32.mrb[0].mxu0
        %v2058 = vadd.f32 %v1950, %v2057
        %v2059 = vpop.f32.mrb[0].mxu0
        %2060 = vdwg.mxu0
        %v2061 = vpack.c.bf16 %v1812, %v1812
        %v2062 = vpack.c.bf16 %v1880, %v1877
        %v2063 = vpack.c.bf16 %v1888, %v1885
        %v2064 = vpack.c.bf16 %v1896, %v1893
        %v2065 = vpack.c.bf16 %v1904, %v1901
        %v2066 = vpack.c.bf16 %v1912, %v1909
        %v2067 = vpack.c.bf16 %v1920, %v1917
        %v2068 = vpack.c.bf16 %v1928, %v1925
        %v2069 = vpack.c.bf16 %v1936, %v1933
        %v2071 = vsel %vm1168, %v2061, 0
        %v2074 = vsel %vm1168, %v2062, 0
        %v2077 = vsel %vm1168, %v2063, 0
        %v2080 = vsel %vm1168, %v2064, 0
        %v2083 = vsel %vm1168, %v2065, 0
        %v2086 = vsel %vm1168, %v2066, 0
        %v2089 = vsel %vm1168, %v2067, 0
        %v2092 = vsel %vm1168, %v2068, 0
        %v2095 = vsel %vm1168, %v2069, 0
        %2097 = vmatprep.subr.bf16.mxu0 0
        %2098 = vmatpush1.bf16.xpose.msra.mxu0 %v2074
        %2099 = vmatprep.subr.bf16.mxu0 0
        %2100 = vmatpush1.bf16.xpose.msra.mxu0 %v2077
        %2101 = vmatprep.subr.bf16.mxu0 0
        %2102 = vmatpush1.bf16.xpose.msra.mxu0 %v2080
        %2103 = vmatprep.subr.bf16.mxu0 0
        %2104 = vmatpush1.bf16.xpose.msra.mxu0 %v2083
        %2105 = vmatprep.subr.bf16.mxu0 0
        %2106 = vmatpush1.bf16.xpose.msra.mxu0 %v2086
        %2107 = vmatprep.subr.bf16.mxu0 0
        %2108 = vmatpush1.bf16.xpose.msra.mxu0 %v2089
        %2109 = vmatprep.subr.bf16.mxu0 0
        %2110 = vmatpush1.bf16.xpose.msra.mxu0 %v2092
        %2111 = vmatprep.subr.bf16.mxu0 0
        %2112 = vmatpush1.bf16.xpose.msra.mxu0 %v2095
        %2113 = vmatprep.subr.bf16.mxu0 0
        %2114 = vmatpush1.bf16.xpose.msra.mxu0 0
        %2115 = vmatprep.subr.bf16.mxu0 0
        %2116 = vmatpush1.bf16.xpose.msra.mxu0 0
        %2117 = vmatprep.subr.bf16.mxu0 0
        %2118 = vmatpush1.bf16.xpose.msra.mxu0 0
        %2119 = vmatprep.subr.bf16.mxu0 0
        %2120 = vmatpush1.bf16.xpose.msra.mxu0 0
        %2121 = vmatprep.subr.bf16.mxu0 0
        %2122 = vmatpush1.bf16.xpose.msra.mxu0 0
        %2123 = vmatprep.subr.bf16.mxu0 0
        %2124 = vmatpush1.bf16.xpose.msra.mxu0 0
        %2125 = vmatprep.subr.bf16.mxu0 0
        %2126 = vmatpush1.bf16.xpose.msra.mxu0 0
        %2127 = vmatprep.subr.bf16.mxu0 0
        %2128 = vmatpush1.bf16.xpose.msra.mxu0 0
        %2129 = vmatprep.mubr.bf16.mxu0 0
        %2130 = vmatmul.mubr.bf16.gmra.mrb[0].mxu0 %v2071
        %v2131 = vpop.f32.mrb[0].mxu0
        %v2132 = vadd.f32 0.0, %v2131
        %v2133 = vpop.f32.mrb[0].mxu0
        %v2134 = vpop.f32.mrb[0].mxu0
        %v2135 = vpop.f32.mrb[0].mxu0
        %2136 = vdwg.mxu0
        %v2137 = vsel %vm1238, %v2132, -1e+30
        %2138 = vmax.xlane.f32.xlu0 %v2137
        %v2139 = vpop.xlane.xlu0 %2138
        %v2140 = vsub.f32 %v2137, %v2139
        %v2141 = vmul.f32 %v2140, 1.442695
        %v2142 = vpow.pop %v2141
        %2143 = vadd.xlane.f32.xlu0 %v2142
        %v2144 = vpop.xlane.xlu0 %2143
        %v2145 = vrcp.pop %v2144
        %v2146 = vmul.f32 %v2142, %v2145
        %v2147 = vpack.c.bf16 %v2146, %v2146
        %s2148 = scalar_lea.vmem %s577, 8 [#allocation5]
        %2149 = vst [vmem:[%s2148] sm:$0xf] %v2147
        %v2150 = vpack.c.bf16 %v2002, %v1999
        %v2151 = vpack.c.bf16 %v2010, %v2007
        %v2152 = vpack.c.bf16 %v2018, %v2015
        %v2153 = vpack.c.bf16 %v2026, %v2023
        %v2154 = vpack.c.bf16 %v2034, %v2031
        %v2155 = vpack.c.bf16 %v2042, %v2039
        %v2156 = vpack.c.bf16 %v2050, %v2047
        %v2157 = vpack.c.bf16 %v2058, %v2055
        %2158 = vmatprep.subr.bf16.mxu0 0
        %2159 = vmatpush1.bf16.msra.mxu0 %v2150
        %2160 = vmatprep.subr.bf16.mxu0 0
        %2161 = vmatpush1.bf16.msra.mxu0 %v2151
        %2162 = vmatprep.subr.bf16.mxu0 0
        %2163 = vmatpush1.bf16.msra.mxu0 %v2152
        %2164 = vmatprep.subr.bf16.mxu0 0
        %2165 = vmatpush1.bf16.msra.mxu0 %v2153
        %2166 = vmatprep.subr.bf16.mxu0 0
        %2167 = vmatpush1.bf16.msra.mxu0 %v2154
        %2168 = vmatprep.subr.bf16.mxu0 0
        %2169 = vmatpush1.bf16.msra.mxu0 %v2155
        %2170 = vmatprep.subr.bf16.mxu0 0
        %2171 = vmatpush1.bf16.msra.mxu0 %v2156
        %2172 = vmatprep.subr.bf16.mxu0 0
        %2173 = vmatpush1.bf16.msra.mxu0 %v2157
        %2174 = vmatprep.subr.bf16.mxu0 0
        %2175 = vmatpush1.bf16.msra.mxu0 0
        %2176 = vmatprep.subr.bf16.mxu0 0
        %2177 = vmatpush1.bf16.msra.mxu0 0
        %2178 = vmatprep.subr.bf16.mxu0 0
        %2179 = vmatpush1.bf16.msra.mxu0 0
        %2180 = vmatprep.subr.bf16.mxu0 0
        %2181 = vmatpush1.bf16.msra.mxu0 0
        %2182 = vmatprep.subr.bf16.mxu0 0
        %2183 = vmatpush1.bf16.msra.mxu0 0
        %2184 = vmatprep.subr.bf16.mxu0 0
        %2185 = vmatpush1.bf16.msra.mxu0 0
        %2186 = vmatprep.subr.bf16.mxu0 0
        %2187 = vmatpush1.bf16.msra.mxu0 0
        %2188 = vmatprep.subr.bf16.mxu0 0
        %2189 = vmatpush1.bf16.msra.mxu0 0
        %2190 = vmatprep.mubr.bf16.mxu0 0
        %2191 = vmatmul.mubr.bf16.gmra.mrb[0].mxu0 %v2147
        %v2192 = vpop.f32.mrb[0].mxu0
        %v2193 = vadd.f32 0.0, %v2192
        %v2194 = vpop.f32.mrb[0].mxu0
        %v2195 = vpop.f32.mrb[0].mxu0
        %v2196 = vpop.f32.mrb[0].mxu0
        %2197 = vdwg.mxu0
        %2199 = vrot.lane.b32.xlu0 %v2193, 16
        %v2200 = vpop.permute.xlu0 %2199
        %vm2202 = vcmask 195712
        %2203 = vst.msk [vmem:[#allocation2] sm:$0xff] %vm2202, %v2200
        %s2204 = scalar_lea.vmem %s7, 48
        %v2205 = vld [vmem:[%s2204] sm:$0xf]
        %v2206 = vld [vmem:[%s2204 + $0x4] sm:$0xf]
        %v2207 = vld [vmem:[%s2204 + $0x8] sm:$0xf]
        %v2208 = vld [vmem:[%s2204 + $0xc] sm:$0xf]
        %s2209 = scalar_lea.vmem %s8, 3
        %v2210 = vld [vmem:[%s2209] sm:$0x1]
        %v2212 = vlaneseq
        %v2213 = vshrl.u32 %v2212, 7
        %v2214 = vsub.s32 0, %v2213
        %v2215 = vrot.slane %v2210, %v2214
        %v2221 = vunpack.c.l.b16 %v2205
        %v2222 = vunpack.c.l.b16 %v2206
        %v2223 = vunpack.c.l.b16 %v2207
        %v2224 = vunpack.c.l.b16 %v2208
        %v2225 = vpack.c.b16 %v2222, %v2221
        %v2226 = vpack.c.b16 %v2224, %v2223
        %2229 = vmatprep.subr.bf16.mxu0 0
        %2230 = vmatpush1.bf16.msra.mxu0 %v2225
        %2231 = vmatprep.subr.bf16.mxu0 0
        %2232 = vmatpush1.bf16.msra.mxu0 %v2226
        %2233 = vmatprep.subr.bf16.mxu0 0
        %2234 = vmatpush1.bf16.msra.mxu0 0
        %2235 = vmatprep.subr.bf16.mxu0 0
        %2236 = vmatpush1.bf16.msra.mxu0 0
        %2237 = vmatprep.subr.bf16.mxu0 0
        %2238 = vmatpush1.bf16.msra.mxu0 0
        %2239 = vmatprep.subr.bf16.mxu0 0
        %2240 = vmatpush1.bf16.msra.mxu0 0
        %2241 = vmatprep.subr.bf16.mxu0 0
        %2242 = vmatpush1.bf16.msra.mxu0 0
        %2243 = vmatprep.subr.bf16.mxu0 0
        %2244 = vmatpush1.bf16.msra.mxu0 0
        %2245 = vmatprep.subr.bf16.mxu0 0
        %2246 = vmatpush1.bf16.msra.mxu0 0
        %2247 = vmatprep.subr.bf16.mxu0 0
        %2248 = vmatpush1.bf16.msra.mxu0 0
        %2249 = vmatprep.subr.bf16.mxu0 0
        %2250 = vmatpush1.bf16.msra.mxu0 0
        %2251 = vmatprep.subr.bf16.mxu0 0
        %2252 = vmatpush1.bf16.msra.mxu0 0
        %2253 = vmatprep.subr.bf16.mxu0 0
        %2254 = vmatpush1.bf16.msra.mxu0 0
        %2255 = vmatprep.subr.bf16.mxu0 0
        %2256 = vmatpush1.bf16.msra.mxu0 0
        %2257 = vmatprep.subr.bf16.mxu0 0
        %2258 = vmatpush1.bf16.msra.mxu0 0
        %2259 = vmatprep.subr.bf16.mxu0 0
        %2260 = vmatpush1.bf16.msra.mxu0 0
        %2261 = vmatprep.mubr.bf16.mxu0 0
        %2262 = vmatmul.mubr.bf16.gmra.mrb[0].mxu0 %v868
        %v2263 = vpop.f32.mrb[0].mxu0
        %v2264 = vadd.f32 %v2215, %v2263
        %v2265 = vpop.f32.mrb[0].mxu0
        %v2266 = vpop.f32.mrb[0].mxu0
        %v2267 = vpop.f32.mrb[0].mxu0
        %2268 = vdwg.mxu0
        %s2269 = scalar_lea.vmem %s9, 48
        %v2270 = vld [vmem:[%s2269] sm:$0xf]
        %v2271 = vld [vmem:[%s2269 + $0x4] sm:$0xf]
        %v2272 = vld [vmem:[%s2269 + $0x8] sm:$0xf]
        %v2273 = vld [vmem:[%s2269 + $0xc] sm:$0xf]
        %s2274 = scalar_lea.vmem %s10, 3
        %v2275 = vld [vmem:[%s2274] sm:$0x1]
        %v2277 = vlaneseq
        %v2278 = vshrl.u32 %v2277, 7
        %v2279 = vsub.s32 0, %v2278
        %v2280 = vrot.slane %v2275, %v2279
        %v2286 = vunpack.c.l.b16 %v2270
        %v2287 = vunpack.c.l.b16 %v2271
        %v2288 = vunpack.c.l.b16 %v2272
        %v2289 = vunpack.c.l.b16 %v2273
        %v2290 = vpack.c.b16 %v2287, %v2286
        %v2291 = vpack.c.b16 %v2289, %v2288
        %2294 = vmatprep.subr.bf16.mxu0 0
        %2295 = vmatpush1.bf16.msra.mxu0 %v2290
        %2296 = vmatprep.subr.bf16.mxu0 0
        %2297 = vmatpush1.bf16.msra.mxu0 %v2291
        %2298 = vmatprep.subr.bf16.mxu0 0
        %2299 = vmatpush1.bf16.msra.mxu0 0
        %2300 = vmatprep.subr.bf16.mxu0 0
        %2301 = vmatpush1.bf16.msra.mxu0 0
        %2302 = vmatprep.subr.bf16.mxu0 0
        %2303 = vmatpush1.bf16.msra.mxu0 0
        %2304 = vmatprep.subr.bf16.mxu0 0
        %2305 = vmatpush1.bf16.msra.mxu0 0
        %2306 = vmatprep.subr.bf16.mxu0 0
        %2307 = vmatpush1.bf16.msra.mxu0 0
        %2308 = vmatprep.subr.bf16.mxu0 0
        %2309 = vmatpush1.bf16.msra.mxu0 0
        %2310 = vmatprep.subr.bf16.mxu0 0
        %2311 = vmatpush1.bf16.msra.mxu0 0
        %2312 = vmatprep.subr.bf16.mxu0 0
        %2313 = vmatpush1.bf16.msra.mxu0 0
        %2314 = vmatprep.subr.bf16.mxu0 0
        %2315 = vmatpush1.bf16.msra.mxu0 0
        %2316 = vmatprep.subr.bf16.mxu0 0
        %2317 = vmatpush1.bf16.msra.mxu0 0
        %2318 = vmatprep.subr.bf16.mxu0 0
        %2319 = vmatpush1.bf16.msra.mxu0 0
        %2320 = vmatprep.subr.bf16.mxu0 0
        %2321 = vmatpush1.bf16.msra.mxu0 0
        %2322 = vmatprep.subr.bf16.mxu0 0
        %2323 = vmatpush1.bf16.msra.mxu0 0
        %2324 = vmatprep.subr.bf16.mxu0 0
        %2325 = vmatpush1.bf16.msra.mxu0 0
        %2326 = vmatprep.mubr.bf16.mxu0 0
        %2327 = vmatmul.mubr.bf16.gmra.mrb[0].mxu0 %v934
        %v2328 = vpop.f32.mrb[0].mxu0
        %v2329 = vadd.f32 %v2280, %v2328
        %v2330 = vpop.f32.mrb[0].mxu0
        %v2331 = vpop.f32.mrb[0].mxu0
        %v2332 = vadd.f32 %v2280, %v2331
        %v2333 = vpop.f32.mrb[0].mxu0
        %2334 = vmatprep.mubr.bf16.mxu0 0
        %2335 = vmatmul.mubr.bf16.gmra.mrb[0].mxu0 %v937
        %v2336 = vpop.f32.mrb[0].mxu0
        %v2337 = vadd.f32 %v2280, %v2336
        %v2338 = vpop.f32.mrb[0].mxu0
        %v2339 = vpop.f32.mrb[0].mxu0
        %v2340 = vadd.f32 %v2280, %v2339
        %v2341 = vpop.f32.mrb[0].mxu0
        %2342 = vmatprep.mubr.bf16.mxu0 0
        %2343 = vmatmul.mubr.bf16.gmra.mrb[0].mxu0 %v937
        %v2344 = vpop.f32.mrb[0].mxu0
        %v2345 = vadd.f32 %v2280, %v2344
        %v2346 = vpop.f32.mrb[0].mxu0
        %v2347 = vpop.f32.mrb[0].mxu0
        %v2348 = vadd.f32 %v2280, %v2347
        %v2349 = vpop.f32.mrb[0].mxu0
        %2350 = vmatprep.mubr.bf16.mxu0 0
        %2351 = vmatmul.mubr.bf16.gmra.mrb[0].mxu0 %v937
        %v2352 = vpop.f32.mrb[0].mxu0
        %v2353 = vadd.f32 %v2280, %v2352
        %v2354 = vpop.f32.mrb[0].mxu0
        %v2355 = vpop.f32.mrb[0].mxu0
        %v2356 = vadd.f32 %v2280, %v2355
        %v2357 = vpop.f32.mrb[0].mxu0
        %2358 = vmatprep.mubr.bf16.mxu0 0
        %2359 = vmatmul.mubr.bf16.gmra.mrb[0].mxu0 %v937
        %v2360 = vpop.f32.mrb[0].mxu0
        %v2361 = vadd.f32 %v2280, %v2360
        %v2362 = vpop.f32.mrb[0].mxu0
        %v2363 = vpop.f32.mrb[0].mxu0
        %v2364 = vadd.f32 %v2280, %v2363
        %v2365 = vpop.f32.mrb[0].mxu0
        %2366 = vmatprep.mubr.bf16.mxu0 0
        %2367 = vmatmul.mubr.bf16.gmra.mrb[0].mxu0 %v937
        %v2368 = vpop.f32.mrb[0].mxu0
        %v2369 = vadd.f32 %v2280, %v2368
        %v2370 = vpop.f32.mrb[0].mxu0
        %v2371 = vpop.f32.mrb[0].mxu0
        %v2372 = vadd.f32 %v2280, %v2371
        %v2373 = vpop.f32.mrb[0].mxu0
        %2374 = vmatprep.mubr.bf16.mxu0 0
        %2375 = vmatmul.mubr.bf16.gmra.mrb[0].mxu0 %v937
        %v2376 = vpop.f32.mrb[0].mxu0
        %v2377 = vadd.f32 %v2280, %v2376
        %v2378 = vpop.f32.mrb[0].mxu0
        %v2379 = vpop.f32.mrb[0].mxu0
        %v2380 = vadd.f32 %v2280, %v2379
        %v2381 = vpop.f32.mrb[0].mxu0
        %2382 = vmatprep.mubr.bf16.mxu0 0
        %2383 = vmatmul.mubr.bf16.gmra.mrb[0].mxu0 %v937
        %v2384 = vpop.f32.mrb[0].mxu0
        %v2385 = vadd.f32 %v2280, %v2384
        %v2386 = vpop.f32.mrb[0].mxu0
        %v2387 = vpop.f32.mrb[0].mxu0
        %v2388 = vadd.f32 %v2280, %v2387
        %v2389 = vpop.f32.mrb[0].mxu0
        %2390 = vdwg.mxu0
        %s2391 = scalar_lea.vmem %s11, 48
        %v2392 = vld [vmem:[%s2391] sm:$0xf]
        %v2393 = vld [vmem:[%s2391 + $0x4] sm:$0xf]
        %v2394 = vld [vmem:[%s2391 + $0x8] sm:$0xf]
        %v2395 = vld [vmem:[%s2391 + $0xc] sm:$0xf]
        %s2396 = scalar_lea.vmem %s12, 3
        %v2397 = vld [vmem:[%s2396] sm:$0x1]
        %v2399 = vlaneseq
        %v2400 = vshrl.u32 %v2399, 7
        %v2401 = vsub.s32 0, %v2400
        %v2402 = vrot.slane %v2397, %v2401
        %v2408 = vunpack.c.l.b16 %v2392
        %v2409 = vunpack.c.l.b16 %v2393
        %v2410 = vunpack.c.l.b16 %v2394
        %v2411 = vunpack.c.l.b16 %v2395
        %v2412 = vpack.c.b16 %v2409, %v2408
        %v2413 = vpack.c.b16 %v2411, %v2410
        %2416 = vmatprep.subr.bf16.mxu0 0
        %2417 = vmatpush1.bf16.msra.mxu0 %v2412
        %2418 = vmatprep.subr.bf16.mxu0 0
        %2419 = vmatpush1.bf16.msra.mxu0 %v2413
        %2420 = vmatprep.subr.bf16.mxu0 0
        %2421 = vmatpush1.bf16.msra.mxu0 0
        %2422 = vmatprep.subr.bf16.mxu0 0
        %2423 = vmatpush1.bf16.msra.mxu0 0
        %2424 = vmatprep.subr.bf16.mxu0 0
        %2425 = vmatpush1.bf16.msra.mxu0 0
        %2426 = vmatprep.subr.bf16.mxu0 0
        %2427 = vmatpush1.bf16.msra.mxu0 0
        %2428 = vmatprep.subr.bf16.mxu0 0
        %2429 = vmatpush1.bf16.msra.mxu0 0
        %2430 = vmatprep.subr.bf16.mxu0 0
        %2431 = vmatpush1.bf16.msra.mxu0 0
        %2432 = vmatprep.subr.bf16.mxu0 0
        %2433 = vmatpush1.bf16.msra.mxu0 0
        %2434 = vmatprep.subr.bf16.mxu0 0
        %2435 = vmatpush1.bf16.msra.mxu0 0
        %2436 = vmatprep.subr.bf16.mxu0 0
        %2437 = vmatpush1.bf16.msra.mxu0 0
        %2438 = vmatprep.subr.bf16.mxu0 0
        %2439 = vmatpush1.bf16.msra.mxu0 0
        %2440 = vmatprep.subr.bf16.mxu0 0
        %2441 = vmatpush1.bf16.msra.mxu0 0
        %2442 = vmatprep.subr.bf16.mxu0 0
        %2443 = vmatpush1.bf16.msra.mxu0 0
        %2444 = vmatprep.subr.bf16.mxu0 0
        %2445 = vmatpush1.bf16.msra.mxu0 0
        %2446 = vmatprep.subr.bf16.mxu0 0
        %2447 = vmatpush1.bf16.msra.mxu0 0
        %2448 = vmatprep.mubr.bf16.mxu0 0
        %2449 = vmatmul.mubr.bf16.gmra.mrb[0].mxu0 %v1060
        %v2450 = vpop.f32.mrb[0].mxu0
        %v2451 = vadd.f32 %v2402, %v2450
        %v2452 = vpop.f32.mrb[0].mxu0
        %v2453 = vpop.f32.mrb[0].mxu0
        %v2454 = vadd.f32 %v2402, %v2453
        %v2455 = vpop.f32.mrb[0].mxu0
        %2456 = vmatprep.mubr.bf16.mxu0 0
        %2457 = vmatmul.mubr.bf16.gmra.mrb[0].mxu0 %v937
        %v2458 = vpop.f32.mrb[0].mxu0
        %v2459 = vadd.f32 %v2402, %v2458
        %v2460 = vpop.f32.mrb[0].mxu0
        %v2461 = vpop.f32.mrb[0].mxu0
        %v2462 = vadd.f32 %v2402, %v2461
        %v2463 = vpop.f32.mrb[0].mxu0
        %2464 = vmatprep.mubr.bf16.mxu0 0
        %2465 = vmatmul.mubr.bf16.gmra.mrb[0].mxu0 %v937
        %v2466 = vpop.f32.mrb[0].mxu0
        %v2467 = vadd.f32 %v2402, %v2466
        %v2468 = vpop.f32.mrb[0].mxu0
        %v2469 = vpop.f32.mrb[0].mxu0
        %v2470 = vadd.f32 %v2402, %v2469
        %v2471 = vpop.f32.mrb[0].mxu0
        %2472 = vmatprep.mubr.bf16.mxu0 0
        %2473 = vmatmul.mubr.bf16.gmra.mrb[0].mxu0 %v937
        %v2474 = vpop.f32.mrb[0].mxu0
        %v2475 = vadd.f32 %v2402, %v2474
        %v2476 = vpop.f32.mrb[0].mxu0
        %v2477 = vpop.f32.mrb[0].mxu0
        %v2478 = vadd.f32 %v2402, %v2477
        %v2479 = vpop.f32.mrb[0].mxu0
        %2480 = vmatprep.mubr.bf16.mxu0 0
        %2481 = vmatmul.mubr.bf16.gmra.mrb[0].mxu0 %v937
        %v2482 = vpop.f32.mrb[0].mxu0
        %v2483 = vadd.f32 %v2402, %v2482
        %v2484 = vpop.f32.mrb[0].mxu0
        %v2485 = vpop.f32.mrb[0].mxu0
        %v2486 = vadd.f32 %v2402, %v2485
        %v2487 = vpop.f32.mrb[0].mxu0
        %2488 = vmatprep.mubr.bf16.mxu0 0
        %2489 = vmatmul.mubr.bf16.gmra.mrb[0].mxu0 %v937
        %v2490 = vpop.f32.mrb[0].mxu0
        %v2491 = vadd.f32 %v2402, %v2490
        %v2492 = vpop.f32.mrb[0].mxu0
        %v2493 = vpop.f32.mrb[0].mxu0
        %v2494 = vadd.f32 %v2402, %v2493
        %v2495 = vpop.f32.mrb[0].mxu0
        %2496 = vmatprep.mubr.bf16.mxu0 0
        %2497 = vmatmul.mubr.bf16.gmra.mrb[0].mxu0 %v937
        %v2498 = vpop.f32.mrb[0].mxu0
        %v2499 = vadd.f32 %v2402, %v2498
        %v2500 = vpop.f32.mrb[0].mxu0
        %v2501 = vpop.f32.mrb[0].mxu0
        %v2502 = vadd.f32 %v2402, %v2501
        %v2503 = vpop.f32.mrb[0].mxu0
        %2504 = vmatprep.mubr.bf16.mxu0 0
        %2505 = vmatmul.mubr.bf16.gmra.mrb[0].mxu0 %v937
        %v2506 = vpop.f32.mrb[0].mxu0
        %v2507 = vadd.f32 %v2402, %v2506
        %v2508 = vpop.f32.mrb[0].mxu0
        %v2509 = vpop.f32.mrb[0].mxu0
        %v2510 = vadd.f32 %v2402, %v2509
        %v2511 = vpop.f32.mrb[0].mxu0
        %2512 = vdwg.mxu0
        %v2513 = vpack.c.bf16 %v2264, %v2264
        %v2514 = vpack.c.bf16 %v2332, %v2329
        %v2515 = vpack.c.bf16 %v2340, %v2337
        %v2516 = vpack.c.bf16 %v2348, %v2345
        %v2517 = vpack.c.bf16 %v2356, %v2353
        %v2518 = vpack.c.bf16 %v2364, %v2361
        %v2519 = vpack.c.bf16 %v2372, %v2369
        %v2520 = vpack.c.bf16 %v2380, %v2377
        %v2521 = vpack.c.bf16 %v2388, %v2385
        %v2523 = vsel %vm1168, %v2513, 0
        %v2526 = vsel %vm1168, %v2514, 0
        %v2529 = vsel %vm1168, %v2515, 0
        %v2532 = vsel %vm1168, %v2516, 0
        %v2535 = vsel %vm1168, %v2517, 0
        %v2538 = vsel %vm1168, %v2518, 0
        %v2541 = vsel %vm1168, %v2519, 0
        %v2544 = vsel %vm1168, %v2520, 0
        %v2547 = vsel %vm1168, %v2521, 0
        %2549 = vmatprep.subr.bf16.mxu0 0
        %2550 = vmatpush1.bf16.xpose.msra.mxu0 %v2526
        %2551 = vmatprep.subr.bf16.mxu0 0
        %2552 = vmatpush1.bf16.xpose.msra.mxu0 %v2529
        %2553 = vmatprep.subr.bf16.mxu0 0
        %2554 = vmatpush1.bf16.xpose.msra.mxu0 %v2532
        %2555 = vmatprep.subr.bf16.mxu0 0
        %2556 = vmatpush1.bf16.xpose.msra.mxu0 %v2535
        %2557 = vmatprep.subr.bf16.mxu0 0
        %2558 = vmatpush1.bf16.xpose.msra.mxu0 %v2538
        %2559 = vmatprep.subr.bf16.mxu0 0
        %2560 = vmatpush1.bf16.xpose.msra.mxu0 %v2541
        %2561 = vmatprep.subr.bf16.mxu0 0
        %2562 = vmatpush1.bf16.xpose.msra.mxu0 %v2544
        %2563 = vmatprep.subr.bf16.mxu0 0
        %2564 = vmatpush1.bf16.xpose.msra.mxu0 %v2547
        %2565 = vmatprep.subr.bf16.mxu0 0
        %2566 = vmatpush1.bf16.xpose.msra.mxu0 0
        %2567 = vmatprep.subr.bf16.mxu0 0
        %2568 = vmatpush1.bf16.xpose.msra.mxu0 0
        %2569 = vmatprep.subr.bf16.mxu0 0
        %2570 = vmatpush1.bf16.xpose.msra.mxu0 0
        %2571 = vmatprep.subr.bf16.mxu0 0
        %2572 = vmatpush1.bf16.xpose.msra.mxu0 0
        %2573 = vmatprep.subr.bf16.mxu0 0
        %2574 = vmatpush1.bf16.xpose.msra.mxu0 0
        %2575 = vmatprep.subr.bf16.mxu0 0
        %2576 = vmatpush1.bf16.xpose.msra.mxu0 0
        %2577 = vmatprep.subr.bf16.mxu0 0
        %2578 = vmatpush1.bf16.xpose.msra.mxu0 0
        %2579 = vmatprep.subr.bf16.mxu0 0
        %2580 = vmatpush1.bf16.xpose.msra.mxu0 0
        %2581 = vmatprep.mubr.bf16.mxu0 0
        %2582 = vmatmul.mubr.bf16.gmra.mrb[0].mxu0 %v2523
        %v2583 = vpop.f32.mrb[0].mxu0
        %v2584 = vadd.f32 0.0, %v2583
        %v2585 = vpop.f32.mrb[0].mxu0
        %v2586 = vpop.f32.mrb[0].mxu0
        %v2587 = vpop.f32.mrb[0].mxu0
        %2588 = vdwg.mxu0
        %v2589 = vsel %vm1238, %v2584, -1e+30
        %2590 = vmax.xlane.f32.xlu0 %v2589
        %v2591 = vpop.xlane.xlu0 %2590
        %v2592 = vsub.f32 %v2589, %v2591
        %v2593 = vmul.f32 %v2592, 1.442695
        %v2594 = vpow.pop %v2593
        %2595 = vadd.xlane.f32.xlu0 %v2594
        %v2596 = vpop.xlane.xlu0 %2595
        %v2597 = vrcp.pop %v2596
        %v2598 = vmul.f32 %v2594, %v2597
        %v2599 = vpack.c.bf16 %v2598, %v2598
        %s2600 = scalar_lea.vmem %s577, 12 [#allocation5]
        %2601 = vst [vmem:[%s2600] sm:$0xf] %v2599
        %v2602 = vpack.c.bf16 %v2454, %v2451
        %v2603 = vpack.c.bf16 %v2462, %v2459
        %v2604 = vpack.c.bf16 %v2470, %v2467
        %v2605 = vpack.c.bf16 %v2478, %v2475
        %v2606 = vpack.c.bf16 %v2486, %v2483
        %v2607 = vpack.c.bf16 %v2494, %v2491
        %v2608 = vpack.c.bf16 %v2502, %v2499
        %v2609 = vpack.c.bf16 %v2510, %v2507
        %2610 = vmatprep.subr.bf16.mxu0 0
        %2611 = vmatpush1.bf16.msra.mxu0 %v2602
        %2612 = vmatprep.subr.bf16.mxu0 0
        %2613 = vmatpush1.bf16.msra.mxu0 %v2603
        %2614 = vmatprep.subr.bf16.mxu0 0
        %2615 = vmatpush1.bf16.msra.mxu0 %v2604
        %2616 = vmatprep.subr.bf16.mxu0 0
        %2617 = vmatpush1.bf16.msra.mxu0 %v2605
        %2618 = vmatprep.subr.bf16.mxu0 0
        %2619 = vmatpush1.bf16.msra.mxu0 %v2606
        %2620 = vmatprep.subr.bf16.mxu0 0
        %2621 = vmatpush1.bf16.msra.mxu0 %v2607
        %2622 = vmatprep.subr.bf16.mxu0 0
        %2623 = vmatpush1.bf16.msra.mxu0 %v2608
        %2624 = vmatprep.subr.bf16.mxu0 0
        %2625 = vmatpush1.bf16.msra.mxu0 %v2609
        %2626 = vmatprep.subr.bf16.mxu0 0
        %2627 = vmatpush1.bf16.msra.mxu0 0
        %2628 = vmatprep.subr.bf16.mxu0 0
        %2629 = vmatpush1.bf16.msra.mxu0 0
        %2630 = vmatprep.subr.bf16.mxu0 0
        %2631 = vmatpush1.bf16.msra.mxu0 0
        %2632 = vmatprep.subr.bf16.mxu0 0
        %2633 = vmatpush1.bf16.msra.mxu0 0
        %2634 = vmatprep.subr.bf16.mxu0 0
        %2635 = vmatpush1.bf16.msra.mxu0 0
        %2636 = vmatprep.subr.bf16.mxu0 0
        %2637 = vmatpush1.bf16.msra.mxu0 0
        %2638 = vmatprep.subr.bf16.mxu0 0
        %2639 = vmatpush1.bf16.msra.mxu0 0
        %2640 = vmatprep.subr.bf16.mxu0 0
        %2641 = vmatpush1.bf16.msra.mxu0 0
        %2642 = vmatprep.mubr.bf16.mxu0 0
        %2643 = vmatmul.mubr.bf16.gmra.mrb[0].mxu0 %v2599
        %v2644 = vpop.f32.mrb[0].mxu0
        %v2645 = vadd.f32 0.0, %v2644
        %v2646 = vpop.f32.mrb[0].mxu0
        %v2647 = vpop.f32.mrb[0].mxu0
        %v2648 = vpop.f32.mrb[0].mxu0
        %2649 = vdwg.mxu0
        %2651 = vrot.lane.b32.xlu0 %v2645, 24
        %v2652 = vpop.permute.xlu0 %2651
        %vm2654 = vcmask 261312
        %2655 = vst.msk [vmem:[#allocation2] sm:$0xff] %vm2654, %v2652
        %v2656 = vld [vmem:[#allocation2] sm:$0xff]
        %v2657 = vpack.c.bf16 %v2656, %v2656
        %v2658 = vld [vmem:[%s13] sm:$0xf]
        %v2659 = vld [vmem:[%s13 + $0x4] sm:$0xf]
        %v2660 = vld [vmem:[%s13 + $0x8] sm:$0xf]
        %v2661 = vld [vmem:[%s13 + $0xc] sm:$0xf]
        %v2662 = vld [vmem:[%s14] sm:$0x1]
        %v2664 = vlaneseq
        %v2665 = vshrl.u32 %v2664, 7
        %v2666 = vsub.s32 0, %v2665
        %v2667 = vrot.slane %v2662, %v2666
        %v2673 = vunpack.c.l.b16 %v2658
        %v2674 = vunpack.c.l.b16 %v2659
        %v2675 = vunpack.c.l.b16 %v2660
        %v2676 = vunpack.c.l.b16 %v2661
        %v2677 = vpack.c.b16 %v2674, %v2673
        %v2678 = vpack.c.b16 %v2676, %v2675
        %v2682 = vsel %vm717, %v2657, 0
        %2684 = vmatprep.subr.bf16.mxu0 0
        %2685 = vmatpush1.bf16.msra.mxu0 %v2677
        %2686 = vmatprep.subr.bf16.mxu0 0
        %2687 = vmatpush1.bf16.msra.mxu0 %v2678
        %2688 = vmatprep.subr.bf16.mxu0 0
        %2689 = vmatpush1.bf16.msra.mxu0 0
        %2690 = vmatprep.subr.bf16.mxu0 0
        %2691 = vmatpush1.bf16.msra.mxu0 0
        %2692 = vmatprep.subr.bf16.mxu0 0
        %2693 = vmatpush1.bf16.msra.mxu0 0
        %2694 = vmatprep.subr.bf16.mxu0 0
        %2695 = vmatpush1.bf16.msra.mxu0 0
        %2696 = vmatprep.subr.bf16.mxu0 0
        %2697 = vmatpush1.bf16.msra.mxu0 0
        %2698 = vmatprep.subr.bf16.mxu0 0
        %2699 = vmatpush1.bf16.msra.mxu0 0
        %2700 = vmatprep.subr.bf16.mxu0 0
        %2701 = vmatpush1.bf16.msra.mxu0 0
        %2702 = vmatprep.subr.bf16.mxu0 0
        %2703 = vmatpush1.bf16.msra.mxu0 0
        %2704 = vmatprep.subr.bf16.mxu0 0
        %2705 = vmatpush1.bf16.msra.mxu0 0
        %2706 = vmatprep.subr.bf16.mxu0 0
        %2707 = vmatpush1.bf16.msra.mxu0 0
        %2708 = vmatprep.subr.bf16.mxu0 0
        %2709 = vmatpush1.bf16.msra.mxu0 0
        %2710 = vmatprep.subr.bf16.mxu0 0
        %2711 = vmatpush1.bf16.msra.mxu0 0
        %2712 = vmatprep.subr.bf16.mxu0 0
        %2713 = vmatpush1.bf16.msra.mxu0 0
        %2714 = vmatprep.subr.bf16.mxu0 0
        %2715 = vmatpush1.bf16.msra.mxu0 0
        %2716 = vmatprep.mubr.bf16.mxu0 0
        %2717 = vmatmul.mubr.bf16.gmra.mrb[0].mxu0 %v2682
        %v2718 = vpop.f32.mrb[0].mxu0
        %v2719 = vadd.f32 %v2667, %v2718
        %v2720 = vpop.f32.mrb[0].mxu0
        %v2721 = vpop.f32.mrb[0].mxu0
        %v2722 = vpop.f32.mrb[0].mxu0
        %2723 = vdwg.mxu0
        %v2724 = vpack.c.bf16 %v2719, %v2719
        %vm2725 = vcmask 257024
        %2726 = vst.msk [vmem:[%s570] sm:$0xf] %vm2725, %v2724
        %s2727 = sand.u32 %s388, 1
        %s2728 = scalar_lea.sflag [#allocation4], %s2727
        %s2729 = sand.u32 %s388, 1
        %s2730 = smul.addr %s2729, 4
        %s2731 = scalar_lea.vmem [#allocation3], %s2730
        %s2732 = sand.u32 %s416, 1
        %s2733 = scalar_lea.sflag [#allocation6], %s2732
        %s2734 = sand.u32 %s416, 1
        %s2735 = smul.addr %s2734, 16
        %s2736 = scalar_lea.vmem [#allocation5], %s2735
        // Predicated region
        $region81: #{tpu_custom_call.1} parent=79 // pred_check
          %p2737 = pneg %p398
        $region82: #{tpu_custom_call.1} parent=79 // pred_check_branch
          %2739 = sbr.rel (%p2737) target = $region84
        $region83: #{tpu_custom_call.1} parent=79 // pred_region
          %s2741 = ssub.s32 64, 64
          %2742 = vsyncadd %s2728, %s2741
          %s2743 = sadd.s32 %s39, %s38
          %s2744 = smul.addr %s2743, 64
          %s2745 = scalar_lea.hbm %s15, %s2744
          %s2747 = sshll.u32 %s2731, 4
          %s2748 = int_to_ptr.vmem [resolvable:$true] %s2747
          %2750 = dma.vmem_to_hbm [thread:$0]  %s2748, 64, %s2745, %s2728
        $region84: #{tpu_custom_call.1} parent=79 // pred_fallthru
          _
        // Predicated region
        $region85: #{tpu_custom_call.1} parent=79 // pred_check
          %p2751 = pneg %p426
        $region86: #{tpu_custom_call.1} parent=79 // pred_check_branch
          %2753 = sbr.rel (%p2751) target = $region88
        $region87: #{tpu_custom_call.1} parent=79 // pred_region
          %s2755 = ssub.s32 256, 256
          %2756 = vsyncadd %s2733, %s2755
          %s2757 = smul.addr %s38, 4
          %s2758 = sadd.s32 %s39, %s2757
          %s2759 = smul.addr %s2758, 64
          %s2760 = scalar_lea.hbm %s16, %s2759
          %s2761 = sshll.u32 %s2736, 4
          %s2762 = int_to_ptr.vmem [resolvable:$true] %s2761
          %2767 = dma.vmem_to_hbm [thread:$0]  %s2762, 256, %s2760, %s2733, 64, 64, 4
        $region88: #{tpu_custom_call.1} parent=79 // pred_fallthru
          _
      $region80: #{tpu_custom_call.1} parent=5 // pred_fallthru
        _
      %p2768 = scmp.le.s32.totalorder 2, %s29
      // Predicated region
      $region89: #{tpu_custom_call.1} parent=5 // pred_check
        %p2769 = pneg %p2768
      $region90: #{tpu_custom_call.1} parent=5 // pred_check_branch
        %2771 = sbr.rel (%p2769) target = $region92
      $region91: #{tpu_custom_call.1} parent=5 // pred_region
        %s2772 = ssub.s32 %s29, 2
        // Predicated region
        $region93: #{tpu_custom_call.1} parent=91 // pred_check
          %p2773 = pneg %p404
        $region94: #{tpu_custom_call.1} parent=91 // pred_check_branch
          %2775 = sbr.rel (%p2773) target = $region96
        $region95: #{tpu_custom_call.1} parent=91 // pred_region
          %s2776 = sand.u32 %s389, 1
          %s2777 = scalar_lea.sflag [#allocation4], %s2776
          %s2778 = sand.u32 %s389, 1
          %s2779 = smul.addr %s2778, 4
          %s2780 = scalar_lea.vmem [#allocation3], %s2779
          %2781 = dma.done %s2777, 64
        $region96: #{tpu_custom_call.1} parent=91 // pred_fallthru
          _
        // Predicated region
        $region97: #{tpu_custom_call.1} parent=91 // pred_check
          %p2782 = pneg %p432
        $region98: #{tpu_custom_call.1} parent=91 // pred_check_branch
          %2784 = sbr.rel (%p2782) target = $region100
        $region99: #{tpu_custom_call.1} parent=91 // pred_region
          %s2785 = sand.u32 %s417, 1
          %s2786 = scalar_lea.sflag [#allocation6], %s2785
          %s2787 = sand.u32 %s417, 1
          %s2788 = smul.addr %s2787, 16
          %s2789 = scalar_lea.vmem [#allocation5], %s2788
          %2790 = dma.done %s2786, 256
        $region100: #{tpu_custom_call.1} parent=91 // pred_fallthru
          _
      $region92: #{tpu_custom_call.1} parent=5 // pred_fallthru
        _
    $region6: #{tpu_custom_call.1} parent=1 // loop_footer
      %s33 = sadd.s32 1, %s29
    $region7: #{tpu_custom_call.1} parent=1 // loop_footer_branch
      %28 = sbr.rel target = $region3
    $region8: #{tpu_custom_call.1} parent=1 // loop_exit
      _
    %2791 = vsyncpa [#allocation4], 1
    %s2792 = scalar_lea.sflag [#allocation4], 1
    %2793 = vsyncpa %s2792, 1
    %2794 = vsyncpa [#allocation6], 1
    %s2795 = scalar_lea.sflag [#allocation6], 1
    %2796 = vsyncpa %s2795, 1

</llo_original>
